<compile_context>
chip_gen: v7x
topology: tpu7x:2x2x1
jax: 0.10.0
libtpu: 0.0.40
codegen_flags: <defaults>
</compile_context>

<pallas_src>
import functools
import math

import jax
import jax.numpy as jnp
from jax.experimental import pallas as pl
from jax.experimental.pallas import tpu as pltpu


POOLING_SIZE = 4
NUM_ROIS = 8
_LOG2_128 = math.log2(128.0)


# ----------------------------------------------------------------------------
# pallas_call helpers (single full-array block, grid=(1,))
# ----------------------------------------------------------------------------
def _fs(shape):
    nd = len(shape)
    return pl.BlockSpec(shape, lambda i: (0,) * nd)


_CPARAMS = pltpu.CompilerParams(dimension_semantics=("arbitrary",))


def _pc(kernel, ins, outs):
    multi = isinstance(outs, (list, tuple))
    out_shape = tuple(outs) if multi else outs
    out_specs = tuple(_fs(o.shape) for o in outs) if multi else _fs(outs.shape)
    return pl.pallas_call(
        kernel,
        out_shape=out_shape,
        grid=(1,),
        in_specs=[_fs(x.shape) for x in ins],
        out_specs=out_specs,
        compiler_params=_CPARAMS,
    )(*ins)


# ----------------------------------------------------------------------------
# Fused Pallas kernels
# ----------------------------------------------------------------------------
def _level1_kernel(cols_ref, w_ref, b_ref, wd_ref, bd_ref, wf_ref, bf_ref,
                   base_ref, p_ref, feat_ref, featp_ref):
    """base1 conv(+ReLU) -> netD1 sigmoid -> prob2entropy2 scaling ->
       netD_forward1 (1x1 conv + ReLU + GAP) -> entropy attention (one kernel)."""
    base = jnp.dot(cols_ref[...], w_ref[...], preferred_element_type=jnp.float32)
    base = jnp.maximum(base + b_ref[...], 0.0)                          # (HW, 16)
    dlog = jnp.dot(base.astype(jnp.bfloat16), wd_ref[...],
                   preferred_element_type=jnp.float32) + bd_ref[...]    # (HW, 1)
    p = jax.nn.sigmoid(dlog)
    p_ref[...] = p
    en = -p * jnp.log2(p + 1e-30)                                       # prob2entropy2
    base_s = base * en                                                  # scaled base feat
    base_ref[...] = base_s.astype(base_ref.dtype)
    f = jnp.dot(base_s.astype(jnp.bfloat16), wf_ref[...],
                preferred_element_type=jnp.float32) + bf_ref[...]       # (HW, 128)
    f = jnp.maximum(f, 0.0)
    feat = jnp.mean(f, axis=0, keepdims=True)                           # GAP -> (1, 128)
    m = jnp.max(feat, axis=-1, keepdims=True)
    e = jnp.exp(feat - m)
    fp = e / jnp.sum(e, axis=-1, keepdims=True)                         # softmax over 128
    featp_ref[...] = fp
    fen = -fp * jnp.log2(fp + 1e-30) / _LOG2_128                        # prob2entropy
    feat_ref[...] = feat * fen


def _level23_kernel(cols_ref, w_ref, b_ref, wd_ref, bd_ref, wf_ref, bf_ref,
                    fcw_ref, fcb_ref, base_ref, p_ref, feat_ref, featp_ref):
    """base conv(+ReLU) -> netD sigmoid (returned only; no scaling, as in the
       reference) -> netD_forward (1x1 conv + ReLU + GAP) -> fc -> global attention."""
    base = jnp.dot(cols_ref[...], w_ref[...], preferred_element_type=jnp.float32)
    base = jnp.maximum(base + b_ref[...], 0.0)                          # (HW, C)
    base_ref[...] = base.astype(base_ref.dtype)
    dlog = jnp.dot(base.astype(jnp.bfloat16), wd_ref[...],
                   preferred_element_type=jnp.float32) + bd_ref[...]
    p_ref[...] = jax.nn.sigmoid(dlog)                                   # domain map
    f = jnp.dot(base.astype(jnp.bfloat16), wf_ref[...],
                preferred_element_type=jnp.float32) + bf_ref[...]
    f = jnp.maximum(f, 0.0)                                             # (HW, 128)
    feat = jnp.mean(f, axis=0, keepdims=True)                           # (1, 128)
    logits = jnp.dot(feat.astype(jnp.bfloat16), fcw_ref[...],
                     preferred_element_type=jnp.float32) + fcb_ref[...]  # (1, 2)
    featp_ref[...] = logits
    m = jnp.max(logits, axis=-1, keepdims=True)
    e = jnp.exp(logits - m)
    sp = e / jnp.sum(e, axis=-1, keepdims=True)
    ent = -jnp.sum(sp * jnp.log2(sp + 1e-30), axis=-1, keepdims=True)   # / log2(2) == 1
    feat_ref[...] = feat * ent


def _rpn_kernel(cols_ref, w_ref, b_ref, wh_ref, bh_ref, heads_ref):
    """RPN 3x3 conv(+ReLU) + merged cls/bbox 1x1 heads in a single matmul."""
    rpn = jnp.dot(cols_ref[...], w_ref[...], preferred_element_type=jnp.float32)
    rpn = jnp.maximum(rpn + b_ref[...], 0.0)                            # (HW, 64)
    heads_ref[...] = jnp.dot(rpn.astype(jnp.bfloat16), wh_ref[...],
                             preferred_element_type=jnp.float32) + bh_ref[...]


def _roi_head_kernel(pooled_ref, wh_ref, bh_ref, fc_ref, wf_ref, wp_ref, b_ref,
                     y_ref, prob_ref, *, nc):
    """_head_to_tail fc + fused {netD_inst, cls_score, bbox_pred} into ONE matmul with
    a lane-dense 128-wide output; constant feat3|feat2|feat1 term folded into a bias
    row; cls softmax computed in-kernel via an iota mask (output stays 128 wide)."""
    h = jnp.dot(pooled_ref[...], wh_ref[...], preferred_element_type=jnp.float32)
    h = jnp.maximum(h + bh_ref[...], 0.0)                               # (R, 256)
    const = jnp.dot(fc_ref[...], wf_ref[...],
                    preferred_element_type=jnp.float32)                 # (1, Npad)
    y = jnp.dot(h.astype(jnp.bfloat16), wp_ref[...],
                preferred_element_type=jnp.float32) + const + b_ref[...]  # (R, Npad)
    y_ref[...] = y
    col = jax.lax.broadcasted_iota(jnp.int32, y.shape, 1)
    mask = (col >= 2) & (col < 2 + nc)                                  # cls_score columns
    logits = jnp.where(mask, y, -1e30)
    m = jnp.max(logits, axis=-1, keepdims=True)
    e = jnp.where(mask, jnp.exp(logits - m), 0.0)
    prob_ref[...] = e / jnp.sum(e, axis=-1, keepdims=True)


# ----------------------------------------------------------------------------
# Glue: strided im2col, ROI-align (bilinear gather), RPN proposal decoding
# ----------------------------------------------------------------------------
def _im2col_3x3(x, stride=1):
    """3x3 'same'(pad=1) patches evaluated only at strided output positions
    (== stride-1 conv followed by ::stride subsampling).
    x: (1, C, H, W) -> cols (Ho*Wo, C*9)."""
    _, C, H, W = x.shape
    xp = jnp.pad(x, ((0, 0), (0, 0), (1, 1), (1, 1)))
    patches = [xp[:, :, dy:dy + H:stride, dx:dx + W:stride]
               for dy in range(3) for dx in range(3)]
    p = jnp.stack(patches, axis=2)                                      # (1, C, 9, Ho, Wo)
    Ho, Wo = p.shape[3], p.shape[4]
    cols = jnp.transpose(p, (0, 3, 4, 1, 2)).reshape(Ho * Wo, C * 9)
    return cols, Ho, Wo


def _roi_align(base_feat, rois, pool, scale):
    """base_feat:(1,C,H,W), rois:(R,5) [batch, x1,y1,x2,y2] in image coords."""
    # TODO(synk): ROI-align bilinear gather kept in plain JAX (no clean Pallas gather
    # at R=8, pool=4; would move to scalar-prefetch DMA gather at realistic sizes).
    feat = base_feat[0]
    C, H, W = feat.shape

    def one(roi):
        x1, y1, x2, y2 = roi[1] * scale, roi[2] * scale, roi[3] * scale, roi[4] * scale
        bw = jnp.maximum(x2 - x1, 1e-3)
        bh = jnp.maximum(y2 - y1, 1e-3)
        xs = jnp.clip(x1 + (jnp.arange(pool) + 0.5) * bw / pool, 0.0, W - 1.0)
        ys = jnp.clip(y1 + (jnp.arange(pool) + 0.5) * bh / pool, 0.0, H - 1.0)
        x0 = jnp.floor(xs).astype(jnp.int32)
        y0 = jnp.floor(ys).astype(jnp.int32)
        x1i = jnp.minimum(x0 + 1, W - 1)
        y1i = jnp.minimum(y0 + 1, H - 1)
        wx, wy = xs - x0, ys - y0
        Y0, X0 = jnp.meshgrid(y0, x0, indexing="ij")
        Y1, X1 = jnp.meshgrid(y1i, x1i, indexing="ij")
        WY, WX = jnp.meshgrid(wy, wx, indexing="ij")
        v00 = feat[:, Y0, X0]
        v01 = feat[:, Y0, X1]
        v10 = feat[:, Y1, X0]
        v11 = feat[:, Y1, X1]
        return (v00 * (1 - WY) * (1 - WX) + v01 * (1 - WY) * WX +
                v10 * WY * (1 - WX) + v11 * WY * WX)                    # (C,pool,pool)

    return jax.vmap(one)(rois)


def _rpn_decode(heads, im_info, Hf, Wf, num_rois, feat_stride=16.0):
    """Anchor decoding + top-k proposal selection (plain-JAX glue, no NMS).
    Channel convention (synthetic, self-consistent): cls channels are
    [a0_bg, a0_fg, a1_bg, a1_fg, a2_bg, a2_fg]; bbox channels are 4*a + d."""
    A = 3
    HW = Hf * Wf
    cls = heads[:, :2 * A]
    fg = jax.nn.sigmoid(cls[:, 1::2] - cls[:, 0::2])                    # == softmax[fg], (HW, A)
    deltas = heads[:, 2 * A:].reshape(HW, A, 4)

    ys, xs = jnp.meshgrid(jnp.arange(Hf, dtype=jnp.float32),
                          jnp.arange(Wf, dtype=jnp.float32), indexing="ij")
    cx = (xs.reshape(-1) + 0.5) * feat_stride                           # (HW,)
    cy = (ys.reshape(-1) + 0.5) * feat_stride
    sizes = jnp.array([16.0, 24.0, 32.0], jnp.float32)                  # per-anchor size

    pcx = cx[:, None] + deltas[:, :, 0] * sizes[None, :]
    pcy = cy[:, None] + deltas[:, :, 1] * sizes[None, :]
    pw = sizes[None, :] * jnp.exp(jnp.clip(deltas[:, :, 2], -2.0, 2.0))
    ph = sizes[None, :] * jnp.exp(jnp.clip(deltas[:, :, 3], -2.0, 2.0))

    im_h, im_w = im_info[0, 0], im_info[0, 1]
    x1 = jnp.clip(pcx - pw / 2, 0.0, im_w - 1.0).reshape(-1)
    y1 = jnp.clip(pcy - ph / 2, 0.0, im_h - 1.0).reshape(-1)
    x2 = jnp.clip(pcx + pw / 2, 0.0, im_w - 1.0).reshape(-1)
    y2 = jnp.clip(pcy + ph / 2, 0.0, im_h - 1.0).reshape(-1)

    _, top = jax.lax.top_k(fg.reshape(-1), num_rois)
    rois = jnp.stack([jnp.zeros(num_rois, jnp.float32),
                      x1[top], y1[top], x2[top], y2[top]], axis=1)
    return rois[None]                                                   # (1, num_rois, 5)


# ----------------------------------------------------------------------------
# Parameters (deterministic synthetic init) + kernel-layout preparation
# ----------------------------------------------------------------------------
def init_params(key, n_classes):
    shapes = {
        "base1_w": (16, 3, 3, 3),   "base1_b": (16,),
        "base2_w": (32, 16, 3, 3),  "base2_b": (32,),
        "base3_w": (64, 32, 3, 3),  "base3_b": (64,),
        "netD1_w": (1, 16, 1, 1),   "netD1_b": (1,),
        "netD2_w": (1, 32, 1, 1),   "netD2_b": (1,),
        "netD3_w": (1, 64, 1, 1),   "netD3_b": (1,),
        "netDf1_w": (128, 16, 1, 1), "netDf1_b": (128,),
        "netDf2_w": (128, 32, 1, 1), "netDf2_b": (128,),
        "netDf3_w": (128, 64, 1, 1), "netDf3_b": (128,),
        "fc2_w": (2, 128), "fc2_b": (2,),
        "fc3_w": (2, 128), "fc3_b": (2,),
        "rpn_conv_w": (64, 64, 3, 3), "rpn_conv_b": (64,),
        "rpn_cls_w": (6, 64, 1, 1),   "rpn_cls_b": (6,),
        "rpn_bbox_w": (12, 64, 1, 1), "rpn_bbox_b": (12,),
        "head_w": (256, 64 * 4 * 4), "head_b": (256,),
        "netD_inst_w": (2, 3 * 128 + 256), "netD_inst_b": (2,),
        "cls_score_w": (n_classes, 3 * 128 + 256), "cls_score_b": (n_classes,),
        "bbox_pred_w": (4 * n_classes, 3 * 128 + 256), "bbox_pred_b": (4 * n_classes,),
    }
    params = {}
    keys = jax.random.split(key, len(shapes))
    for (name, shp), k in zip(sorted(shapes.items()), keys):
        if name.endswith("_b"):
            params[name] = jnp.zeros(shp, jnp.float32)
        else:
            params[name] = 0.01 * jax.random.normal(k, shp, jnp.float32)
    return params


def prep_params(p):
    """Reshape / transpose / pad / bf16-cast weights once into kernel-ready layout."""
    bf16 = jnp.bfloat16

    def f32row(b):
        return b.reshape(1, -1).astype(jnp.float32)

    prep = {
        # level 1
        "w1T": p["base1_w"].reshape(16, -1).T.astype(bf16),
        "b1": f32row(p["base1_b"]),
        "wd1": p["netD1_w"].reshape(1, -1).T.astype(bf16),
        "bd1": f32row(p["netD1_b"]),
        "wf1T": p["netDf1_w"].reshape(128, -1).T.astype(bf16),
        "bf1": f32row(p["netDf1_b"]),
        # level 2
        "w2T": p["base2_w"].reshape(32, -1).T.astype(bf16),
        "b2": f32row(p["base2_b"]),
        "wd2": p["netD2_w"].reshape(1, -1).T.astype(bf16),
        "bd2": f32row(p["netD2_b"]),
        "wf2T": p["netDf2_w"].reshape(128, -1).T.astype(bf16),
        "bf2": f32row(p["netDf2_b"]),
        "fc2wT": p["fc2_w"].T.astype(bf16),
        "fc2b": f32row(p["fc2_b"]),
        # level 3
        "w3T": p["base3_w"].reshape(64, -1).T.astype(bf16),
        "b3": f32row(p["base3_b"]),
        "wd3": p["netD3_w"].reshape(1, -1).T.astype(bf16),
        "bd3": f32row(p["netD3_b"]),
        "wf3T": p["netDf3_w"].reshape(128, -1).T.astype(bf16),
        "bf3": f32row(p["netDf3_b"]),
        "fc3wT": p["fc3_w"].T.astype(bf16),
        "fc3b": f32row(p["fc3_b"]),
        # RPN conv + merged cls/bbox heads (6 + 12 output units)
        "wrT": p["rpn_conv_w"].reshape(64, -1).T.astype(bf16),
        "br": f32row(p["rpn_conv_b"]),
        "whT": jnp.concatenate([p["rpn_cls_w"].reshape(6, 64),
                                p["rpn_bbox_w"].reshape(12, 64)], axis=0).T.astype(bf16),
        "bh": f32row(jnp.concatenate([p["rpn_cls_b"], p["rpn_bbox_b"]])),
    }
    # ROI head: _head_to_tail fc + fused {netD_inst, cls_score, bbox_pred}.
    # pooled_feat column layout in the reference after the 3 concats: [feat3|feat2|feat1|head].
    prep["wheadT"] = p["head_w"].T.astype(bf16)                         # (1024, 256)
    prep["bhead"] = f32row(p["head_b"])
    w_all = jnp.concatenate([p["netD_inst_w"], p["cls_score_w"], p["bbox_pred_w"]], axis=0)
    b_all = jnp.concatenate([p["netD_inst_b"], p["cls_score_b"], p["bbox_pred_b"]])
    n_out = w_all.shape[0]
    n_pad = ((n_out + 127) // 128) * 128                                # lane-dense output width
    w_all = jnp.pad(w_all, ((0, n_pad - n_out), (0, 0)))
    b_all = jnp.pad(b_all, (0, n_pad - n_out))
    prep["wfeatT"] = w_all[:, :384].T.astype(bf16)                      # multiplies [feat3|feat2|feat1]
    prep["wpT"] = w_all[:, 384:].T.astype(bf16)                         # multiplies head_to_tail output
    prep["ball"] = b_all.reshape(1, -1).astype(jnp.float32)
    return prep


# ----------------------------------------------------------------------------
# Forward pass (inference; training=False, target=False, POOLING_MODE='align')
# ----------------------------------------------------------------------------
def faster_rcnn_meaa_forward(prep, im_data, im_info, gt_boxes, num_boxes,
                             n_classes=5, eta=1.0):
    del gt_boxes, num_boxes, eta  # grad_reverse is identity in fwd; gt unused at inference
    batch_size = im_data.shape[0]
    f32, bf16 = jnp.float32, jnp.bfloat16

    # --- level 1: base1 (stride-4) + domain-entropy scaling + entropy attention -----
    cols1, H1, W1 = _im2col_3x3(im_data, stride=4)
    base1, p1, feat1, feat1_p = _pc(
        _level1_kernel,
        [cols1.astype(bf16), prep["w1T"], prep["b1"], prep["wd1"], prep["bd1"],
         prep["wf1T"], prep["bf1"]],
        [jax.ShapeDtypeStruct((H1 * W1, 16), bf16),
         jax.ShapeDtypeStruct((H1 * W1, 1), f32),
         jax.ShapeDtypeStruct((1, 128), f32),
         jax.ShapeDtypeStruct((1, 128), f32)])
    domain_p1 = p1.reshape(1, 1, H1, W1)
    base1_nchw = jnp.transpose(base1.reshape(H1, W1, 16), (2, 0, 1))[None]

    # --- level 2 (no domain scaling, matching the reference) -------------------------
    cols2, H2, W2 = _im2col_3x3(base1_nchw, stride=2)
    base2, p2, feat2, feat2_p = _pc(
        _level23_kernel,
        [cols2.astype(bf16), prep["w2T"], prep["b2"], prep["wd2"], prep["bd2"],
         prep["wf2T"], prep["bf2"], prep["fc2wT"], prep["fc2b"]],
        [jax.ShapeDtypeStruct((H2 * W2, 32), bf16),
         jax.ShapeDtypeStruct((H2 * W2, 1), f32),
         jax.ShapeDtypeStruct((1, 128), f32),
         jax.ShapeDtypeStruct((1, 2), f32)])
    domain_p2 = p2.reshape(1, 1, H2, W2)
    base2_nchw = jnp.transpose(base2.reshape(H2, W2, 32), (2, 0, 1))[None]

    # --- level 3 ---------------------------------------------------------------------
    cols3, H3, W3 = _im2col_3x3(base2_nchw, stride=2)
    base3, p3, feat3, feat3_p = _pc(
        _level23_kernel,
        [cols3.astype(bf16), prep["w3T"], prep["b3"], prep["wd3"], prep["bd3"],
         prep["wf3T"], prep["bf3"], prep["fc3wT"], prep["fc3b"]],
        [jax.ShapeDtypeStruct((H3 * W3, 64), bf16),
         jax.ShapeDtypeStruct((H3 * W3, 1), f32),
         jax.ShapeDtypeStruct((1, 128), f32),
         jax.ShapeDtypeStruct((1, 2), f32)])
    domain_p3 = p3.reshape(1, 1, H3, W3)
    base_feat = jnp.transpose(base3.reshape(H3, W3, 64), (2, 0, 1))[None]   # (1,64,H3,W3)

    # --- RPN (one fused kernel), proposal decoding + top-k in glue --------------------
    colsr, Hr, Wr = _im2col_3x3(base_feat, stride=1)
    heads = _pc(
        _rpn_kernel,
        [colsr.astype(bf16), prep["wrT"], prep["br"], prep["whT"], prep["bh"]],
        jax.ShapeDtypeStruct((Hr * Wr, 18), f32))
    rois = _rpn_decode(heads, im_info, Hr, Wr, NUM_ROIS)
    rpn_loss_cls = 0
    rpn_loss_bbox = 0
    rois_label = None

    # --- ROI align (glue) + fused ROI head --------------------------------------------
    pooled = _roi_align(base_feat, rois.reshape(-1, 5), POOLING_SIZE, 1.0 / 16.0)
    pooled_flat = pooled.reshape(pooled.shape[0], -1)                   # (R, 64*4*4)
    feats_cat = jnp.concatenate([feat3, feat2, feat1], axis=1)          # (1, 384)
    n_pad = prep["wpT"].shape[1]
    R = pooled_flat.shape[0]
    y_all, probs = _pc(
        functools.partial(_roi_head_kernel, nc=n_classes),
        [pooled_flat.astype(bf16), prep["wheadT"], prep["bhead"],
         feats_cat.astype(bf16), prep["wfeatT"], prep["wpT"], prep["ball"]],
        [jax.ShapeDtypeStruct((R, n_pad), f32),
         jax.ShapeDtypeStruct((R, n_pad), f32)])

    d_inst = y_all[:, 0:2]
    cls_prob = probs[:, 2:2 + n_classes].reshape(batch_size, NUM_ROIS, -1)
    bbox_pred = y_all[:, 2 + n_classes:2 + 5 * n_classes].reshape(batch_size, NUM_ROIS, -1)

    RCNN_loss_cls = 0
    RCNN_loss_bbox = 0

    return (rois, cls_prob, bbox_pred, rpn_loss_cls, rpn_loss_bbox,
            RCNN_loss_cls, RCNN_loss_bbox, rois_label, d_inst,
            domain_p1, domain_p2, domain_p3, feat1_p, feat2_p, feat3_p)


# ----------------------------------------------------------------------------
if __name__ == "__main__":
    classes = ("__background__", "car", "person", "bike", "bus")
    n_classes = len(classes)

    key = jax.random.PRNGKey(0)
    k_im, k_gt, k_params = jax.random.split(key, 3)

    im_data = jax.random.normal(k_im, (1, 3, 64, 64), jnp.float32)
    im_info = jnp.array([[64.0, 64.0, 1.0]], jnp.float32)
    gt_boxes = jax.random.uniform(k_gt, (1, 5, 5), jnp.float32) * 64.0
    num_boxes = jnp.zeros((1,), jnp.int32)

    params = init_params(k_params, n_classes)
    prep = prep_params(params)

    fwd = jax.jit(functools.partial(faster_rcnn_meaa_forward, n_classes=n_classes))
    out = fwd(prep, im_data, im_info, gt_boxes, num_boxes)

    for o in out:
        if isinstance(o, jnp.ndarray):
            jax.block_until_ready(o)

    rois, cls_prob, bbox_pred = out[0], out[1], out[2]
    assert rois.shape == (1, NUM_ROIS, 5)
    assert cls_prob.shape == (1, NUM_ROIS, n_classes)
    assert bbox_pred.shape == (1, NUM_ROIS, 4 * n_classes)
    print("KERNEL_OK")
</pallas_src>

<mosaic_0001>
module attributes {stable_mosaic.version = 11 : i64} {
  func.func @_level1_kernel(%arg0: i32, %arg1: memref<256x27xbf16, #tpu.memory_space<vmem>>, %arg2: memref<27x16xbf16, #tpu.memory_space<vmem>>, %arg3: memref<1x16xf32, #tpu.memory_space<vmem>>, %arg4: memref<16x1xbf16, #tpu.memory_space<vmem>>, %arg5: memref<1x1xf32, #tpu.memory_space<vmem>>, %arg6: memref<16x128xbf16, #tpu.memory_space<vmem>>, %arg7: memref<1x128xf32, #tpu.memory_space<vmem>>, %arg8: memref<256x16xbf16, #tpu.memory_space<vmem>>, %arg9: memref<256x1xf32, #tpu.memory_space<vmem>>, %arg10: memref<1x128xf32, #tpu.memory_space<vmem>>, %arg11: memref<1x128xf32, #tpu.memory_space<vmem>>) attributes {dimension_semantics = [#tpu.dimension_semantics<arbitrary>], iteration_bounds = array<i64: 1>, scalar_prefetch = 0 : i64, scratch_operands = 0 : i64, tpu.core_type = #tpu.core_type<tc>, window_params = [{pipeline_mode = #tpu.pipeline_mode<synchronous>, transform_indices = @transform_0, window_bounds = array<i64: 256, 27>}, {pipeline_mode = #tpu.pipeline_mode<synchronous>, transform_indices = @transform_1, window_bounds = array<i64: 27, 16>}, {pipeline_mode = #tpu.pipeline_mode<synchronous>, transform_indices = @transform_2, window_bounds = array<i64: 1, 16>}, {pipeline_mode = #tpu.pipeline_mode<synchronous>, transform_indices = @transform_3, window_bounds = array<i64: 16, 1>}, {pipeline_mode = #tpu.pipeline_mode<synchronous>, transform_indices = @transform_4, window_bounds = array<i64: 1, 1>}, {pipeline_mode = #tpu.pipeline_mode<synchronous>, transform_indices = @transform_5, window_bounds = array<i64: 16, 128>}, {pipeline_mode = #tpu.pipeline_mode<synchronous>, transform_indices = @transform_6, window_bounds = array<i64: 1, 128>}, {pipeline_mode = #tpu.pipeline_mode<synchronous>, transform_indices = @transform_7, window_bounds = array<i64: 256, 16>}, {pipeline_mode = #tpu.pipeline_mode<synchronous>, transform_indices = @transform_8, window_bounds = array<i64: 256, 1>}, {pipeline_mode = #tpu.pipeline_mode<synchronous>, transform_indices = @transform_9, window_bounds = array<i64: 1, 128>}, {pipeline_mode = #tpu.pipeline_mode<synchronous>, transform_indices = @transform_10, window_bounds = array<i64: 1, 128>}]} {
    %c0 = arith.constant 0 : index
    %c0_0 = arith.constant 0 : index
    %0 = vector.load %arg1[%c0, %c0_0] : memref<256x27xbf16, #tpu.memory_space<vmem>>, vector<256x27xbf16>
    %c0_1 = arith.constant 0 : index
    %c0_2 = arith.constant 0 : index
    %1 = vector.load %arg2[%c0_1, %c0_2] : memref<27x16xbf16, #tpu.memory_space<vmem>>, vector<27x16xbf16>
    %cst = arith.constant dense<0.000000e+00> : vector<256x16xf32>
    %2 = tpu.matmul %0, %1, %cst {dimension_numbers = #tpu.dot_dimension_numbers<[1], [0], [0], [1], [0, 0, 1, 1], [], []>} : vector<256x27xbf16>, vector<27x16xbf16>, vector<256x16xf32> -> vector<256x16xf32>
    %c0_3 = arith.constant 0 : index
    %c0_4 = arith.constant 0 : index
    %3 = vector.load %arg3[%c0_3, %c0_4] : memref<1x16xf32, #tpu.memory_space<vmem>>, vector<1x16xf32>
    %4 = vector.broadcast %3 : vector<1x16xf32> to vector<256x16xf32>
    %5 = arith.addf %2, %4 : vector<256x16xf32>
    %cst_5 = arith.constant 0.000000e+00 : f32
    %6 = vector.broadcast %cst_5 : f32 to vector<256x16xf32>
    %7 = arith.maximumf %5, %6 : vector<256x16xf32>
    %8 = arith.truncf %7 : vector<256x16xf32> to vector<256x16xbf16>
    %c0_6 = arith.constant 0 : index
    %c0_7 = arith.constant 0 : index
    %9 = vector.load %arg4[%c0_6, %c0_7] : memref<16x1xbf16, #tpu.memory_space<vmem>>, vector<16x1xbf16>
    %cst_8 = arith.constant dense<0.000000e+00> : vector<256x1xf32>
    %10 = tpu.matmul %8, %9, %cst_8 {dimension_numbers = #tpu.dot_dimension_numbers<[1], [0], [0], [1], [0, 0, 1, 1], [], []>} : vector<256x16xbf16>, vector<16x1xbf16>, vector<256x1xf32> -> vector<256x1xf32>
    %c0_9 = arith.constant 0 : index
    %c0_10 = arith.constant 0 : index
    %11 = vector.load %arg5[%c0_9, %c0_10] : memref<1x1xf32, #tpu.memory_space<vmem>>, vector<1x1xf32>
    %12 = vector.broadcast %11 : vector<1x1xf32> to vector<256x1xf32>
    %13 = arith.addf %10, %12 : vector<256x1xf32>
    %14 = arith.negf %13 : vector<256x1xf32>
    %15 = math.exp %14 : vector<256x1xf32>
    %cst_11 = arith.constant 1.000000e+00 : f32
    %16 = vector.broadcast %cst_11 : f32 to vector<256x1xf32>
    %17 = arith.addf %16, %15 : vector<256x1xf32>
    %18 = arith.divf %16, %17 : vector<256x1xf32>
    %c0_12 = arith.constant 0 : index
    %c0_13 = arith.constant 0 : index
    %19 = vector.load %arg9[%c0_12, %c0_13] : memref<256x1xf32, #tpu.memory_space<vmem>>, vector<256x1xf32>
    tpu.vector_store %arg9[%c0_12, %c0_13], %18 {strides = array<i32>} : memref<256x1xf32, #tpu.memory_space<vmem>>, vector<256x1xf32>,
    %cst_14 = arith.constant 0.000000e+00 : f32
    %20 = vector.broadcast %cst_14 : f32 to vector<256x1xf32>
    %21 = arith.subf %20, %18 : vector<256x1xf32>
    %cst_15 = arith.constant 1.000000e-30 : f32
    %22 = vector.broadcast %cst_15 : f32 to vector<256x1xf32>
    %23 = arith.addf %18, %22 : vector<256x1xf32>
    %24 = math.log %23 : vector<256x1xf32>
    %cst_16 = arith.constant 2.000000e+00 : f32
    %25 = math.log %cst_16 : f32
    %26 = vector.broadcast %25 : f32 to vector<256x1xf32>
    %27 = arith.divf %24, %26 : vector<256x1xf32>
    %28 = arith.mulf %21, %27 : vector<256x1xf32>
    %29 = vector.broadcast %28 : vector<256x1xf32> to vector<256x16xf32>
    %30 = arith.mulf %7, %29 : vector<256x16xf32>
    %31 = arith.truncf %30 : vector<256x16xf32> to vector<256x16xbf16>
    %c0_17 = arith.constant 0 : index
    %c0_18 = arith.constant 0 : index
    %32 = vector.load %arg8[%c0_17, %c0_18] : memref<256x16xbf16, #tpu.memory_space<vmem>>, vector<256x16xbf16>
    tpu.vector_store %arg8[%c0_17, %c0_18], %31 {strides = array<i32>} : memref<256x16xbf16, #tpu.memory_space<vmem>>, vector<256x16xbf16>,
    %33 = arith.truncf %30 : vector<256x16xf32> to vector<256x16xbf16>
    %c0_19 = arith.constant 0 : index
    %c0_20 = arith.constant 0 : index
    %34 = vector.load %arg6[%c0_19, %c0_20] : memref<16x128xbf16, #tpu.memory_space<vmem>>, vector<16x128xbf16>
    %cst_21 = arith.constant dense<0.000000e+00> : vector<256x128xf32>
    %35 = tpu.matmul %33, %34, %cst_21 {dimension_numbers = #tpu.dot_dimension_numbers<[1], [0], [0], [1], [0, 0, 1, 1], [], []>} : vector<256x16xbf16>, vector<16x128xbf16>, vector<256x128xf32> -> vector<256x128xf32>
    %c0_22 = arith.constant 0 : index
    %c0_23 = arith.constant 0 : index
    %36 = vector.load %arg7[%c0_22, %c0_23] : memref<1x128xf32, #tpu.memory_space<vmem>>, vector<1x128xf32>
    %37 = vector.broadcast %36 : vector<1x128xf32> to vector<256x128xf32>
    %38 = arith.addf %35, %37 : vector<256x128xf32>
    %cst_24 = arith.constant 0.000000e+00 : f32
    %39 = vector.broadcast %cst_24 : f32 to vector<256x128xf32>
    %40 = arith.maximumf %38, %39 : vector<256x128xf32>
    %cst_25 = arith.constant dense<0.000000e+00> : vector<128xf32>
    %41 = vector.multi_reduction <add>, %40, %cst_25 [0] : vector<256x128xf32> to vector<128xf32>
    %42 = vector.shape_cast %41 : vector<128xf32> to vector<1x128xf32>
    %cst_26 = arith.constant 2.560000e+02 : f32
    %43 = vector.broadcast %cst_26 : f32 to vector<1x128xf32>
    %44 = arith.divf %42, %43 : vector<1x128xf32>
    %cst_27 = arith.constant dense<0xFF800000> : vector<1xf32>
    %45 = vector.multi_reduction <maximumf>, %44, %cst_27 [1] : vector<1x128xf32> to vector<1xf32>
    %46 = vector.shape_cast %45 : vector<1xf32> to vector<1x1xf32>
    %47 = vector.broadcast %46 : vector<1x1xf32> to vector<1x128xf32>
    %48 = arith.subf %44, %47 : vector<1x128xf32>
    %49 = math.exp %48 : vector<1x128xf32>
    %cst_28 = arith.constant dense<0.000000e+00> : vector<1xf32>
    %50 = vector.multi_reduction <add>, %49, %cst_28 [1] : vector<1x128xf32> to vector<1xf32>
    %51 = vector.shape_cast %50 : vector<1xf32> to vector<1x1xf32>
    %52 = vector.broadcast %51 : vector<1x1xf32> to vector<1x128xf32>
    %53 = arith.divf %49, %52 : vector<1x128xf32>
    %c0_29 = arith.constant 0 : index
    %c0_30 = arith.constant 0 : index
    %54 = vector.load %arg11[%c0_29, %c0_30] : memref<1x128xf32, #tpu.memory_space<vmem>>, vector<1x128xf32>
    tpu.vector_store %arg11[%c0_29, %c0_30], %53 {strides = array<i32>} : memref<1x128xf32, #tpu.memory_space<vmem>>, vector<1x128xf32>,
    %cst_31 = arith.constant 0.000000e+00 : f32
    %55 = vector.broadcast %cst_31 : f32 to vector<1x128xf32>
    %56 = arith.subf %55, %53 : vector<1x128xf32>
    %cst_32 = arith.constant 1.000000e-30 : f32
    %57 = vector.broadcast %cst_32 : f32 to vector<1x128xf32>
    %58 = arith.addf %53, %57 : vector<1x128xf32>
    %59 = math.log %58 : vector<1x128xf32>
    %cst_33 = arith.constant 2.000000e+00 : f32
    %60 = math.log %cst_33 : f32
    %61 = vector.broadcast %60 : f32 to vector<1x128xf32>
    %62 = arith.divf %59, %61 : vector<1x128xf32>
    %63 = arith.mulf %56, %62 : vector<1x128xf32>
    %cst_34 = arith.constant 7.000000e+00 : f32
    %64 = vector.broadcast %cst_34 : f32 to vector<1x128xf32>
    %65 = arith.divf %63, %64 : vector<1x128xf32>
    %66 = arith.mulf %44, %65 : vector<1x128xf32>
    %c0_35 = arith.constant 0 : index
    %c0_36 = arith.constant 0 : index
    %67 = vector.load %arg10[%c0_35, %c0_36] : memref<1x128xf32, #tpu.memory_space<vmem>>, vector<1x128xf32>
    tpu.vector_store %arg10[%c0_35, %c0_36], %66 {strides = array<i32>} : memref<1x128xf32, #tpu.memory_space<vmem>>, vector<1x128xf32>,
    return
  }
  func.func @transform_0(%arg0: i32) -> (i32, i32) {
    %c0_i32 = arith.constant 0 : i32
    %c0_i32_0 = arith.constant 0 : i32
    %c0_i32_1 = arith.constant 0 : i32
    return %c0_i32, %c0_i32_0 : i32, i32
  }
  func.func @transform_1(%arg0: i32) -> (i32, i32) {
    %c0_i32 = arith.constant 0 : i32
    %c0_i32_0 = arith.constant 0 : i32
    %c0_i32_1 = arith.constant 0 : i32
    return %c0_i32, %c0_i32_0 : i32, i32
  }
  func.func @transform_2(%arg0: i32) -> (i32, i32) {
    %c0_i32 = arith.constant 0 : i32
    %c0_i32_0 = arith.constant 0 : i32
    %c0_i32_1 = arith.constant 0 : i32
    return %c0_i32, %c0_i32_0 : i32, i32
  }
  func.func @transform_3(%arg0: i32) -> (i32, i32) {
    %c0_i32 = arith.constant 0 : i32
    %c0_i32_0 = arith.constant 0 : i32
    %c0_i32_1 = arith.constant 0 : i32
    return %c0_i32, %c0_i32_0 : i32, i32
  }
  func.func @transform_4(%arg0: i32) -> (i32, i32) {
    %c0_i32 = arith.constant 0 : i32
    %c0_i32_0 = arith.constant 0 : i32
    %c0_i32_1 = arith.constant 0 : i32
    return %c0_i32, %c0_i32_0 : i32, i32
  }
  func.func @transform_5(%arg0: i32) -> (i32, i32) {
    %c0_i32 = arith.constant 0 : i32
    %c0_i32_0 = arith.constant 0 : i32
    %c0_i32_1 = arith.constant 0 : i32
    return %c0_i32, %c0_i32_0 : i32, i32
  }
  func.func @transform_6(%arg0: i32) -> (i32, i32) {
    %c0_i32 = arith.constant 0 : i32
    %c0_i32_0 = arith.constant 0 : i32
    %c0_i32_1 = arith.constant 0 : i32
    return %c0_i32, %c0_i32_0 : i32, i32
  }
  func.func @transform_7(%arg0: i32) -> (i32, i32) {
    %c0_i32 = arith.constant 0 : i32
    %c0_i32_0 = arith.constant 0 : i32
    %c0_i32_1 = arith.constant 0 : i32
    return %c0_i32, %c0_i32_0 : i32, i32
  }
  func.func @transform_8(%arg0: i32) -> (i32, i32) {
    %c0_i32 = arith.constant 0 : i32
    %c0_i32_0 = arith.constant 0 : i32
    %c0_i32_1 = arith.constant 0 : i32
    return %c0_i32, %c0_i32_0 : i32, i32
  }
  func.func @transform_9(%arg0: i32) -> (i32, i32) {
    %c0_i32 = arith.constant 0 : i32
    %c0_i32_0 = arith.constant 0 : i32
    %c0_i32_1 = arith.constant 0 : i32
    return %c0_i32, %c0_i32_0 : i32, i32
  }
  func.func @transform_10(%arg0: i32) -> (i32, i32) {
    %c0_i32 = arith.constant 0 : i32
    %c0_i32_0 = arith.constant 0 : i32
    %c0_i32_1 = arith.constant 0 : i32
    return %c0_i32, %c0_i32_0 : i32, i32
  }
}

module attributes {stable_mosaic.version = 11 : i64} {
  func.func @_level23_kernel(%arg0: i32, %arg1: memref<64x144xbf16, #tpu.memory_space<vmem>>, %arg2: memref<144x32xbf16, #tpu.memory_space<vmem>>, %arg3: memref<1x32xf32, #tpu.memory_space<vmem>>, %arg4: memref<32x1xbf16, #tpu.memory_space<vmem>>, %arg5: memref<1x1xf32, #tpu.memory_space<vmem>>, %arg6: memref<32x128xbf16, #tpu.memory_space<vmem>>, %arg7: memref<1x128xf32, #tpu.memory_space<vmem>>, %arg8: memref<128x2xbf16, #tpu.memory_space<vmem>>, %arg9: memref<1x2xf32, #tpu.memory_space<vmem>>, %arg10: memref<64x32xbf16, #tpu.memory_space<vmem>>, %arg11: memref<64x1xf32, #tpu.memory_space<vmem>>, %arg12: memref<1x128xf32, #tpu.memory_space<vmem>>, %arg13: memref<1x2xf32, #tpu.memory_space<vmem>>) attributes {dimension_semantics = [#tpu.dimension_semantics<arbitrary>], iteration_bounds = array<i64: 1>, scalar_prefetch = 0 : i64, scratch_operands = 0 : i64, tpu.core_type = #tpu.core_type<tc>, window_params = [{pipeline_mode = #tpu.pipeline_mode<synchronous>, transform_indices = @transform_0, window_bounds = array<i64: 64, 144>}, {pipeline_mode = #tpu.pipeline_mode<synchronous>, transform_indices = @transform_1, window_bounds = array<i64: 144, 32>}, {pipeline_mode = #tpu.pipeline_mode<synchronous>, transform_indices = @transform_2, window_bounds = array<i64: 1, 32>}, {pipeline_mode = #tpu.pipeline_mode<synchronous>, transform_indices = @transform_3, window_bounds = array<i64: 32, 1>}, {pipeline_mode = #tpu.pipeline_mode<synchronous>, transform_indices = @transform_4, window_bounds = array<i64: 1, 1>}, {pipeline_mode = #tpu.pipeline_mode<synchronous>, transform_indices = @transform_5, window_bounds = array<i64: 32, 128>}, {pipeline_mode = #tpu.pipeline_mode<synchronous>, transform_indices = @transform_6, window_bounds = array<i64: 1, 128>}, {pipeline_mode = #tpu.pipeline_mode<synchronous>, transform_indices = @transform_7, window_bounds = array<i64: 128, 2>}, {pipeline_mode = #tpu.pipeline_mode<synchronous>, transform_indices = @transform_8, window_bounds = array<i64: 1, 2>}, {pipeline_mode = #tpu.pipeline_mode<synchronous>, transform_indices = @transform_9, window_bounds = array<i64: 64, 32>}, {pipeline_mode = #tpu.pipeline_mode<synchronous>, transform_indices = @transform_10, window_bounds = array<i64: 64, 1>}, {pipeline_mode = #tpu.pipeline_mode<synchronous>, transform_indices = @transform_11, window_bounds = array<i64: 1, 128>}, {pipeline_mode = #tpu.pipeline_mode<synchronous>, transform_indices = @transform_12, window_bounds = array<i64: 1, 2>}]} {
    %c0 = arith.constant 0 : index
    %c0_0 = arith.constant 0 : index
    %0 = vector.load %arg1[%c0, %c0_0] : memref<64x144xbf16, #tpu.memory_space<vmem>>, vector<64x144xbf16>
    %c0_1 = arith.constant 0 : index
    %c0_2 = arith.constant 0 : index
    %1 = vector.load %arg2[%c0_1, %c0_2] : memref<144x32xbf16, #tpu.memory_space<vmem>>, vector<144x32xbf16>
    %cst = arith.constant dense<0.000000e+00> : vector<64x32xf32>
    %2 = tpu.matmul %0, %1, %cst {dimension_numbers = #tpu.dot_dimension_numbers<[1], [0], [0], [1], [0, 0, 1, 1], [], []>} : vector<64x144xbf16>, vector<144x32xbf16>, vector<64x32xf32> -> vector<64x32xf32>
    %c0_3 = arith.constant 0 : index
    %c0_4 = arith.constant 0 : index
    %3 = vector.load %arg3[%c0_3, %c0_4] : memref<1x32xf32, #tpu.memory_space<vmem>>, vector<1x32xf32>
    %4 = vector.broadcast %3 : vector<1x32xf32> to vector<64x32xf32>
    %5 = arith.addf %2, %4 : vector<64x32xf32>
    %cst_5 = arith.constant 0.000000e+00 : f32
    %6 = vector.broadcast %cst_5 : f32 to vector<64x32xf32>
    %7 = arith.maximumf %5, %6 : vector<64x32xf32>
    %8 = arith.truncf %7 : vector<64x32xf32> to vector<64x32xbf16>
    %c0_6 = arith.constant 0 : index
    %c0_7 = arith.constant 0 : index
    %9 = vector.load %arg10[%c0_6, %c0_7] : memref<64x32xbf16, #tpu.memory_space<vmem>>, vector<64x32xbf16>
    tpu.vector_store %arg10[%c0_6, %c0_7], %8 {strides = array<i32>} : memref<64x32xbf16, #tpu.memory_space<vmem>>, vector<64x32xbf16>,
    %10 = arith.truncf %7 : vector<64x32xf32> to vector<64x32xbf16>
    %c0_8 = arith.constant 0 : index
    %c0_9 = arith.constant 0 : index
    %11 = vector.load %arg4[%c0_8, %c0_9] : memref<32x1xbf16, #tpu.memory_space<vmem>>, vector<32x1xbf16>
    %cst_10 = arith.constant dense<0.000000e+00> : vector<64x1xf32>
    %12 = tpu.matmul %10, %11, %cst_10 {dimension_numbers = #tpu.dot_dimension_numbers<[1], [0], [0], [1], [0, 0, 1, 1], [], []>} : vector<64x32xbf16>, vector<32x1xbf16>, vector<64x1xf32> -> vector<64x1xf32>
    %c0_11 = arith.constant 0 : index
    %c0_12 = arith.constant 0 : index
    %13 = vector.load %arg5[%c0_11, %c0_12] : memref<1x1xf32, #tpu.memory_space<vmem>>, vector<1x1xf32>
    %14 = vector.broadcast %13 : vector<1x1xf32> to vector<64x1xf32>
    %15 = arith.addf %12, %14 : vector<64x1xf32>
    %16 = arith.negf %15 : vector<64x1xf32>
    %17 = math.exp %16 : vector<64x1xf32>
    %cst_13 = arith.constant 1.000000e+00 : f32
    %18 = vector.broadcast %cst_13 : f32 to vector<64x1xf32>
    %19 = arith.addf %18, %17 : vector<64x1xf32>
    %20 = arith.divf %18, %19 : vector<64x1xf32>
    %c0_14 = arith.constant 0 : index
    %c0_15 = arith.constant 0 : index
    %21 = vector.load %arg11[%c0_14, %c0_15] : memref<64x1xf32, #tpu.memory_space<vmem>>, vector<64x1xf32>
    tpu.vector_store %arg11[%c0_14, %c0_15], %20 {strides = array<i32>} : memref<64x1xf32, #tpu.memory_space<vmem>>, vector<64x1xf32>,
    %22 = arith.truncf %7 : vector<64x32xf32> to vector<64x32xbf16>
    %c0_16 = arith.constant 0 : index
    %c0_17 = arith.constant 0 : index
    %23 = vector.load %arg6[%c0_16, %c0_17] : memref<32x128xbf16, #tpu.memory_space<vmem>>, vector<32x128xbf16>
    %cst_18 = arith.constant dense<0.000000e+00> : vector<64x128xf32>
    %24 = tpu.matmul %22, %23, %cst_18 {dimension_numbers = #tpu.dot_dimension_numbers<[1], [0], [0], [1], [0, 0, 1, 1], [], []>} : vector<64x32xbf16>, vector<32x128xbf16>, vector<64x128xf32> -> vector<64x128xf32>
    %c0_19 = arith.constant 0 : index
    %c0_20 = arith.constant 0 : index
    %25 = vector.load %arg7[%c0_19, %c0_20] : memref<1x128xf32, #tpu.memory_space<vmem>>, vector<1x128xf32>
    %26 = vector.broadcast %25 : vector<1x128xf32> to vector<64x128xf32>
    %27 = arith.addf %24, %26 : vector<64x128xf32>
    %cst_21 = arith.constant 0.000000e+00 : f32
    %28 = vector.broadcast %cst_21 : f32 to vector<64x128xf32>
    %29 = arith.maximumf %27, %28 : vector<64x128xf32>
    %cst_22 = arith.constant dense<0.000000e+00> : vector<128xf32>
    %30 = vector.multi_reduction <add>, %29, %cst_22 [0] : vector<64x128xf32> to vector<128xf32>
    %31 = vector.shape_cast %30 : vector<128xf32> to vector<1x128xf32>
    %cst_23 = arith.constant 6.400000e+01 : f32
    %32 = vector.broadcast %cst_23 : f32 to vector<1x128xf32>
    %33 = arith.divf %31, %32 : vector<1x128xf32>
    %34 = arith.truncf %33 : vector<1x128xf32> to vector<1x128xbf16>
    %c0_24 = arith.constant 0 : index
    %c0_25 = arith.constant 0 : index
    %35 = vector.load %arg8[%c0_24, %c0_25] : memref<128x2xbf16, #tpu.memory_space<vmem>>, vector<128x2xbf16>
    %cst_26 = arith.constant dense<0.000000e+00> : vector<1x2xf32>
    %36 = tpu.matmul %34, %35, %cst_26 {dimension_numbers = #tpu.dot_dimension_numbers<[1], [0], [0], [1], [0, 0, 1, 1], [], []>} : vector<1x128xbf16>, vector<128x2xbf16>, vector<1x2xf32> -> vector<1x2xf32>
    %c0_27 = arith.constant 0 : index
    %c0_28 = arith.constant 0 : index
    %37 = vector.load %arg9[%c0_27, %c0_28] : memref<1x2xf32, #tpu.memory_space<vmem>>, vector<1x2xf32>
    %38 = arith.addf %36, %37 : vector<1x2xf32>
    %c0_29 = arith.constant 0 : index
    %c0_30 = arith.constant 0 : index
    %39 = vector.load %arg13[%c0_29, %c0_30] : memref<1x2xf32, #tpu.memory_space<vmem>>, vector<1x2xf32>
    tpu.vector_store %arg13[%c0_29, %c0_30], %38 {strides = array<i32>} : memref<1x2xf32, #tpu.memory_space<vmem>>, vector<1x2xf32>,
    %cst_31 = arith.constant dense<0xFF800000> : vector<1xf32>
    %40 = vector.multi_reduction <maximumf>, %38, %cst_31 [1] : vector<1x2xf32> to vector<1xf32>
    %41 = vector.shape_cast %40 : vector<1xf32> to vector<1x1xf32>
    %42 = vector.broadcast %41 : vector<1x1xf32> to vector<1x2xf32>
    %43 = arith.subf %38, %42 : vector<1x2xf32>
    %44 = math.exp %43 : vector<1x2xf32>
    %cst_32 = arith.constant dense<0.000000e+00> : vector<1xf32>
    %45 = vector.multi_reduction <add>, %44, %cst_32 [1] : vector<1x2xf32> to vector<1xf32>
    %46 = vector.shape_cast %45 : vector<1xf32> to vector<1x1xf32>
    %47 = vector.broadcast %46 : vector<1x1xf32> to vector<1x2xf32>
    %48 = arith.divf %44, %47 : vector<1x2xf32>
    %cst_33 = arith.constant 1.000000e-30 : f32
    %49 = vector.broadcast %cst_33 : f32 to vector<1x2xf32>
    %50 = arith.addf %48, %49 : vector<1x2xf32>
    %51 = math.log %50 : vector<1x2xf32>
    %cst_34 = arith.constant 2.000000e+00 : f32
    %52 = math.log %cst_34 : f32
    %53 = vector.broadcast %52 : f32 to vector<1x2xf32>
    %54 = arith.divf %51, %53 : vector<1x2xf32>
    %55 = arith.mulf %48, %54 : vector<1x2xf32>
    %cst_35 = arith.constant dense<0.000000e+00> : vector<1xf32>
    %56 = vector.multi_reduction <add>, %55, %cst_35 [1] : vector<1x2xf32> to vector<1xf32>
    %57 = vector.shape_cast %56 : vector<1xf32> to vector<1x1xf32>
    %cst_36 = arith.constant 0.000000e+00 : f32
    %58 = vector.broadcast %cst_36 : f32 to vector<1x1xf32>
    %59 = arith.subf %58, %57 : vector<1x1xf32>
    %60 = vector.broadcast %59 : vector<1x1xf32> to vector<1x128xf32>
    %61 = arith.mulf %33, %60 : vector<1x128xf32>
    %c0_37 = arith.constant 0 : index
    %c0_38 = arith.constant 0 : index
    %62 = vector.load %arg12[%c0_37, %c0_38] : memref<1x128xf32, #tpu.memory_space<vmem>>, vector<1x128xf32>
    tpu.vector_store %arg12[%c0_37, %c0_38], %61 {strides = array<i32>} : memref<1x128xf32, #tpu.memory_space<vmem>>, vector<1x128xf32>,
    return
  }
  func.func @transform_0(%arg0: i32) -> (i32, i32) {
    %c0_i32 = arith.constant 0 : i32
    %c0_i32_0 = arith.constant 0 : i32
    %c0_i32_1 = arith.constant 0 : i32
    return %c0_i32, %c0_i32_0 : i32, i32
  }
  func.func @transform_1(%arg0: i32) -> (i32, i32) {
    %c0_i32 = arith.constant 0 : i32
    %c0_i32_0 = arith.constant 0 : i32
    %c0_i32_1 = arith.constant 0 : i32
    return %c0_i32, %c0_i32_0 : i32, i32
  }
  func.func @transform_2(%arg0: i32) -> (i32, i32) {
    %c0_i32 = arith.constant 0 : i32
    %c0_i32_0 = arith.constant 0 : i32
    %c0_i32_1 = arith.constant 0 : i32
    return %c0_i32, %c0_i32_0 : i32, i32
  }
  func.func @transform_3(%arg0: i32) -> (i32, i32) {
    %c0_i32 = arith.constant 0 : i32
    %c0_i32_0 = arith.constant 0 : i32
    %c0_i32_1 = arith.constant 0 : i32
    return %c0_i32, %c0_i32_0 : i32, i32
  }
  func.func @transform_4(%arg0: i32) -> (i32, i32) {
    %c0_i32 = arith.constant 0 : i32
    %c0_i32_0 = arith.constant 0 : i32
    %c0_i32_1 = arith.constant 0 : i32
    return %c0_i32, %c0_i32_0 : i32, i32
  }
  func.func @transform_5(%arg0: i32) -> (i32, i32) {
    %c0_i32 = arith.constant 0 : i32
    %c0_i32_0 = arith.constant 0 : i32
    %c0_i32_1 = arith.constant 0 : i32
    return %c0_i32, %c0_i32_0 : i32, i32
  }
  func.func @transform_6(%arg0: i32) -> (i32, i32) {
    %c0_i32 = arith.constant 0 : i32
    %c0_i32_0 = arith.constant 0 : i32
    %c0_i32_1 = arith.constant 0 : i32
    return %c0_i32, %c0_i32_0 : i32, i32
  }
  func.func @transform_7(%arg0: i32) -> (i32, i32) {
    %c0_i32 = arith.constant 0 : i32
    %c0_i32_0 = arith.constant 0 : i32
    %c0_i32_1 = arith.constant 0 : i32
    return %c0_i32, %c0_i32_0 : i32, i32
  }
  func.func @transform_8(%arg0: i32) -> (i32, i32) {
    %c0_i32 = arith.constant 0 : i32
    %c0_i32_0 = arith.constant 0 : i32
    %c0_i32_1 = arith.constant 0 : i32
    return %c0_i32, %c0_i32_0 : i32, i32
  }
  func.func @transform_9(%arg0: i32) -> (i32, i32) {
    %c0_i32 = arith.constant 0 : i32
    %c0_i32_0 = arith.constant 0 : i32
    %c0_i32_1 = arith.constant 0 : i32
    return %c0_i32, %c0_i32_0 : i32, i32
  }
  func.func @transform_10(%arg0: i32) -> (i32, i32) {
    %c0_i32 = arith.constant 0 : i32
    %c0_i32_0 = arith.constant 0 : i32
    %c0_i32_1 = arith.constant 0 : i32
    return %c0_i32, %c0_i32_0 : i32, i32
  }
  func.func @transform_11(%arg0: i32) -> (i32, i32) {
    %c0_i32 = arith.constant 0 : i32
    %c0_i32_0 = arith.constant 0 : i32
    %c0_i32_1 = arith.constant 0 : i32
    return %c0_i32, %c0_i32_0 : i32, i32
  }
  func.func @transform_12(%arg0: i32) -> (i32, i32) {
    %c0_i32 = arith.constant 0 : i32
    %c0_i32_0 = arith.constant 0 : i32
    %c0_i32_1 = arith.constant 0 : i32
    return %c0_i32, %c0_i32_0 : i32, i32
  }
}

module attributes {stable_mosaic.version = 11 : i64} {
  func.func @_level23_kernel(%arg0: i32, %arg1: memref<16x288xbf16, #tpu.memory_space<vmem>>, %arg2: memref<288x64xbf16, #tpu.memory_space<vmem>>, %arg3: memref<1x64xf32, #tpu.memory_space<vmem>>, %arg4: memref<64x1xbf16, #tpu.memory_space<vmem>>, %arg5: memref<1x1xf32, #tpu.memory_space<vmem>>, %arg6: memref<64x128xbf16, #tpu.memory_space<vmem>>, %arg7: memref<1x128xf32, #tpu.memory_space<vmem>>, %arg8: memref<128x2xbf16, #tpu.memory_space<vmem>>, %arg9: memref<1x2xf32, #tpu.memory_space<vmem>>, %arg10: memref<16x64xbf16, #tpu.memory_space<vmem>>, %arg11: memref<16x1xf32, #tpu.memory_space<vmem>>, %arg12: memref<1x128xf32, #tpu.memory_space<vmem>>, %arg13: memref<1x2xf32, #tpu.memory_space<vmem>>) attributes {dimension_semantics = [#tpu.dimension_semantics<arbitrary>], iteration_bounds = array<i64: 1>, scalar_prefetch = 0 : i64, scratch_operands = 0 : i64, tpu.core_type = #tpu.core_type<tc>, window_params = [{pipeline_mode = #tpu.pipeline_mode<synchronous>, transform_indices = @transform_0, window_bounds = array<i64: 16, 288>}, {pipeline_mode = #tpu.pipeline_mode<synchronous>, transform_indices = @transform_1, window_bounds = array<i64: 288, 64>}, {pipeline_mode = #tpu.pipeline_mode<synchronous>, transform_indices = @transform_2, window_bounds = array<i64: 1, 64>}, {pipeline_mode = #tpu.pipeline_mode<synchronous>, transform_indices = @transform_3, window_bounds = array<i64: 64, 1>}, {pipeline_mode = #tpu.pipeline_mode<synchronous>, transform_indices = @transform_4, window_bounds = array<i64: 1, 1>}, {pipeline_mode = #tpu.pipeline_mode<synchronous>, transform_indices = @transform_5, window_bounds = array<i64: 64, 128>}, {pipeline_mode = #tpu.pipeline_mode<synchronous>, transform_indices = @transform_6, window_bounds = array<i64: 1, 128>}, {pipeline_mode = #tpu.pipeline_mode<synchronous>, transform_indices = @transform_7, window_bounds = array<i64: 128, 2>}, {pipeline_mode = #tpu.pipeline_mode<synchronous>, transform_indices = @transform_8, window_bounds = array<i64: 1, 2>}, {pipeline_mode = #tpu.pipeline_mode<synchronous>, transform_indices = @transform_9, window_bounds = array<i64: 16, 64>}, {pipeline_mode = #tpu.pipeline_mode<synchronous>, transform_indices = @transform_10, window_bounds = array<i64: 16, 1>}, {pipeline_mode = #tpu.pipeline_mode<synchronous>, transform_indices = @transform_11, window_bounds = array<i64: 1, 128>}, {pipeline_mode = #tpu.pipeline_mode<synchronous>, transform_indices = @transform_12, window_bounds = array<i64: 1, 2>}]} {
    %c0 = arith.constant 0 : index
    %c0_0 = arith.constant 0 : index
    %0 = vector.load %arg1[%c0, %c0_0] : memref<16x288xbf16, #tpu.memory_space<vmem>>, vector<16x288xbf16>
    %c0_1 = arith.constant 0 : index
    %c0_2 = arith.constant 0 : index
    %1 = vector.load %arg2[%c0_1, %c0_2] : memref<288x64xbf16, #tpu.memory_space<vmem>>, vector<288x64xbf16>
    %cst = arith.constant dense<0.000000e+00> : vector<16x64xf32>
    %2 = tpu.matmul %0, %1, %cst {dimension_numbers = #tpu.dot_dimension_numbers<[1], [0], [0], [1], [0, 0, 1, 1], [], []>} : vector<16x288xbf16>, vector<288x64xbf16>, vector<16x64xf32> -> vector<16x64xf32>
    %c0_3 = arith.constant 0 : index
    %c0_4 = arith.constant 0 : index
    %3 = vector.load %arg3[%c0_3, %c0_4] : memref<1x64xf32, #tpu.memory_space<vmem>>, vector<1x64xf32>
    %4 = vector.broadcast %3 : vector<1x64xf32> to vector<16x64xf32>
    %5 = arith.addf %2, %4 : vector<16x64xf32>
    %cst_5 = arith.constant 0.000000e+00 : f32
    %6 = vector.broadcast %cst_5 : f32 to vector<16x64xf32>
    %7 = arith.maximumf %5, %6 : vector<16x64xf32>
    %8 = arith.truncf %7 : vector<16x64xf32> to vector<16x64xbf16>
    %c0_6 = arith.constant 0 : index
    %c0_7 = arith.constant 0 : index
    %9 = vector.load %arg10[%c0_6, %c0_7] : memref<16x64xbf16, #tpu.memory_space<vmem>>, vector<16x64xbf16>
    tpu.vector_store %arg10[%c0_6, %c0_7], %8 {strides = array<i32>} : memref<16x64xbf16, #tpu.memory_space<vmem>>, vector<16x64xbf16>,
    %10 = arith.truncf %7 : vector<16x64xf32> to vector<16x64xbf16>
    %c0_8 = arith.constant 0 : index
    %c0_9 = arith.constant 0 : index
    %11 = vector.load %arg4[%c0_8, %c0_9] : memref<64x1xbf16, #tpu.memory_space<vmem>>, vector<64x1xbf16>
    %cst_10 = arith.constant dense<0.000000e+00> : vector<16x1xf32>
    %12 = tpu.matmul %10, %11, %cst_10 {dimension_numbers = #tpu.dot_dimension_numbers<[1], [0], [0], [1], [0, 0, 1, 1], [], []>} : vector<16x64xbf16>, vector<64x1xbf16>, vector<16x1xf32> -> vector<16x1xf32>
    %c0_11 = arith.constant 0 : index
    %c0_12 = arith.constant 0 : index
    %13 = vector.load %arg5[%c0_11, %c0_12] : memref<1x1xf32, #tpu.memory_space<vmem>>, vector<1x1xf32>
    %14 = vector.broadcast %13 : vector<1x1xf32> to vector<16x1xf32>
    %15 = arith.addf %12, %14 : vector<16x1xf32>
    %16 = arith.negf %15 : vector<16x1xf32>
    %17 = math.exp %16 : vector<16x1xf32>
    %cst_13 = arith.constant 1.000000e+00 : f32
    %18 = vector.broadcast %cst_13 : f32 to vector<16x1xf32>
    %19 = arith.addf %18, %17 : vector<16x1xf32>
    %20 = arith.divf %18, %19 : vector<16x1xf32>
    %c0_14 = arith.constant 0 : index
    %c0_15 = arith.constant 0 : index
    %21 = vector.load %arg11[%c0_14, %c0_15] : memref<16x1xf32, #tpu.memory_space<vmem>>, vector<16x1xf32>
    tpu.vector_store %arg11[%c0_14, %c0_15], %20 {strides = array<i32>} : memref<16x1xf32, #tpu.memory_space<vmem>>, vector<16x1xf32>,
    %22 = arith.truncf %7 : vector<16x64xf32> to vector<16x64xbf16>
    %c0_16 = arith.constant 0 : index
    %c0_17 = arith.constant 0 : index
    %23 = vector.load %arg6[%c0_16, %c0_17] : memref<64x128xbf16, #tpu.memory_space<vmem>>, vector<64x128xbf16>
    %cst_18 = arith.constant dense<0.000000e+00> : vector<16x128xf32>
    %24 = tpu.matmul %22, %23, %cst_18 {dimension_numbers = #tpu.dot_dimension_numbers<[1], [0], [0], [1], [0, 0, 1, 1], [], []>} : vector<16x64xbf16>, vector<64x128xbf16>, vector<16x128xf32> -> vector<16x128xf32>
    %c0_19 = arith.constant 0 : index
    %c0_20 = arith.constant 0 : index
    %25 = vector.load %arg7[%c0_19, %c0_20] : memref<1x128xf32, #tpu.memory_space<vmem>>, vector<1x128xf32>
    %26 = vector.broadcast %25 : vector<1x128xf32> to vector<16x128xf32>
    %27 = arith.addf %24, %26 : vector<16x128xf32>
    %cst_21 = arith.constant 0.000000e+00 : f32
    %28 = vector.broadcast %cst_21 : f32 to vector<16x128xf32>
    %29 = arith.maximumf %27, %28 : vector<16x128xf32>
    %cst_22 = arith.constant dense<0.000000e+00> : vector<128xf32>
    %30 = vector.multi_reduction <add>, %29, %cst_22 [0] : vector<16x128xf32> to vector<128xf32>
    %31 = vector.shape_cast %30 : vector<128xf32> to vector<1x128xf32>
    %cst_23 = arith.constant 1.600000e+01 : f32
    %32 = vector.broadcast %cst_23 : f32 to vector<1x128xf32>
    %33 = arith.divf %31, %32 : vector<1x128xf32>
    %34 = arith.truncf %33 : vector<1x128xf32> to vector<1x128xbf16>
    %c0_24 = arith.constant 0 : index
    %c0_25 = arith.constant 0 : index
    %35 = vector.load %arg8[%c0_24, %c0_25] : memref<128x2xbf16, #tpu.memory_space<vmem>>, vector<128x2xbf16>
    %cst_26 = arith.constant dense<0.000000e+00> : vector<1x2xf32>
    %36 = tpu.matmul %34, %35, %cst_26 {dimension_numbers = #tpu.dot_dimension_numbers<[1], [0], [0], [1], [0, 0, 1, 1], [], []>} : vector<1x128xbf16>, vector<128x2xbf16>, vector<1x2xf32> -> vector<1x2xf32>
    %c0_27 = arith.constant 0 : index
    %c0_28 = arith.constant 0 : index
    %37 = vector.load %arg9[%c0_27, %c0_28] : memref<1x2xf32, #tpu.memory_space<vmem>>, vector<1x2xf32>
    %38 = arith.addf %36, %37 : vector<1x2xf32>
    %c0_29 = arith.constant 0 : index
    %c0_30 = arith.constant 0 : index
    %39 = vector.load %arg13[%c0_29, %c0_30] : memref<1x2xf32, #tpu.memory_space<vmem>>, vector<1x2xf32>
    tpu.vector_store %arg13[%c0_29, %c0_30], %38 {strides = array<i32>} : memref<1x2xf32, #tpu.memory_space<vmem>>, vector<1x2xf32>,
    %cst_31 = arith.constant dense<0xFF800000> : vector<1xf32>
    %40 = vector.multi_reduction <maximumf>, %38, %cst_31 [1] : vector<1x2xf32> to vector<1xf32>
    %41 = vector.shape_cast %40 : vector<1xf32> to vector<1x1xf32>
    %42 = vector.broadcast %41 : vector<1x1xf32> to vector<1x2xf32>
    %43 = arith.subf %38, %42 : vector<1x2xf32>
    %44 = math.exp %43 : vector<1x2xf32>
    %cst_32 = arith.constant dense<0.000000e+00> : vector<1xf32>
    %45 = vector.multi_reduction <add>, %44, %cst_32 [1] : vector<1x2xf32> to vector<1xf32>
    %46 = vector.shape_cast %45 : vector<1xf32> to vector<1x1xf32>
    %47 = vector.broadcast %46 : vector<1x1xf32> to vector<1x2xf32>
    %48 = arith.divf %44, %47 : vector<1x2xf32>
    %cst_33 = arith.constant 1.000000e-30 : f32
    %49 = vector.broadcast %cst_33 : f32 to vector<1x2xf32>
    %50 = arith.addf %48, %49 : vector<1x2xf32>
    %51 = math.log %50 : vector<1x2xf32>
    %cst_34 = arith.constant 2.000000e+00 : f32
    %52 = math.log %cst_34 : f32
    %53 = vector.broadcast %52 : f32 to vector<1x2xf32>
    %54 = arith.divf %51, %53 : vector<1x2xf32>
    %55 = arith.mulf %48, %54 : vector<1x2xf32>
    %cst_35 = arith.constant dense<0.000000e+00> : vector<1xf32>
    %56 = vector.multi_reduction <add>, %55, %cst_35 [1] : vector<1x2xf32> to vector<1xf32>
    %57 = vector.shape_cast %56 : vector<1xf32> to vector<1x1xf32>
    %cst_36 = arith.constant 0.000000e+00 : f32
    %58 = vector.broadcast %cst_36 : f32 to vector<1x1xf32>
    %59 = arith.subf %58, %57 : vector<1x1xf32>
    %60 = vector.broadcast %59 : vector<1x1xf32> to vector<1x128xf32>
    %61 = arith.mulf %33, %60 : vector<1x128xf32>
    %c0_37 = arith.constant 0 : index
    %c0_38 = arith.constant 0 : index
    %62 = vector.load %arg12[%c0_37, %c0_38] : memref<1x128xf32, #tpu.memory_space<vmem>>, vector<1x128xf32>
    tpu.vector_store %arg12[%c0_37, %c0_38], %61 {strides = array<i32>} : memref<1x128xf32, #tpu.memory_space<vmem>>, vector<1x128xf32>,
    return
  }
  func.func @transform_0(%arg0: i32) -> (i32, i32) {
    %c0_i32 = arith.constant 0 : i32
    %c0_i32_0 = arith.constant 0 : i32
    %c0_i32_1 = arith.constant 0 : i32
    return %c0_i32, %c0_i32_0 : i32, i32
  }
  func.func @transform_1(%arg0: i32) -> (i32, i32) {
    %c0_i32 = arith.constant 0 : i32
    %c0_i32_0 = arith.constant 0 : i32
    %c0_i32_1 = arith.constant 0 : i32
    return %c0_i32, %c0_i32_0 : i32, i32
  }
  func.func @transform_2(%arg0: i32) -> (i32, i32) {
    %c0_i32 = arith.constant 0 : i32
    %c0_i32_0 = arith.constant 0 : i32
    %c0_i32_1 = arith.constant 0 : i32
    return %c0_i32, %c0_i32_0 : i32, i32
  }
  func.func @transform_3(%arg0: i32) -> (i32, i32) {
    %c0_i32 = arith.constant 0 : i32
    %c0_i32_0 = arith.constant 0 : i32
    %c0_i32_1 = arith.constant 0 : i32
    return %c0_i32, %c0_i32_0 : i32, i32
  }
  func.func @transform_4(%arg0: i32) -> (i32, i32) {
    %c0_i32 = arith.constant 0 : i32
    %c0_i32_0 = arith.constant 0 : i32
    %c0_i32_1 = arith.constant 0 : i32
    return %c0_i32, %c0_i32_0 : i32, i32
  }
  func.func @transform_5(%arg0: i32) -> (i32, i32) {
    %c0_i32 = arith.constant 0 : i32
    %c0_i32_0 = arith.constant 0 : i32
    %c0_i32_1 = arith.constant 0 : i32
    return %c0_i32, %c0_i32_0 : i32, i32
  }
  func.func @transform_6(%arg0: i32) -> (i32, i32) {
    %c0_i32 = arith.constant 0 : i32
    %c0_i32_0 = arith.constant 0 : i32
    %c0_i32_1 = arith.constant 0 : i32
    return %c0_i32, %c0_i32_0 : i32, i32
  }
  func.func @transform_7(%arg0: i32) -> (i32, i32) {
    %c0_i32 = arith.constant 0 : i32
    %c0_i32_0 = arith.constant 0 : i32
    %c0_i32_1 = arith.constant 0 : i32
    return %c0_i32, %c0_i32_0 : i32, i32
  }
  func.func @transform_8(%arg0: i32) -> (i32, i32) {
    %c0_i32 = arith.constant 0 : i32
    %c0_i32_0 = arith.constant 0 : i32
    %c0_i32_1 = arith.constant 0 : i32
    return %c0_i32, %c0_i32_0 : i32, i32
  }
  func.func @transform_9(%arg0: i32) -> (i32, i32) {
    %c0_i32 = arith.constant 0 : i32
    %c0_i32_0 = arith.constant 0 : i32
    %c0_i32_1 = arith.constant 0 : i32
    return %c0_i32, %c0_i32_0 : i32, i32
  }
  func.func @transform_10(%arg0: i32) -> (i32, i32) {
    %c0_i32 = arith.constant 0 : i32
    %c0_i32_0 = arith.constant 0 : i32
    %c0_i32_1 = arith.constant 0 : i32
    return %c0_i32, %c0_i32_0 : i32, i32
  }
  func.func @transform_11(%arg0: i32) -> (i32, i32) {
    %c0_i32 = arith.constant 0 : i32
    %c0_i32_0 = arith.constant 0 : i32
    %c0_i32_1 = arith.constant 0 : i32
    return %c0_i32, %c0_i32_0 : i32, i32
  }
  func.func @transform_12(%arg0: i32) -> (i32, i32) {
    %c0_i32 = arith.constant 0 : i32
    %c0_i32_0 = arith.constant 0 : i32
    %c0_i32_1 = arith.constant 0 : i32
    return %c0_i32, %c0_i32_0 : i32, i32
  }
}

module attributes {stable_mosaic.version = 11 : i64} {
  func.func @_rpn_kernel(%arg0: i32, %arg1: memref<16x576xbf16, #tpu.memory_space<vmem>>, %arg2: memref<576x64xbf16, #tpu.memory_space<vmem>>, %arg3: memref<1x64xf32, #tpu.memory_space<vmem>>, %arg4: memref<64x18xbf16, #tpu.memory_space<vmem>>, %arg5: memref<1x18xf32, #tpu.memory_space<vmem>>, %arg6: memref<16x18xf32, #tpu.memory_space<vmem>>) attributes {dimension_semantics = [#tpu.dimension_semantics<arbitrary>], iteration_bounds = array<i64: 1>, scalar_prefetch = 0 : i64, scratch_operands = 0 : i64, tpu.core_type = #tpu.core_type<tc>, window_params = [{pipeline_mode = #tpu.pipeline_mode<synchronous>, transform_indices = @transform_0, window_bounds = array<i64: 16, 576>}, {pipeline_mode = #tpu.pipeline_mode<synchronous>, transform_indices = @transform_1, window_bounds = array<i64: 576, 64>}, {pipeline_mode = #tpu.pipeline_mode<synchronous>, transform_indices = @transform_2, window_bounds = array<i64: 1, 64>}, {pipeline_mode = #tpu.pipeline_mode<synchronous>, transform_indices = @transform_3, window_bounds = array<i64: 64, 18>}, {pipeline_mode = #tpu.pipeline_mode<synchronous>, transform_indices = @transform_4, window_bounds = array<i64: 1, 18>}, {pipeline_mode = #tpu.pipeline_mode<synchronous>, transform_indices = @transform_5, window_bounds = array<i64: 16, 18>}]} {
    %c0 = arith.constant 0 : index
    %c0_0 = arith.constant 0 : index
    %0 = vector.load %arg1[%c0, %c0_0] : memref<16x576xbf16, #tpu.memory_space<vmem>>, vector<16x576xbf16>
    %c0_1 = arith.constant 0 : index
    %c0_2 = arith.constant 0 : index
    %1 = vector.load %arg2[%c0_1, %c0_2] : memref<576x64xbf16, #tpu.memory_space<vmem>>, vector<576x64xbf16>
    %cst = arith.constant dense<0.000000e+00> : vector<16x64xf32>
    %2 = tpu.matmul %0, %1, %cst {dimension_numbers = #tpu.dot_dimension_numbers<[1], [0], [0], [1], [0, 0, 1, 1], [], []>} : vector<16x576xbf16>, vector<576x64xbf16>, vector<16x64xf32> -> vector<16x64xf32>
    %c0_3 = arith.constant 0 : index
    %c0_4 = arith.constant 0 : index
    %3 = vector.load %arg3[%c0_3, %c0_4] : memref<1x64xf32, #tpu.memory_space<vmem>>, vector<1x64xf32>
    %4 = vector.broadcast %3 : vector<1x64xf32> to vector<16x64xf32>
    %5 = arith.addf %2, %4 : vector<16x64xf32>
    %cst_5 = arith.constant 0.000000e+00 : f32
    %6 = vector.broadcast %cst_5 : f32 to vector<16x64xf32>
    %7 = arith.maximumf %5, %6 : vector<16x64xf32>
    %8 = arith.truncf %7 : vector<16x64xf32> to vector<16x64xbf16>
    %c0_6 = arith.constant 0 : index
    %c0_7 = arith.constant 0 : index
    %9 = vector.load %arg4[%c0_6, %c0_7] : memref<64x18xbf16, #tpu.memory_space<vmem>>, vector<64x18xbf16>
    %cst_8 = arith.constant dense<0.000000e+00> : vector<16x18xf32>
    %10 = tpu.matmul %8, %9, %cst_8 {dimension_numbers = #tpu.dot_dimension_numbers<[1], [0], [0], [1], [0, 0, 1, 1], [], []>} : vector<16x64xbf16>, vector<64x18xbf16>, vector<16x18xf32> -> vector<16x18xf32>
    %c0_9 = arith.constant 0 : index
    %c0_10 = arith.constant 0 : index
    %11 = vector.load %arg5[%c0_9, %c0_10] : memref<1x18xf32, #tpu.memory_space<vmem>>, vector<1x18xf32>
    %12 = vector.broadcast %11 : vector<1x18xf32> to vector<16x18xf32>
    %13 = arith.addf %10, %12 : vector<16x18xf32>
    %c0_11 = arith.constant 0 : index
    %c0_12 = arith.constant 0 : index
    %14 = vector.load %arg6[%c0_11, %c0_12] : memref<16x18xf32, #tpu.memory_space<vmem>>, vector<16x18xf32>
    tpu.vector_store %arg6[%c0_11, %c0_12], %13 {strides = array<i32>} : memref<16x18xf32, #tpu.memory_space<vmem>>, vector<16x18xf32>,
    return
  }
  func.func @transform_0(%arg0: i32) -> (i32, i32) {
    %c0_i32 = arith.constant 0 : i32
    %c0_i32_0 = arith.constant 0 : i32
    %c0_i32_1 = arith.constant 0 : i32
    return %c0_i32, %c0_i32_0 : i32, i32
  }
  func.func @transform_1(%arg0: i32) -> (i32, i32) {
    %c0_i32 = arith.constant 0 : i32
    %c0_i32_0 = arith.constant 0 : i32
    %c0_i32_1 = arith.constant 0 : i32
    return %c0_i32, %c0_i32_0 : i32, i32
  }
  func.func @transform_2(%arg0: i32) -> (i32, i32) {
    %c0_i32 = arith.constant 0 : i32
    %c0_i32_0 = arith.constant 0 : i32
    %c0_i32_1 = arith.constant 0 : i32
    return %c0_i32, %c0_i32_0 : i32, i32
  }
  func.func @transform_3(%arg0: i32) -> (i32, i32) {
    %c0_i32 = arith.constant 0 : i32
    %c0_i32_0 = arith.constant 0 : i32
    %c0_i32_1 = arith.constant 0 : i32
    return %c0_i32, %c0_i32_0 : i32, i32
  }
  func.func @transform_4(%arg0: i32) -> (i32, i32) {
    %c0_i32 = arith.constant 0 : i32
    %c0_i32_0 = arith.constant 0 : i32
    %c0_i32_1 = arith.constant 0 : i32
    return %c0_i32, %c0_i32_0 : i32, i32
  }
  func.func @transform_5(%arg0: i32) -> (i32, i32) {
    %c0_i32 = arith.constant 0 : i32
    %c0_i32_0 = arith.constant 0 : i32
    %c0_i32_1 = arith.constant 0 : i32
    return %c0_i32, %c0_i32_0 : i32, i32
  }
}

module attributes {stable_mosaic.version = 11 : i64} {
  func.func @_roi_head_kernel(%arg0: i32, %arg1: memref<8x1024xbf16, #tpu.memory_space<vmem>>, %arg2: memref<1024x256xbf16, #tpu.memory_space<vmem>>, %arg3: memref<1x256xf32, #tpu.memory_space<vmem>>, %arg4: memref<1x384xbf16, #tpu.memory_space<vmem>>, %arg5: memref<384x128xbf16, #tpu.memory_space<vmem>>, %arg6: memref<256x128xbf16, #tpu.memory_space<vmem>>, %arg7: memref<1x128xf32, #tpu.memory_space<vmem>>, %arg8: memref<8x128xf32, #tpu.memory_space<vmem>>, %arg9: memref<8x128xf32, #tpu.memory_space<vmem>>) attributes {dimension_semantics = [#tpu.dimension_semantics<arbitrary>], iteration_bounds = array<i64: 1>, scalar_prefetch = 0 : i64, scratch_operands = 0 : i64, tpu.core_type = #tpu.core_type<tc>, window_params = [{pipeline_mode = #tpu.pipeline_mode<synchronous>, transform_indices = @transform_0, window_bounds = array<i64: 8, 1024>}, {pipeline_mode = #tpu.pipeline_mode<synchronous>, transform_indices = @transform_1, window_bounds = array<i64: 1024, 256>}, {pipeline_mode = #tpu.pipeline_mode<synchronous>, transform_indices = @transform_2, window_bounds = array<i64: 1, 256>}, {pipeline_mode = #tpu.pipeline_mode<synchronous>, transform_indices = @transform_3, window_bounds = array<i64: 1, 384>}, {pipeline_mode = #tpu.pipeline_mode<synchronous>, transform_indices = @transform_4, window_bounds = array<i64: 384, 128>}, {pipeline_mode = #tpu.pipeline_mode<synchronous>, transform_indices = @transform_5, window_bounds = array<i64: 256, 128>}, {pipeline_mode = #tpu.pipeline_mode<synchronous>, transform_indices = @transform_6, window_bounds = array<i64: 1, 128>}, {pipeline_mode = #tpu.pipeline_mode<synchronous>, transform_indices = @transform_7, window_bounds = array<i64: 8, 128>}, {pipeline_mode = #tpu.pipeline_mode<synchronous>, transform_indices = @transform_8, window_bounds = array<i64: 8, 128>}]} {
    %c0 = arith.constant 0 : index
    %c0_0 = arith.constant 0 : index
    %0 = vector.load %arg1[%c0, %c0_0] : memref<8x1024xbf16, #tpu.memory_space<vmem>>, vector<8x1024xbf16>
    %c0_1 = arith.constant 0 : index
    %c0_2 = arith.constant 0 : index
    %1 = vector.load %arg2[%c0_1, %c0_2] : memref<1024x256xbf16, #tpu.memory_space<vmem>>, vector<1024x256xbf16>
    %cst = arith.constant dense<0.000000e+00> : vector<8x256xf32>
    %2 = tpu.matmul %0, %1, %cst {dimension_numbers = #tpu.dot_dimension_numbers<[1], [0], [0], [1], [0, 0, 1, 1], [], []>} : vector<8x1024xbf16>, vector<1024x256xbf16>, vector<8x256xf32> -> vector<8x256xf32>
    %c0_3 = arith.constant 0 : index
    %c0_4 = arith.constant 0 : index
    %3 = vector.load %arg3[%c0_3, %c0_4] : memref<1x256xf32, #tpu.memory_space<vmem>>, vector<1x256xf32>
    %4 = vector.broadcast %3 : vector<1x256xf32> to vector<8x256xf32>
    %5 = arith.addf %2, %4 : vector<8x256xf32>
    %cst_5 = arith.constant 0.000000e+00 : f32
    %6 = vector.broadcast %cst_5 : f32 to vector<8x256xf32>
    %7 = arith.maximumf %5, %6 : vector<8x256xf32>
    %c0_6 = arith.constant 0 : index
    %c0_7 = arith.constant 0 : index
    %8 = vector.load %arg4[%c0_6, %c0_7] : memref<1x384xbf16, #tpu.memory_space<vmem>>, vector<1x384xbf16>
    %c0_8 = arith.constant 0 : index
    %c0_9 = arith.constant 0 : index
    %9 = vector.load %arg5[%c0_8, %c0_9] : memref<384x128xbf16, #tpu.memory_space<vmem>>, vector<384x128xbf16>
    %cst_10 = arith.constant dense<0.000000e+00> : vector<1x128xf32>
    %10 = tpu.matmul %8, %9, %cst_10 {dimension_numbers = #tpu.dot_dimension_numbers<[1], [0], [0], [1], [0, 0, 1, 1], [], []>} : vector<1x384xbf16>, vector<384x128xbf16>, vector<1x128xf32> -> vector<1x128xf32>
    %11 = arith.truncf %7 : vector<8x256xf32> to vector<8x256xbf16>
    %c0_11 = arith.constant 0 : index
    %c0_12 = arith.constant 0 : index
    %12 = vector.load %arg6[%c0_11, %c0_12] : memref<256x128xbf16, #tpu.memory_space<vmem>>, vector<256x128xbf16>
    %cst_13 = arith.constant dense<0.000000e+00> : vector<8x128xf32>
    %13 = tpu.matmul %11, %12, %cst_13 {dimension_numbers = #tpu.dot_dimension_numbers<[1], [0], [0], [1], [0, 0, 1, 1], [], []>} : vector<8x256xbf16>, vector<256x128xbf16>, vector<8x128xf32> -> vector<8x128xf32>
    %14 = vector.broadcast %10 : vector<1x128xf32> to vector<8x128xf32>
    %15 = arith.addf %13, %14 : vector<8x128xf32>
    %c0_14 = arith.constant 0 : index
    %c0_15 = arith.constant 0 : index
    %16 = vector.load %arg7[%c0_14, %c0_15] : memref<1x128xf32, #tpu.memory_space<vmem>>, vector<1x128xf32>
    %17 = vector.broadcast %16 : vector<1x128xf32> to vector<8x128xf32>
    %18 = arith.addf %15, %17 : vector<8x128xf32>
    %c0_16 = arith.constant 0 : index
    %c0_17 = arith.constant 0 : index
    %19 = vector.load %arg8[%c0_16, %c0_17] : memref<8x128xf32, #tpu.memory_space<vmem>>, vector<8x128xf32>
    tpu.vector_store %arg8[%c0_16, %c0_17], %18 {strides = array<i32>} : memref<8x128xf32, #tpu.memory_space<vmem>>, vector<8x128xf32>,
    %20 = tpu.iota {dimensions = array<i32: 1>} : vector<8x128xi32>
    %c2_i32 = arith.constant 2 : i32
    %21 = vector.broadcast %c2_i32 : i32 to vector<8x128xi32>
    %22 = arith.cmpi sge, %20, %21 : vector<8x128xi32>
    %c7_i32 = arith.constant 7 : i32
    %23 = vector.broadcast %c7_i32 : i32 to vector<8x128xi32>
    %24 = arith.cmpi slt, %20, %23 : vector<8x128xi32>
    %25 = arith.andi %22, %24 : vector<8x128xi1>
    %cst_18 = arith.constant -1.000000e+30 : f32
    %26 = vector.broadcast %cst_18 : f32 to vector<8x128xf32>
    %27 = arith.select %25, %18, %26 : vector<8x128xi1>, vector<8x128xf32>
    %cst_19 = arith.constant dense<0xFF800000> : vector<8xf32>
    %28 = vector.multi_reduction <maximumf>, %27, %cst_19 [1] : vector<8x128xf32> to vector<8xf32>
    %29 = vector.shape_cast %28 : vector<8xf32> to vector<8x1xf32>
    %30 = vector.broadcast %29 : vector<8x1xf32> to vector<8x128xf32>
    %31 = arith.subf %27, %30 : vector<8x128xf32>
    %32 = math.exp %31 : vector<8x128xf32>
    %cst_20 = arith.constant 0.000000e+00 : f32
    %33 = vector.broadcast %cst_20 : f32 to vector<8x128xf32>
    %34 = arith.select %25, %32, %33 : vector<8x128xi1>, vector<8x128xf32>
    %cst_21 = arith.constant dense<0.000000e+00> : vector<8xf32>
    %35 = vector.multi_reduction <add>, %34, %cst_21 [1] : vector<8x128xf32> to vector<8xf32>
    %36 = vector.shape_cast %35 : vector<8xf32> to vector<8x1xf32>
    %37 = vector.broadcast %36 : vector<8x1xf32> to vector<8x128xf32>
    %38 = arith.divf %34, %37 : vector<8x128xf32>
    %c0_22 = arith.constant 0 : index
    %c0_23 = arith.constant 0 : index
    %39 = vector.load %arg9[%c0_22, %c0_23] : memref<8x128xf32, #tpu.memory_space<vmem>>, vector<8x128xf32>
    tpu.vector_store %arg9[%c0_22, %c0_23], %38 {strides = array<i32>} : memref<8x128xf32, #tpu.memory_space<vmem>>, vector<8x128xf32>,
    return
  }
  func.func @transform_0(%arg0: i32) -> (i32, i32) {
    %c0_i32 = arith.constant 0 : i32
    %c0_i32_0 = arith.constant 0 : i32
    %c0_i32_1 = arith.constant 0 : i32
    return %c0_i32, %c0_i32_0 : i32, i32
  }
  func.func @transform_1(%arg0: i32) -> (i32, i32) {
    %c0_i32 = arith.constant 0 : i32
    %c0_i32_0 = arith.constant 0 : i32
    %c0_i32_1 = arith.constant 0 : i32
    return %c0_i32, %c0_i32_0 : i32, i32
  }
  func.func @transform_2(%arg0: i32) -> (i32, i32) {
    %c0_i32 = arith.constant 0 : i32
    %c0_i32_0 = arith.constant 0 : i32
    %c0_i32_1 = arith.constant 0 : i32
    return %c0_i32, %c0_i32_0 : i32, i32
  }
  func.func @transform_3(%arg0: i32) -> (i32, i32) {
    %c0_i32 = arith.constant 0 : i32
    %c0_i32_0 = arith.constant 0 : i32
    %c0_i32_1 = arith.constant 0 : i32
    return %c0_i32, %c0_i32_0 : i32, i32
  }
  func.func @transform_4(%arg0: i32) -> (i32, i32) {
    %c0_i32 = arith.constant 0 : i32
    %c0_i32_0 = arith.constant 0 : i32
    %c0_i32_1 = arith.constant 0 : i32
    return %c0_i32, %c0_i32_0 : i32, i32
  }
  func.func @transform_5(%arg0: i32) -> (i32, i32) {
    %c0_i32 = arith.constant 0 : i32
    %c0_i32_0 = arith.constant 0 : i32
    %c0_i32_1 = arith.constant 0 : i32
    return %c0_i32, %c0_i32_0 : i32, i32
  }
  func.func @transform_6(%arg0: i32) -> (i32, i32) {
    %c0_i32 = arith.constant 0 : i32
    %c0_i32_0 = arith.constant 0 : i32
    %c0_i32_1 = arith.constant 0 : i32
    return %c0_i32, %c0_i32_0 : i32, i32
  }
  func.func @transform_7(%arg0: i32) -> (i32, i32) {
    %c0_i32 = arith.constant 0 : i32
    %c0_i32_0 = arith.constant 0 : i32
    %c0_i32_1 = arith.constant 0 : i32
    return %c0_i32, %c0_i32_0 : i32, i32
  }
  func.func @transform_8(%arg0: i32) -> (i32, i32) {
    %c0_i32 = arith.constant 0 : i32
    %c0_i32_0 = arith.constant 0 : i32
    %c0_i32_1 = arith.constant 0 : i32
    return %c0_i32, %c0_i32_0 : i32, i32
  }
}

</mosaic_0001>

<llo_original>
// kernel: faster_rcnn_meaa_forward.5
$region0: #{faster_rcnn_meaa_forward.5}
  #allocation0 [shape = 'u32[]', space=smem, size = 0x4, offset = 0x4, fixed_abs, tag = 'smem constant byte address 0x4 - core index']
  #allocation1 [shape = 'u32[144,128]{1,0:T(1,128)}', space=vmem, size = 0x12000, scoped, tag = 'internal scratch']
  #allocation2 [shape = 'f32[1,1]{1,0:T(1,128)S(1)}', space=vmem, size = 0x200, scoped, tag = 'scoped memory for faster_rcnn_meaa_forward.5']
  %s0 = inlined_call_operand.vmem [shape: bf16[256,27], index: 0, kind: input, shape index: {}]
  %s1 = inlined_call_operand.vmem [shape: bf16[27,16], index: 1, kind: input, shape index: {}]
  %s2 = inlined_call_operand.vmem [shape: f32[1,16], index: 2, kind: input, shape index: {}]
  %s3 = inlined_call_operand.vmem [shape: bf16[16,1], index: 3, kind: input, shape index: {}]
  %s4 = inlined_call_operand.<no memory space> [shape: f32[1,1], index: 4, kind: input, shape index: {}]
  %s5 = inlined_call_operand.vmem [shape: bf16[16,128], index: 5, kind: input, shape index: {}]
  %s6 = inlined_call_operand.vmem [shape: f32[1,128], index: 6, kind: input, shape index: {}]
  %s7 = inlined_call_operand.vmem [shape: bf16[256,16], index: 7, kind: output, shape index: {0}]
  %s8 = inlined_call_operand.vmem [shape: f32[256,1], index: 8, kind: output, shape index: {1}]
  %s9 = inlined_call_operand.vmem [shape: f32[1,128], index: 9, kind: output, shape index: {2}]
  %s10 = inlined_call_operand.hbm [shape: f32[1,128], index: 10, kind: output, shape index: {3}]
  %11 = xla_tuple %s7, %s8, %s9, %s10
  %s12 = sld [smem:[#allocation0]]
  $region62: #{faster_rcnn_meaa_forward.5} parent=0
    _
  %s14 = ssub.s32 1, %s12
  %s15 = scalar_select 0, %s14, %s12
  %v16 = vstv %s4
  %17 = vst [vmem:[#allocation2] sm:$0x1] %v16
  $region1: #{faster_rcnn_meaa_forward.5} parent=0
    #allocation3 [shape = 'u8[512]{0}', space=vmem, size = 0x400, scoped, tag = 'output window, operand 3, single buffered']
    #allocation4 [shape = 's32[1]{0}', space=sflag, size = 0x4, scoped, tag = 'scoped memory for faster_rcnn_meaa_forward.5']
    %18 = vsyncpa [#allocation4], 0
    // Predicated region
    $region2: #{faster_rcnn_meaa_forward.5} parent=1 // pred_check
      _
    $region3: #{faster_rcnn_meaa_forward.5} parent=1 // pred_check_branch
      %20 = sbr.rel (0) target = $region5
    $region4: #{faster_rcnn_meaa_forward.5} parent=1 // pred_region
      _
    $region5: #{faster_rcnn_meaa_forward.5} parent=1 // pred_fallthru
      _
    // Predicated region
    $region6: #{faster_rcnn_meaa_forward.5} parent=1 // pred_check
      _
    $region7: #{faster_rcnn_meaa_forward.5} parent=1 // pred_check_branch
      %22 = sbr.rel (0) target = $region9
    $region8: #{faster_rcnn_meaa_forward.5} parent=1 // pred_region
      _
    $region9: #{faster_rcnn_meaa_forward.5} parent=1 // pred_fallthru
      _
    // Predicated region
    $region10: #{faster_rcnn_meaa_forward.5} parent=1 // pred_check
      _
    $region11: #{faster_rcnn_meaa_forward.5} parent=1 // pred_check_branch
      %24 = sbr.rel (0) target = $region13
    $region12: #{faster_rcnn_meaa_forward.5} parent=1 // pred_region
      _
    $region13: #{faster_rcnn_meaa_forward.5} parent=1 // pred_fallthru
      _
    // Predicated region
    $region14: #{faster_rcnn_meaa_forward.5} parent=1 // pred_check
      _
    $region15: #{faster_rcnn_meaa_forward.5} parent=1 // pred_check_branch
      %26 = sbr.rel (0) target = $region17
    $region16: #{faster_rcnn_meaa_forward.5} parent=1 // pred_region
      _
    $region17: #{faster_rcnn_meaa_forward.5} parent=1 // pred_fallthru
      _
    // Predicated region
    $region18: #{faster_rcnn_meaa_forward.5} parent=1 // pred_check
      _
    $region19: #{faster_rcnn_meaa_forward.5} parent=1 // pred_check_branch
      %28 = sbr.rel (0) target = $region21
    $region20: #{faster_rcnn_meaa_forward.5} parent=1 // pred_region
      _
    $region21: #{faster_rcnn_meaa_forward.5} parent=1 // pred_fallthru
      _
    // Predicated region
    $region22: #{faster_rcnn_meaa_forward.5} parent=1 // pred_check
      _
    $region23: #{faster_rcnn_meaa_forward.5} parent=1 // pred_check_branch
      %30 = sbr.rel (0) target = $region25
    $region24: #{faster_rcnn_meaa_forward.5} parent=1 // pred_region
      _
    $region25: #{faster_rcnn_meaa_forward.5} parent=1 // pred_fallthru
      _
    // Predicated region
    $region26: #{faster_rcnn_meaa_forward.5} parent=1 // pred_check
      _
    $region27: #{faster_rcnn_meaa_forward.5} parent=1 // pred_check_branch
      %32 = sbr.rel (0) target = $region29
    $region28: #{faster_rcnn_meaa_forward.5} parent=1 // pred_region
      _
    $region29: #{faster_rcnn_meaa_forward.5} parent=1 // pred_fallthru
      _
    %v34 = vld [vmem:[%s0] sm:$0xf]
    %v35 = vld [vmem:[%s0 + $0x4] sm:$0xf]
    %v36 = vld [vmem:[%s0 + $0x8] sm:$0xf]
    %v37 = vld [vmem:[%s0 + $0xc] sm:$0xf]
    %v38 = vld [vmem:[%s0 + $0x10] sm:$0xf]
    %v39 = vld [vmem:[%s0 + $0x14] sm:$0xf]
    %v40 = vld [vmem:[%s0 + $0x18] sm:$0xf]
    %v41 = vld [vmem:[%s0 + $0x1c] sm:$0xf]
    %v42 = vld [vmem:[%s0 + $0x20] sm:$0xf]
    %v43 = vld [vmem:[%s0 + $0x24] sm:$0xf]
    %v44 = vld [vmem:[%s0 + $0x28] sm:$0xf]
    %v45 = vld [vmem:[%s0 + $0x2c] sm:$0xf]
    %v46 = vld [vmem:[%s0 + $0x30] sm:$0xf]
    %v47 = vld [vmem:[%s0 + $0x34] sm:$0xf]
    %v48 = vld [vmem:[%s0 + $0x38] sm:$0xf]
    %v49 = vld [vmem:[%s0 + $0x3c] sm:$0xf]
    %v50 = vld [vmem:[%s0 + $0x40] sm:$0xf]
    %v51 = vld [vmem:[%s0 + $0x44] sm:$0xf]
    %v52 = vld [vmem:[%s0 + $0x48] sm:$0xf]
    %v53 = vld [vmem:[%s0 + $0x4c] sm:$0xf]
    %v54 = vld [vmem:[%s0 + $0x50] sm:$0xf]
    %v55 = vld [vmem:[%s0 + $0x54] sm:$0xf]
    %v56 = vld [vmem:[%s0 + $0x58] sm:$0xf]
    %v57 = vld [vmem:[%s0 + $0x5c] sm:$0xf]
    %v58 = vld [vmem:[%s0 + $0x60] sm:$0xf]
    %v59 = vld [vmem:[%s0 + $0x64] sm:$0xf]
    %v60 = vld [vmem:[%s0 + $0x68] sm:$0xf]
    %v61 = vld [vmem:[%s0 + $0x6c] sm:$0xf]
    %v62 = vld [vmem:[%s0 + $0x70] sm:$0xf]
    %v63 = vld [vmem:[%s0 + $0x74] sm:$0xf]
    %v64 = vld [vmem:[%s0 + $0x78] sm:$0xf]
    %v65 = vld [vmem:[%s0 + $0x7c] sm:$0xf]
    %v66 = vld [vmem:[%s1] sm:$0xf]
    %v67 = vld [vmem:[%s1 + $0x4] sm:$0xf]
    %v68 = vld [vmem:[%s1 + $0x8] sm:$0xf]
    %v69 = vld [vmem:[%s1 + $0xc] sm:$0x3]
    %v70 = vld [vmem:[%s2] sm:$0x1]
    %v72 = vlaneseq
    %v73 = vshrl.u32 %v72, 7
    %v74 = vsub.s32 0, %v73
    %v75 = vrot.slane %v70, %v74
    %v109 = vunpack.c.l.b16 %v34
    %v110 = vunpack.c.l.b16 %v35
    %v111 = vunpack.c.l.b16 %v36
    %v112 = vunpack.c.l.b16 %v37
    %v113 = vunpack.c.l.b16 %v38
    %v114 = vunpack.c.l.b16 %v39
    %v115 = vunpack.c.l.b16 %v40
    %v116 = vunpack.c.l.b16 %v41
    %v117 = vunpack.c.l.b16 %v42
    %v118 = vunpack.c.l.b16 %v43
    %v119 = vunpack.c.l.b16 %v44
    %v120 = vunpack.c.l.b16 %v45
    %v121 = vunpack.c.l.b16 %v46
    %v122 = vunpack.c.l.b16 %v47
    %v123 = vunpack.c.l.b16 %v48
    %v124 = vunpack.c.l.b16 %v49
    %v125 = vunpack.c.l.b16 %v50
    %v126 = vunpack.c.l.b16 %v51
    %v127 = vunpack.c.l.b16 %v52
    %v128 = vunpack.c.l.b16 %v53
    %v129 = vunpack.c.l.b16 %v54
    %v130 = vunpack.c.l.b16 %v55
    %v131 = vunpack.c.l.b16 %v56
    %v132 = vunpack.c.l.b16 %v57
    %v133 = vunpack.c.l.b16 %v58
    %v134 = vunpack.c.l.b16 %v59
    %v135 = vunpack.c.l.b16 %v60
    %v136 = vunpack.c.l.b16 %v61
    %v137 = vunpack.c.l.b16 %v62
    %v138 = vunpack.c.l.b16 %v63
    %v139 = vunpack.c.l.b16 %v64
    %v140 = vunpack.c.l.b16 %v65
    %v141 = vpack.c.b16 %v110, %v109
    %v142 = vpack.c.b16 %v112, %v111
    %v143 = vpack.c.b16 %v114, %v113
    %v144 = vpack.c.b16 %v116, %v115
    %v145 = vpack.c.b16 %v118, %v117
    %v146 = vpack.c.b16 %v120, %v119
    %v147 = vpack.c.b16 %v122, %v121
    %v148 = vpack.c.b16 %v124, %v123
    %v149 = vpack.c.b16 %v126, %v125
    %v150 = vpack.c.b16 %v128, %v127
    %v151 = vpack.c.b16 %v130, %v129
    %v152 = vpack.c.b16 %v132, %v131
    %v153 = vpack.c.b16 %v134, %v133
    %v154 = vpack.c.b16 %v136, %v135
    %v155 = vpack.c.b16 %v138, %v137
    %v156 = vpack.c.b16 %v140, %v139
    %v161 = vunpack.c.l.b16 %v66
    %v162 = vunpack.c.l.b16 %v67
    %v163 = vunpack.c.l.b16 %v68
    %v164 = vunpack.c.l.b16 %v69
    %v165 = vpack.c.b16 %v162, %v161
    %v166 = vpack.c.b16 %v164, %v163
    %vm168 = vcmask 220160
    %v170 = vsel %vm168, %v141, 0
    %v173 = vsel %vm168, %v142, 0
    %v176 = vsel %vm168, %v143, 0
    %v179 = vsel %vm168, %v144, 0
    %v182 = vsel %vm168, %v145, 0
    %v185 = vsel %vm168, %v146, 0
    %v188 = vsel %vm168, %v147, 0
    %v191 = vsel %vm168, %v148, 0
    %v194 = vsel %vm168, %v149, 0
    %v197 = vsel %vm168, %v150, 0
    %v200 = vsel %vm168, %v151, 0
    %v203 = vsel %vm168, %v152, 0
    %v206 = vsel %vm168, %v153, 0
    %v209 = vsel %vm168, %v154, 0
    %v212 = vsel %vm168, %v155, 0
    %v215 = vsel %vm168, %v156, 0
    %vm217 = vcmask 1044480
    %vm218 = vcmask 1045504
    %v219 = vsel %vm217, 4294967295, 65535
    %v220 = vsel %vm218, %v219, 0
    %v222 = vand.u32 %v166, %v220
    %224 = vmatprep.subr.bf16.mxu0 0
    %225 = vmatpush1.bf16.msra.mxu0 %v165
    %226 = vmatprep.subr.bf16.mxu0 0
    %227 = vmatpush1.bf16.msra.mxu0 %v222
    %228 = vmatprep.subr.bf16.mxu0 0
    %229 = vmatpush1.bf16.msra.mxu0 0
    %230 = vmatprep.subr.bf16.mxu0 0
    %231 = vmatpush1.bf16.msra.mxu0 0
    %232 = vmatprep.subr.bf16.mxu0 0
    %233 = vmatpush1.bf16.msra.mxu0 0
    %234 = vmatprep.subr.bf16.mxu0 0
    %235 = vmatpush1.bf16.msra.mxu0 0
    %236 = vmatprep.subr.bf16.mxu0 0
    %237 = vmatpush1.bf16.msra.mxu0 0
    %238 = vmatprep.subr.bf16.mxu0 0
    %239 = vmatpush1.bf16.msra.mxu0 0
    %240 = vmatprep.subr.bf16.mxu0 0
    %241 = vmatpush1.bf16.msra.mxu0 0
    %242 = vmatprep.subr.bf16.mxu0 0
    %243 = vmatpush1.bf16.msra.mxu0 0
    %244 = vmatprep.subr.bf16.mxu0 0
    %245 = vmatpush1.bf16.msra.mxu0 0
    %246 = vmatprep.subr.bf16.mxu0 0
    %247 = vmatpush1.bf16.msra.mxu0 0
    %248 = vmatprep.subr.bf16.mxu0 0
    %249 = vmatpush1.bf16.msra.mxu0 0
    %250 = vmatprep.subr.bf16.mxu0 0
    %251 = vmatpush1.bf16.msra.mxu0 0
    %252 = vmatprep.subr.bf16.mxu0 0
    %253 = vmatpush1.bf16.msra.mxu0 0
    %254 = vmatprep.subr.bf16.mxu0 0
    %255 = vmatpush1.bf16.msra.mxu0 0
    %256 = vmatprep.mubr.bf16.mxu0 0
    %257 = vmatmul.mubr.bf16.gmra.mrb[0].mxu0 %v170
    %v258 = vpop.f32.mrb[0].mxu0
    %v259 = vadd.f32 %v75, %v258
    %v260 = vpop.f32.mrb[0].mxu0
    %v261 = vpop.f32.mrb[0].mxu0
    %v262 = vadd.f32 %v75, %v261
    %v263 = vpop.f32.mrb[0].mxu0
    %264 = vmatprep.mubr.bf16.mxu0 0
    %265 = vmatmul.mubr.bf16.gmra.mrb[0].mxu0 %v173
    %v266 = vpop.f32.mrb[0].mxu0
    %v267 = vadd.f32 %v75, %v266
    %v268 = vpop.f32.mrb[0].mxu0
    %v269 = vpop.f32.mrb[0].mxu0
    %v270 = vadd.f32 %v75, %v269
    %v271 = vpop.f32.mrb[0].mxu0
    %272 = vmatprep.mubr.bf16.mxu0 0
    %273 = vmatmul.mubr.bf16.gmra.mrb[0].mxu0 %v176
    %v274 = vpop.f32.mrb[0].mxu0
    %v275 = vadd.f32 %v75, %v274
    %v276 = vpop.f32.mrb[0].mxu0
    %v277 = vpop.f32.mrb[0].mxu0
    %v278 = vadd.f32 %v75, %v277
    %v279 = vpop.f32.mrb[0].mxu0
    %280 = vmatprep.mubr.bf16.mxu0 0
    %281 = vmatmul.mubr.bf16.gmra.mrb[0].mxu0 %v179
    %v282 = vpop.f32.mrb[0].mxu0
    %v283 = vadd.f32 %v75, %v282
    %v284 = vpop.f32.mrb[0].mxu0
    %v285 = vpop.f32.mrb[0].mxu0
    %v286 = vadd.f32 %v75, %v285
    %v287 = vpop.f32.mrb[0].mxu0
    %288 = vmatprep.mubr.bf16.mxu0 0
    %289 = vmatmul.mubr.bf16.gmra.mrb[0].mxu0 %v182
    %v290 = vpop.f32.mrb[0].mxu0
    %v291 = vadd.f32 %v75, %v290
    %v292 = vpop.f32.mrb[0].mxu0
    %v293 = vpop.f32.mrb[0].mxu0
    %v294 = vadd.f32 %v75, %v293
    %v295 = vpop.f32.mrb[0].mxu0
    %296 = vmatprep.mubr.bf16.mxu0 0
    %297 = vmatmul.mubr.bf16.gmra.mrb[0].mxu0 %v185
    %v298 = vpop.f32.mrb[0].mxu0
    %v299 = vadd.f32 %v75, %v298
    %v300 = vpop.f32.mrb[0].mxu0
    %v301 = vpop.f32.mrb[0].mxu0
    %v302 = vadd.f32 %v75, %v301
    %v303 = vpop.f32.mrb[0].mxu0
    %304 = vmatprep.mubr.bf16.mxu0 0
    %305 = vmatmul.mubr.bf16.gmra.mrb[0].mxu0 %v188
    %v306 = vpop.f32.mrb[0].mxu0
    %v307 = vadd.f32 %v75, %v306
    %v308 = vpop.f32.mrb[0].mxu0
    %v309 = vpop.f32.mrb[0].mxu0
    %v310 = vadd.f32 %v75, %v309
    %v311 = vpop.f32.mrb[0].mxu0
    %312 = vmatprep.mubr.bf16.mxu0 0
    %313 = vmatmul.mubr.bf16.gmra.mrb[0].mxu0 %v191
    %v314 = vpop.f32.mrb[0].mxu0
    %v315 = vadd.f32 %v75, %v314
    %v316 = vpop.f32.mrb[0].mxu0
    %v317 = vpop.f32.mrb[0].mxu0
    %v318 = vadd.f32 %v75, %v317
    %v319 = vpop.f32.mrb[0].mxu0
    %320 = vmatprep.mubr.bf16.mxu0 0
    %321 = vmatmul.mubr.bf16.gmra.mrb[0].mxu0 %v194
    %v322 = vpop.f32.mrb[0].mxu0
    %v323 = vadd.f32 %v75, %v322
    %v324 = vpop.f32.mrb[0].mxu0
    %v325 = vpop.f32.mrb[0].mxu0
    %v326 = vadd.f32 %v75, %v325
    %v327 = vpop.f32.mrb[0].mxu0
    %328 = vmatprep.mubr.bf16.mxu0 0
    %329 = vmatmul.mubr.bf16.gmra.mrb[0].mxu0 %v197
    %v330 = vpop.f32.mrb[0].mxu0
    %v331 = vadd.f32 %v75, %v330
    %v332 = vpop.f32.mrb[0].mxu0
    %v333 = vpop.f32.mrb[0].mxu0
    %v334 = vadd.f32 %v75, %v333
    %v335 = vpop.f32.mrb[0].mxu0
    %336 = vmatprep.mubr.bf16.mxu0 0
    %337 = vmatmul.mubr.bf16.gmra.mrb[0].mxu0 %v200
    %v338 = vpop.f32.mrb[0].mxu0
    %v339 = vadd.f32 %v75, %v338
    %v340 = vpop.f32.mrb[0].mxu0
    %v341 = vpop.f32.mrb[0].mxu0
    %v342 = vadd.f32 %v75, %v341
    %v343 = vpop.f32.mrb[0].mxu0
    %344 = vmatprep.mubr.bf16.mxu0 0
    %345 = vmatmul.mubr.bf16.gmra.mrb[0].mxu0 %v203
    %v346 = vpop.f32.mrb[0].mxu0
    %v347 = vadd.f32 %v75, %v346
    %v348 = vpop.f32.mrb[0].mxu0
    %v349 = vpop.f32.mrb[0].mxu0
    %v350 = vadd.f32 %v75, %v349
    %v351 = vpop.f32.mrb[0].mxu0
    %352 = vmatprep.mubr.bf16.mxu0 0
    %353 = vmatmul.mubr.bf16.gmra.mrb[0].mxu0 %v206
    %v354 = vpop.f32.mrb[0].mxu0
    %v355 = vadd.f32 %v75, %v354
    %v356 = vpop.f32.mrb[0].mxu0
    %v357 = vpop.f32.mrb[0].mxu0
    %v358 = vadd.f32 %v75, %v357
    %v359 = vpop.f32.mrb[0].mxu0
    %360 = vmatprep.mubr.bf16.mxu0 0
    %361 = vmatmul.mubr.bf16.gmra.mrb[0].mxu0 %v209
    %v362 = vpop.f32.mrb[0].mxu0
    %v363 = vadd.f32 %v75, %v362
    %v364 = vpop.f32.mrb[0].mxu0
    %v365 = vpop.f32.mrb[0].mxu0
    %v366 = vadd.f32 %v75, %v365
    %v367 = vpop.f32.mrb[0].mxu0
    %368 = vmatprep.mubr.bf16.mxu0 0
    %369 = vmatmul.mubr.bf16.gmra.mrb[0].mxu0 %v212
    %v370 = vpop.f32.mrb[0].mxu0
    %v371 = vadd.f32 %v75, %v370
    %v372 = vpop.f32.mrb[0].mxu0
    %v373 = vpop.f32.mrb[0].mxu0
    %v374 = vadd.f32 %v75, %v373
    %v375 = vpop.f32.mrb[0].mxu0
    %376 = vmatprep.mubr.bf16.mxu0 0
    %377 = vmatmul.mubr.bf16.gmra.mrb[0].mxu0 %v215
    %v378 = vpop.f32.mrb[0].mxu0
    %v379 = vadd.f32 %v75, %v378
    %v380 = vpop.f32.mrb[0].mxu0
    %v381 = vpop.f32.mrb[0].mxu0
    %v382 = vadd.f32 %v75, %v381
    %v383 = vpop.f32.mrb[0].mxu0
    %384 = vdwg.mxu0
    %v385 = vmax.f32 %v259, 0.0
    %v386 = vmax.f32 %v262, 0.0
    %v387 = vmax.f32 %v267, 0.0
    %v388 = vmax.f32 %v270, 0.0
    %v389 = vmax.f32 %v275, 0.0
    %v390 = vmax.f32 %v278, 0.0
    %v391 = vmax.f32 %v283, 0.0
    %v392 = vmax.f32 %v286, 0.0
    %v393 = vmax.f32 %v291, 0.0
    %v394 = vmax.f32 %v294, 0.0
    %v395 = vmax.f32 %v299, 0.0
    %v396 = vmax.f32 %v302, 0.0
    %v397 = vmax.f32 %v307, 0.0
    %v398 = vmax.f32 %v310, 0.0
    %v399 = vmax.f32 %v315, 0.0
    %v400 = vmax.f32 %v318, 0.0
    %v401 = vmax.f32 %v323, 0.0
    %v402 = vmax.f32 %v326, 0.0
    %v403 = vmax.f32 %v331, 0.0
    %v404 = vmax.f32 %v334, 0.0
    %v405 = vmax.f32 %v339, 0.0
    %v406 = vmax.f32 %v342, 0.0
    %v407 = vmax.f32 %v347, 0.0
    %v408 = vmax.f32 %v350, 0.0
    %v409 = vmax.f32 %v355, 0.0
    %v410 = vmax.f32 %v358, 0.0
    %v411 = vmax.f32 %v363, 0.0
    %v412 = vmax.f32 %v366, 0.0
    %v413 = vmax.f32 %v371, 0.0
    %v414 = vmax.f32 %v374, 0.0
    %v415 = vmax.f32 %v379, 0.0
    %v416 = vmax.f32 %v382, 0.0
    %v417 = vpack.c.bf16 %v386, %v385
    %v418 = vpack.c.bf16 %v388, %v387
    %v419 = vpack.c.bf16 %v390, %v389
    %v420 = vpack.c.bf16 %v392, %v391
    %v421 = vpack.c.bf16 %v394, %v393
    %v422 = vpack.c.bf16 %v396, %v395
    %v423 = vpack.c.bf16 %v398, %v397
    %v424 = vpack.c.bf16 %v400, %v399
    %v425 = vpack.c.bf16 %v402, %v401
    %v426 = vpack.c.bf16 %v404, %v403
    %v427 = vpack.c.bf16 %v406, %v405
    %v428 = vpack.c.bf16 %v408, %v407
    %v429 = vpack.c.bf16 %v410, %v409
    %v430 = vpack.c.bf16 %v412, %v411
    %v431 = vpack.c.bf16 %v414, %v413
    %v432 = vpack.c.bf16 %v416, %v415
    %v433 = vld [vmem:[%s3] sm:$0xf]
    %v434 = vld [vmem:[%s3 + $0x4] sm:$0xf]
    %v435 = vld [vmem:[#allocation2] sm:$0x1]
    %v437 = vlaneseq
    %v438 = vshrl.u32 %v437, 7
    %v439 = vsub.s32 0, %v438
    %v440 = vrot.slane %v435, %v439
    %v444 = vunpack.c.l.b16 %v433
    %v445 = vunpack.c.l.b16 %v434
    %v446 = vpack.c.b16 %v445, %v444
    %vm448 = vcmask 130048
    %v450 = vsel %vm448, %v417, 0
    %v453 = vsel %vm448, %v418, 0
    %v456 = vsel %vm448, %v419, 0
    %v459 = vsel %vm448, %v420, 0
    %v462 = vsel %vm448, %v421, 0
    %v465 = vsel %vm448, %v422, 0
    %v468 = vsel %vm448, %v423, 0
    %v471 = vsel %vm448, %v424, 0
    %v474 = vsel %vm448, %v425, 0
    %v477 = vsel %vm448, %v426, 0
    %v480 = vsel %vm448, %v427, 0
    %v483 = vsel %vm448, %v428, 0
    %v486 = vsel %vm448, %v429, 0
    %v489 = vsel %vm448, %v430, 0
    %v492 = vsel %vm448, %v431, 0
    %v495 = vsel %vm448, %v432, 0
    %497 = vmatprep.subr.bf16.mxu0 0
    %498 = vmatpush1.bf16.msra.mxu0 %v446
    %499 = vmatprep.subr.bf16.mxu0 0
    %500 = vmatpush1.bf16.msra.mxu0 0
    %501 = vmatprep.subr.bf16.mxu0 0
    %502 = vmatpush1.bf16.msra.mxu0 0
    %503 = vmatprep.subr.bf16.mxu0 0
    %504 = vmatpush1.bf16.msra.mxu0 0
    %505 = vmatprep.subr.bf16.mxu0 0
    %506 = vmatpush1.bf16.msra.mxu0 0
    %507 = vmatprep.subr.bf16.mxu0 0
    %508 = vmatpush1.bf16.msra.mxu0 0
    %509 = vmatprep.subr.bf16.mxu0 0
    %510 = vmatpush1.bf16.msra.mxu0 0
    %511 = vmatprep.subr.bf16.mxu0 0
    %512 = vmatpush1.bf16.msra.mxu0 0
    %513 = vmatprep.subr.bf16.mxu0 0
    %514 = vmatpush1.bf16.msra.mxu0 0
    %515 = vmatprep.subr.bf16.mxu0 0
    %516 = vmatpush1.bf16.msra.mxu0 0
    %517 = vmatprep.subr.bf16.mxu0 0
    %518 = vmatpush1.bf16.msra.mxu0 0
    %519 = vmatprep.subr.bf16.mxu0 0
    %520 = vmatpush1.bf16.msra.mxu0 0
    %521 = vmatprep.subr.bf16.mxu0 0
    %522 = vmatpush1.bf16.msra.mxu0 0
    %523 = vmatprep.subr.bf16.mxu0 0
    %524 = vmatpush1.bf16.msra.mxu0 0
    %525 = vmatprep.subr.bf16.mxu0 0
    %526 = vmatpush1.bf16.msra.mxu0 0
    %527 = vmatprep.subr.bf16.mxu0 0
    %528 = vmatpush1.bf16.msra.mxu0 0
    %529 = vmatprep.mubr.bf16.mxu0 0
    %530 = vmatmul.mubr.bf16.gmra.mrb[0].mxu0 %v450
    %v531 = vpop.f32.mrb[0].mxu0
    %v532 = vadd.f32 %v440, %v531
    %v533 = vpop.f32.mrb[0].mxu0
    %v534 = vpop.f32.mrb[0].mxu0
    %v535 = vadd.f32 %v440, %v534
    %v536 = vpop.f32.mrb[0].mxu0
    %537 = vmatprep.mubr.bf16.mxu0 0
    %538 = vmatmul.mubr.bf16.gmra.mrb[0].mxu0 %v453
    %v539 = vpop.f32.mrb[0].mxu0
    %v540 = vadd.f32 %v440, %v539
    %v541 = vpop.f32.mrb[0].mxu0
    %v542 = vpop.f32.mrb[0].mxu0
    %v543 = vadd.f32 %v440, %v542
    %v544 = vpop.f32.mrb[0].mxu0
    %545 = vmatprep.mubr.bf16.mxu0 0
    %546 = vmatmul.mubr.bf16.gmra.mrb[0].mxu0 %v456
    %v547 = vpop.f32.mrb[0].mxu0
    %v548 = vadd.f32 %v440, %v547
    %v549 = vpop.f32.mrb[0].mxu0
    %v550 = vpop.f32.mrb[0].mxu0
    %v551 = vadd.f32 %v440, %v550
    %v552 = vpop.f32.mrb[0].mxu0
    %553 = vmatprep.mubr.bf16.mxu0 0
    %554 = vmatmul.mubr.bf16.gmra.mrb[0].mxu0 %v459
    %v555 = vpop.f32.mrb[0].mxu0
    %v556 = vadd.f32 %v440, %v555
    %v557 = vpop.f32.mrb[0].mxu0
    %v558 = vpop.f32.mrb[0].mxu0
    %v559 = vadd.f32 %v440, %v558
    %v560 = vpop.f32.mrb[0].mxu0
    %561 = vmatprep.mubr.bf16.mxu0 0
    %562 = vmatmul.mubr.bf16.gmra.mrb[0].mxu0 %v462
    %v563 = vpop.f32.mrb[0].mxu0
    %v564 = vadd.f32 %v440, %v563
    %v565 = vpop.f32.mrb[0].mxu0
    %v566 = vpop.f32.mrb[0].mxu0
    %v567 = vadd.f32 %v440, %v566
    %v568 = vpop.f32.mrb[0].mxu0
    %569 = vmatprep.mubr.bf16.mxu0 0
    %570 = vmatmul.mubr.bf16.gmra.mrb[0].mxu0 %v465
    %v571 = vpop.f32.mrb[0].mxu0
    %v572 = vadd.f32 %v440, %v571
    %v573 = vpop.f32.mrb[0].mxu0
    %v574 = vpop.f32.mrb[0].mxu0
    %v575 = vadd.f32 %v440, %v574
    %v576 = vpop.f32.mrb[0].mxu0
    %577 = vmatprep.mubr.bf16.mxu0 0
    %578 = vmatmul.mubr.bf16.gmra.mrb[0].mxu0 %v468
    %v579 = vpop.f32.mrb[0].mxu0
    %v580 = vadd.f32 %v440, %v579
    %v581 = vpop.f32.mrb[0].mxu0
    %v582 = vpop.f32.mrb[0].mxu0
    %v583 = vadd.f32 %v440, %v582
    %v584 = vpop.f32.mrb[0].mxu0
    %585 = vmatprep.mubr.bf16.mxu0 0
    %586 = vmatmul.mubr.bf16.gmra.mrb[0].mxu0 %v471
    %v587 = vpop.f32.mrb[0].mxu0
    %v588 = vadd.f32 %v440, %v587
    %v589 = vpop.f32.mrb[0].mxu0
    %v590 = vpop.f32.mrb[0].mxu0
    %v591 = vadd.f32 %v440, %v590
    %v592 = vpop.f32.mrb[0].mxu0
    %593 = vmatprep.mubr.bf16.mxu0 0
    %594 = vmatmul.mubr.bf16.gmra.mrb[0].mxu0 %v474
    %v595 = vpop.f32.mrb[0].mxu0
    %v596 = vadd.f32 %v440, %v595
    %v597 = vpop.f32.mrb[0].mxu0
    %v598 = vpop.f32.mrb[0].mxu0
    %v599 = vadd.f32 %v440, %v598
    %v600 = vpop.f32.mrb[0].mxu0
    %601 = vmatprep.mubr.bf16.mxu0 0
    %602 = vmatmul.mubr.bf16.gmra.mrb[0].mxu0 %v477
    %v603 = vpop.f32.mrb[0].mxu0
    %v604 = vadd.f32 %v440, %v603
    %v605 = vpop.f32.mrb[0].mxu0
    %v606 = vpop.f32.mrb[0].mxu0
    %v607 = vadd.f32 %v440, %v606
    %v608 = vpop.f32.mrb[0].mxu0
    %609 = vmatprep.mubr.bf16.mxu0 0
    %610 = vmatmul.mubr.bf16.gmra.mrb[0].mxu0 %v480
    %v611 = vpop.f32.mrb[0].mxu0
    %v612 = vadd.f32 %v440, %v611
    %v613 = vpop.f32.mrb[0].mxu0
    %v614 = vpop.f32.mrb[0].mxu0
    %v615 = vadd.f32 %v440, %v614
    %v616 = vpop.f32.mrb[0].mxu0
    %617 = vmatprep.mubr.bf16.mxu0 0
    %618 = vmatmul.mubr.bf16.gmra.mrb[0].mxu0 %v483
    %v619 = vpop.f32.mrb[0].mxu0
    %v620 = vadd.f32 %v440, %v619
    %v621 = vpop.f32.mrb[0].mxu0
    %v622 = vpop.f32.mrb[0].mxu0
    %v623 = vadd.f32 %v440, %v622
    %v624 = vpop.f32.mrb[0].mxu0
    %625 = vmatprep.mubr.bf16.mxu0 0
    %626 = vmatmul.mubr.bf16.gmra.mrb[0].mxu0 %v486
    %v627 = vpop.f32.mrb[0].mxu0
    %v628 = vadd.f32 %v440, %v627
    %v629 = vpop.f32.mrb[0].mxu0
    %v630 = vpop.f32.mrb[0].mxu0
    %v631 = vadd.f32 %v440, %v630
    %v632 = vpop.f32.mrb[0].mxu0
    %633 = vmatprep.mubr.bf16.mxu0 0
    %634 = vmatmul.mubr.bf16.gmra.mrb[0].mxu0 %v489
    %v635 = vpop.f32.mrb[0].mxu0
    %v636 = vadd.f32 %v440, %v635
    %v637 = vpop.f32.mrb[0].mxu0
    %v638 = vpop.f32.mrb[0].mxu0
    %v639 = vadd.f32 %v440, %v638
    %v640 = vpop.f32.mrb[0].mxu0
    %641 = vmatprep.mubr.bf16.mxu0 0
    %642 = vmatmul.mubr.bf16.gmra.mrb[0].mxu0 %v492
    %v643 = vpop.f32.mrb[0].mxu0
    %v644 = vadd.f32 %v440, %v643
    %v645 = vpop.f32.mrb[0].mxu0
    %v646 = vpop.f32.mrb[0].mxu0
    %v647 = vadd.f32 %v440, %v646
    %v648 = vpop.f32.mrb[0].mxu0
    %649 = vmatprep.mubr.bf16.mxu0 0
    %650 = vmatmul.mubr.bf16.gmra.mrb[0].mxu0 %v495
    %v651 = vpop.f32.mrb[0].mxu0
    %v652 = vadd.f32 %v440, %v651
    %v653 = vpop.f32.mrb[0].mxu0
    %v654 = vpop.f32.mrb[0].mxu0
    %v655 = vadd.f32 %v440, %v654
    %v656 = vpop.f32.mrb[0].mxu0
    %657 = vdwg.mxu0
    %v658 = vxor.u32 %v532, 2147483648
    %v659 = vxor.u32 %v535, 2147483648
    %v660 = vxor.u32 %v540, 2147483648
    %v661 = vxor.u32 %v543, 2147483648
    %v662 = vxor.u32 %v548, 2147483648
    %v663 = vxor.u32 %v551, 2147483648
    %v664 = vxor.u32 %v556, 2147483648
    %v665 = vxor.u32 %v559, 2147483648
    %v666 = vxor.u32 %v564, 2147483648
    %v667 = vxor.u32 %v567, 2147483648
    %v668 = vxor.u32 %v572, 2147483648
    %v669 = vxor.u32 %v575, 2147483648
    %v670 = vxor.u32 %v580, 2147483648
    %v671 = vxor.u32 %v583, 2147483648
    %v672 = vxor.u32 %v588, 2147483648
    %v673 = vxor.u32 %v591, 2147483648
    %v674 = vxor.u32 %v596, 2147483648
    %v675 = vxor.u32 %v599, 2147483648
    %v676 = vxor.u32 %v604, 2147483648
    %v677 = vxor.u32 %v607, 2147483648
    %v678 = vxor.u32 %v612, 2147483648
    %v679 = vxor.u32 %v615, 2147483648
    %v680 = vxor.u32 %v620, 2147483648
    %v681 = vxor.u32 %v623, 2147483648
    %v682 = vxor.u32 %v628, 2147483648
    %v683 = vxor.u32 %v631, 2147483648
    %v684 = vxor.u32 %v636, 2147483648
    %v685 = vxor.u32 %v639, 2147483648
    %v686 = vxor.u32 %v644, 2147483648
    %v687 = vxor.u32 %v647, 2147483648
    %v688 = vxor.u32 %v652, 2147483648
    %v689 = vxor.u32 %v655, 2147483648
    %v690 = vmul.f32 %v658, 1.442695
    %v691 = vpow.pop %v690
    %v692 = vmul.f32 %v659, 1.442695
    %v693 = vpow.pop %v692
    %v694 = vmul.f32 %v660, 1.442695
    %v695 = vpow.pop %v694
    %v696 = vmul.f32 %v661, 1.442695
    %v697 = vpow.pop %v696
    %v698 = vmul.f32 %v662, 1.442695
    %v699 = vpow.pop %v698
    %v700 = vmul.f32 %v663, 1.442695
    %v701 = vpow.pop %v700
    %v702 = vmul.f32 %v664, 1.442695
    %v703 = vpow.pop %v702
    %v704 = vmul.f32 %v665, 1.442695
    %v705 = vpow.pop %v704
    %v706 = vmul.f32 %v666, 1.442695
    %v707 = vpow.pop %v706
    %v708 = vmul.f32 %v667, 1.442695
    %v709 = vpow.pop %v708
    %v710 = vmul.f32 %v668, 1.442695
    %v711 = vpow.pop %v710
    %v712 = vmul.f32 %v669, 1.442695
    %v713 = vpow.pop %v712
    %v714 = vmul.f32 %v670, 1.442695
    %v715 = vpow.pop %v714
    %v716 = vmul.f32 %v671, 1.442695
    %v717 = vpow.pop %v716
    %v718 = vmul.f32 %v672, 1.442695
    %v719 = vpow.pop %v718
    %v720 = vmul.f32 %v673, 1.442695
    %v721 = vpow.pop %v720
    %v722 = vmul.f32 %v674, 1.442695
    %v723 = vpow.pop %v722
    %v724 = vmul.f32 %v675, 1.442695
    %v725 = vpow.pop %v724
    %v726 = vmul.f32 %v676, 1.442695
    %v727 = vpow.pop %v726
    %v728 = vmul.f32 %v677, 1.442695
    %v729 = vpow.pop %v728
    %v730 = vmul.f32 %v678, 1.442695
    %v731 = vpow.pop %v730
    %v732 = vmul.f32 %v679, 1.442695
    %v733 = vpow.pop %v732
    %v734 = vmul.f32 %v680, 1.442695
    %v735 = vpow.pop %v734
    %v736 = vmul.f32 %v681, 1.442695
    %v737 = vpow.pop %v736
    %v738 = vmul.f32 %v682, 1.442695
    %v739 = vpow.pop %v738
    %v740 = vmul.f32 %v683, 1.442695
    %v741 = vpow.pop %v740
    %v742 = vmul.f32 %v684, 1.442695
    %v743 = vpow.pop %v742
    %v744 = vmul.f32 %v685, 1.442695
    %v745 = vpow.pop %v744
    %v746 = vmul.f32 %v686, 1.442695
    %v747 = vpow.pop %v746
    %v748 = vmul.f32 %v687, 1.442695
    %v749 = vpow.pop %v748
    %v750 = vmul.f32 %v688, 1.442695
    %v751 = vpow.pop %v750
    %v752 = vmul.f32 %v689, 1.442695
    %v753 = vpow.pop %v752
    %v754 = vadd.f32 %v691, 1.0
    %v755 = vadd.f32 %v693, 1.0
    %v756 = vadd.f32 %v695, 1.0
    %v757 = vadd.f32 %v697, 1.0
    %v758 = vadd.f32 %v699, 1.0
    %v759 = vadd.f32 %v701, 1.0
    %v760 = vadd.f32 %v703, 1.0
    %v761 = vadd.f32 %v705, 1.0
    %v762 = vadd.f32 %v707, 1.0
    %v763 = vadd.f32 %v709, 1.0
    %v764 = vadd.f32 %v711, 1.0
    %v765 = vadd.f32 %v713, 1.0
    %v766 = vadd.f32 %v715, 1.0
    %v767 = vadd.f32 %v717, 1.0
    %v768 = vadd.f32 %v719, 1.0
    %v769 = vadd.f32 %v721, 1.0
    %v770 = vadd.f32 %v723, 1.0
    %v771 = vadd.f32 %v725, 1.0
    %v772 = vadd.f32 %v727, 1.0
    %v773 = vadd.f32 %v729, 1.0
    %v774 = vadd.f32 %v731, 1.0
    %v775 = vadd.f32 %v733, 1.0
    %v776 = vadd.f32 %v735, 1.0
    %v777 = vadd.f32 %v737, 1.0
    %v778 = vadd.f32 %v739, 1.0
    %v779 = vadd.f32 %v741, 1.0
    %v780 = vadd.f32 %v743, 1.0
    %v781 = vadd.f32 %v745, 1.0
    %v782 = vadd.f32 %v747, 1.0
    %v783 = vadd.f32 %v749, 1.0
    %v784 = vadd.f32 %v751, 1.0
    %v785 = vadd.f32 %v753, 1.0
    %v786 = vrcp.pop %v754
    %v787 = vmul.f32 1.0, %v786
    %v788 = vrcp.pop %v755
    %v789 = vmul.f32 1.0, %v788
    %v790 = vrcp.pop %v756
    %v791 = vmul.f32 1.0, %v790
    %v792 = vrcp.pop %v757
    %v793 = vmul.f32 1.0, %v792
    %v794 = vrcp.pop %v758
    %v795 = vmul.f32 1.0, %v794
    %v796 = vrcp.pop %v759
    %v797 = vmul.f32 1.0, %v796
    %v798 = vrcp.pop %v760
    %v799 = vmul.f32 1.0, %v798
    %v800 = vrcp.pop %v761
    %v801 = vmul.f32 1.0, %v800
    %v802 = vrcp.pop %v762
    %v803 = vmul.f32 1.0, %v802
    %v804 = vrcp.pop %v763
    %v805 = vmul.f32 1.0, %v804
    %v806 = vrcp.pop %v764
    %v807 = vmul.f32 1.0, %v806
    %v808 = vrcp.pop %v765
    %v809 = vmul.f32 1.0, %v808
    %v810 = vrcp.pop %v766
    %v811 = vmul.f32 1.0, %v810
    %v812 = vrcp.pop %v767
    %v813 = vmul.f32 1.0, %v812
    %v814 = vrcp.pop %v768
    %v815 = vmul.f32 1.0, %v814
    %v816 = vrcp.pop %v769
    %v817 = vmul.f32 1.0, %v816
    %v818 = vrcp.pop %v770
    %v819 = vmul.f32 1.0, %v818
    %v820 = vrcp.pop %v771
    %v821 = vmul.f32 1.0, %v820
    %v822 = vrcp.pop %v772
    %v823 = vmul.f32 1.0, %v822
    %v824 = vrcp.pop %v773
    %v825 = vmul.f32 1.0, %v824
    %v826 = vrcp.pop %v774
    %v827 = vmul.f32 1.0, %v826
    %v828 = vrcp.pop %v775
    %v829 = vmul.f32 1.0, %v828
    %v830 = vrcp.pop %v776
    %v831 = vmul.f32 1.0, %v830
    %v832 = vrcp.pop %v777
    %v833 = vmul.f32 1.0, %v832
    %v834 = vrcp.pop %v778
    %v835 = vmul.f32 1.0, %v834
    %v836 = vrcp.pop %v779
    %v837 = vmul.f32 1.0, %v836
    %v838 = vrcp.pop %v780
    %v839 = vmul.f32 1.0, %v838
    %v840 = vrcp.pop %v781
    %v841 = vmul.f32 1.0, %v840
    %v842 = vrcp.pop %v782
    %v843 = vmul.f32 1.0, %v842
    %v844 = vrcp.pop %v783
    %v845 = vmul.f32 1.0, %v844
    %v846 = vrcp.pop %v784
    %v847 = vmul.f32 1.0, %v846
    %v848 = vrcp.pop %v785
    %v849 = vmul.f32 1.0, %v848
    %vm850 = vcmask 7168
    %851 = vst.msk [vmem:[%s8] sm:$0xff] %vm850, %v787
    %852 = vst.msk [vmem:[%s8 + $0x8] sm:$0xff] %vm850, %v789
    %853 = vst.msk [vmem:[%s8 + $0x10] sm:$0xff] %vm850, %v791
    %854 = vst.msk [vmem:[%s8 + $0x18] sm:$0xff] %vm850, %v793
    %855 = vst.msk [vmem:[%s8 + $0x20] sm:$0xff] %vm850, %v795
    %856 = vst.msk [vmem:[%s8 + $0x28] sm:$0xff] %vm850, %v797
    %857 = vst.msk [vmem:[%s8 + $0x30] sm:$0xff] %vm850, %v799
    %858 = vst.msk [vmem:[%s8 + $0x38] sm:$0xff] %vm850, %v801
    %859 = vst.msk [vmem:[%s8 + $0x40] sm:$0xff] %vm850, %v803
    %860 = vst.msk [vmem:[%s8 + $0x48] sm:$0xff] %vm850, %v805
    %861 = vst.msk [vmem:[%s8 + $0x50] sm:$0xff] %vm850, %v807
    %862 = vst.msk [vmem:[%s8 + $0x58] sm:$0xff] %vm850, %v809
    %863 = vst.msk [vmem:[%s8 + $0x60] sm:$0xff] %vm850, %v811
    %864 = vst.msk [vmem:[%s8 + $0x68] sm:$0xff] %vm850, %v813
    %865 = vst.msk [vmem:[%s8 + $0x70] sm:$0xff] %vm850, %v815
    %866 = vst.msk [vmem:[%s8 + $0x78] sm:$0xff] %vm850, %v817
    %867 = vst.msk [vmem:[%s8 + $0x80] sm:$0xff] %vm850, %v819
    %868 = vst.msk [vmem:[%s8 + $0x88] sm:$0xff] %vm850, %v821
    %869 = vst.msk [vmem:[%s8 + $0x90] sm:$0xff] %vm850, %v823
    %870 = vst.msk [vmem:[%s8 + $0x98] sm:$0xff] %vm850, %v825
    %871 = vst.msk [vmem:[%s8 + $0xa0] sm:$0xff] %vm850, %v827
    %872 = vst.msk [vmem:[%s8 + $0xa8] sm:$0xff] %vm850, %v829
    %873 = vst.msk [vmem:[%s8 + $0xb0] sm:$0xff] %vm850, %v831
    %874 = vst.msk [vmem:[%s8 + $0xb8] sm:$0xff] %vm850, %v833
    %875 = vst.msk [vmem:[%s8 + $0xc0] sm:$0xff] %vm850, %v835
    %876 = vst.msk [vmem:[%s8 + $0xc8] sm:$0xff] %vm850, %v837
    %877 = vst.msk [vmem:[%s8 + $0xd0] sm:$0xff] %vm850, %v839
    %878 = vst.msk [vmem:[%s8 + $0xd8] sm:$0xff] %vm850, %v841
    %879 = vst.msk [vmem:[%s8 + $0xe0] sm:$0xff] %vm850, %v843
    %880 = vst.msk [vmem:[%s8 + $0xe8] sm:$0xff] %vm850, %v845
    %881 = vst.msk [vmem:[%s8 + $0xf0] sm:$0xff] %vm850, %v847
    %882 = vst.msk [vmem:[%s8 + $0xf8] sm:$0xff] %vm850, %v849
    %v883 = vsub.f32 0.0, %v787
    %v884 = vsub.f32 0.0, %v789
    %v885 = vsub.f32 0.0, %v791
    %v886 = vsub.f32 0.0, %v793
    %v887 = vsub.f32 0.0, %v795
    %v888 = vsub.f32 0.0, %v797
    %v889 = vsub.f32 0.0, %v799
    %v890 = vsub.f32 0.0, %v801
    %v891 = vsub.f32 0.0, %v803
    %v892 = vsub.f32 0.0, %v805
    %v893 = vsub.f32 0.0, %v807
    %v894 = vsub.f32 0.0, %v809
    %v895 = vsub.f32 0.0, %v811
    %v896 = vsub.f32 0.0, %v813
    %v897 = vsub.f32 0.0, %v815
    %v898 = vsub.f32 0.0, %v817
    %v899 = vsub.f32 0.0, %v819
    %v900 = vsub.f32 0.0, %v821
    %v901 = vsub.f32 0.0, %v823
    %v902 = vsub.f32 0.0, %v825
    %v903 = vsub.f32 0.0, %v827
    %v904 = vsub.f32 0.0, %v829
    %v905 = vsub.f32 0.0, %v831
    %v906 = vsub.f32 0.0, %v833
    %v907 = vsub.f32 0.0, %v835
    %v908 = vsub.f32 0.0, %v837
    %v909 = vsub.f32 0.0, %v839
    %v910 = vsub.f32 0.0, %v841
    %v911 = vsub.f32 0.0, %v843
    %v912 = vsub.f32 0.0, %v845
    %v913 = vsub.f32 0.0, %v847
    %v914 = vsub.f32 0.0, %v849
    %v915 = vadd.f32 %v787, 1e-30
    %v916 = vadd.f32 %v789, 1e-30
    %v917 = vadd.f32 %v791, 1e-30
    %v918 = vadd.f32 %v793, 1e-30
    %v919 = vadd.f32 %v795, 1e-30
    %v920 = vadd.f32 %v797, 1e-30
    %v921 = vadd.f32 %v799, 1e-30
    %v922 = vadd.f32 %v801, 1e-30
    %v923 = vadd.f32 %v803, 1e-30
    %v924 = vadd.f32 %v805, 1e-30
    %v925 = vadd.f32 %v807, 1e-30
    %v926 = vadd.f32 %v809, 1e-30
    %v927 = vadd.f32 %v811, 1e-30
    %v928 = vadd.f32 %v813, 1e-30
    %v929 = vadd.f32 %v815, 1e-30
    %v930 = vadd.f32 %v817, 1e-30
    %v931 = vadd.f32 %v819, 1e-30
    %v932 = vadd.f32 %v821, 1e-30
    %v933 = vadd.f32 %v823, 1e-30
    %v934 = vadd.f32 %v825, 1e-30
    %v935 = vadd.f32 %v827, 1e-30
    %v936 = vadd.f32 %v829, 1e-30
    %v937 = vadd.f32 %v831, 1e-30
    %v938 = vadd.f32 %v833, 1e-30
    %v939 = vadd.f32 %v835, 1e-30
    %v940 = vadd.f32 %v837, 1e-30
    %v941 = vadd.f32 %v839, 1e-30
    %v942 = vadd.f32 %v841, 1e-30
    %v943 = vadd.f32 %v843, 1e-30
    %v944 = vadd.f32 %v845, 1e-30
    %v945 = vadd.f32 %v847, 1e-30
    %v946 = vadd.f32 %v849, 1e-30
    %v947 = vlog2.pop %v915
    %v948 = vmul.f32 %v947, 0.6931472
    %v949 = vlog2.pop %v916
    %v950 = vmul.f32 %v949, 0.6931472
    %v951 = vlog2.pop %v917
    %v952 = vmul.f32 %v951, 0.6931472
    %v953 = vlog2.pop %v918
    %v954 = vmul.f32 %v953, 0.6931472
    %v955 = vlog2.pop %v919
    %v956 = vmul.f32 %v955, 0.6931472
    %v957 = vlog2.pop %v920
    %v958 = vmul.f32 %v957, 0.6931472
    %v959 = vlog2.pop %v921
    %v960 = vmul.f32 %v959, 0.6931472
    %v961 = vlog2.pop %v922
    %v962 = vmul.f32 %v961, 0.6931472
    %v963 = vlog2.pop %v923
    %v964 = vmul.f32 %v963, 0.6931472
    %v965 = vlog2.pop %v924
    %v966 = vmul.f32 %v965, 0.6931472
    %v967 = vlog2.pop %v925
    %v968 = vmul.f32 %v967, 0.6931472
    %v969 = vlog2.pop %v926
    %v970 = vmul.f32 %v969, 0.6931472
    %v971 = vlog2.pop %v927
    %v972 = vmul.f32 %v971, 0.6931472
    %v973 = vlog2.pop %v928
    %v974 = vmul.f32 %v973, 0.6931472
    %v975 = vlog2.pop %v929
    %v976 = vmul.f32 %v975, 0.6931472
    %v977 = vlog2.pop %v930
    %v978 = vmul.f32 %v977, 0.6931472
    %v979 = vlog2.pop %v931
    %v980 = vmul.f32 %v979, 0.6931472
    %v981 = vlog2.pop %v932
    %v982 = vmul.f32 %v981, 0.6931472
    %v983 = vlog2.pop %v933
    %v984 = vmul.f32 %v983, 0.6931472
    %v985 = vlog2.pop %v934
    %v986 = vmul.f32 %v985, 0.6931472
    %v987 = vlog2.pop %v935
    %v988 = vmul.f32 %v987, 0.6931472
    %v989 = vlog2.pop %v936
    %v990 = vmul.f32 %v989, 0.6931472
    %v991 = vlog2.pop %v937
    %v992 = vmul.f32 %v991, 0.6931472
    %v993 = vlog2.pop %v938
    %v994 = vmul.f32 %v993, 0.6931472
    %v995 = vlog2.pop %v939
    %v996 = vmul.f32 %v995, 0.6931472
    %v997 = vlog2.pop %v940
    %v998 = vmul.f32 %v997, 0.6931472
    %v999 = vlog2.pop %v941
    %v1000 = vmul.f32 %v999, 0.6931472
    %v1001 = vlog2.pop %v942
    %v1002 = vmul.f32 %v1001, 0.6931472
    %v1003 = vlog2.pop %v943
    %v1004 = vmul.f32 %v1003, 0.6931472
    %v1005 = vlog2.pop %v944
    %v1006 = vmul.f32 %v1005, 0.6931472
    %v1007 = vlog2.pop %v945
    %v1008 = vmul.f32 %v1007, 0.6931472
    %v1009 = vlog2.pop %v946
    %v1010 = vmul.f32 %v1009, 0.6931472
    %v1011 = vrcp.pop 0.6931472
    %v1012 = vmul.f32 %v948, %v1011
    %v1013 = vmul.f32 %v950, %v1011
    %v1014 = vmul.f32 %v952, %v1011
    %v1015 = vmul.f32 %v954, %v1011
    %v1016 = vmul.f32 %v956, %v1011
    %v1017 = vmul.f32 %v958, %v1011
    %v1018 = vmul.f32 %v960, %v1011
    %v1019 = vmul.f32 %v962, %v1011
    %v1020 = vmul.f32 %v964, %v1011
    %v1021 = vmul.f32 %v966, %v1011
    %v1022 = vmul.f32 %v968, %v1011
    %v1023 = vmul.f32 %v970, %v1011
    %v1024 = vmul.f32 %v972, %v1011
    %v1025 = vmul.f32 %v974, %v1011
    %v1026 = vmul.f32 %v976, %v1011
    %v1027 = vmul.f32 %v978, %v1011
    %v1028 = vmul.f32 %v980, %v1011
    %v1029 = vmul.f32 %v982, %v1011
    %v1030 = vmul.f32 %v984, %v1011
    %v1031 = vmul.f32 %v986, %v1011
    %v1032 = vmul.f32 %v988, %v1011
    %v1033 = vmul.f32 %v990, %v1011
    %v1034 = vmul.f32 %v992, %v1011
    %v1035 = vmul.f32 %v994, %v1011
    %v1036 = vmul.f32 %v996, %v1011
    %v1037 = vmul.f32 %v998, %v1011
    %v1038 = vmul.f32 %v1000, %v1011
    %v1039 = vmul.f32 %v1002, %v1011
    %v1040 = vmul.f32 %v1004, %v1011
    %v1041 = vmul.f32 %v1006, %v1011
    %v1042 = vmul.f32 %v1008, %v1011
    %v1043 = vmul.f32 %v1010, %v1011
    %v1044 = vmul.f32 %v883, %v1012
    %v1045 = vmul.f32 %v884, %v1013
    %v1046 = vmul.f32 %v885, %v1014
    %v1047 = vmul.f32 %v886, %v1015
    %v1048 = vmul.f32 %v887, %v1016
    %v1049 = vmul.f32 %v888, %v1017
    %v1050 = vmul.f32 %v889, %v1018
    %v1051 = vmul.f32 %v890, %v1019
    %v1052 = vmul.f32 %v891, %v1020
    %v1053 = vmul.f32 %v892, %v1021
    %v1054 = vmul.f32 %v893, %v1022
    %v1055 = vmul.f32 %v894, %v1023
    %v1056 = vmul.f32 %v895, %v1024
    %v1057 = vmul.f32 %v896, %v1025
    %v1058 = vmul.f32 %v897, %v1026
    %v1059 = vmul.f32 %v898, %v1027
    %v1060 = vmul.f32 %v899, %v1028
    %v1061 = vmul.f32 %v900, %v1029
    %v1062 = vmul.f32 %v901, %v1030
    %v1063 = vmul.f32 %v902, %v1031
    %v1064 = vmul.f32 %v903, %v1032
    %v1065 = vmul.f32 %v904, %v1033
    %v1066 = vmul.f32 %v905, %v1034
    %v1067 = vmul.f32 %v906, %v1035
    %v1068 = vmul.f32 %v907, %v1036
    %v1069 = vmul.f32 %v908, %v1037
    %v1070 = vmul.f32 %v909, %v1038
    %v1071 = vmul.f32 %v910, %v1039
    %v1072 = vmul.f32 %v911, %v1040
    %v1073 = vmul.f32 %v912, %v1041
    %v1074 = vmul.f32 %v913, %v1042
    %v1075 = vmul.f32 %v914, %v1043
    %1077 = vset.pattern.permute.xlu0 0
    %1078 = vperm.xlu0 %1077, %v1044
    %v1079 = vpop.permute.xlu0 %1078
    %1082 = vset.pattern.permute.xlu0 0
    %1083 = vperm.xlu0 %1082, %v1045
    %v1084 = vpop.permute.xlu0 %1083
    %1087 = vset.pattern.permute.xlu0 0
    %1088 = vperm.xlu0 %1087, %v1046
    %v1089 = vpop.permute.xlu0 %1088
    %1092 = vset.pattern.permute.xlu0 0
    %1093 = vperm.xlu0 %1092, %v1047
    %v1094 = vpop.permute.xlu0 %1093
    %1097 = vset.pattern.permute.xlu0 0
    %1098 = vperm.xlu0 %1097, %v1048
    %v1099 = vpop.permute.xlu0 %1098
    %1102 = vset.pattern.permute.xlu0 0
    %1103 = vperm.xlu0 %1102, %v1049
    %v1104 = vpop.permute.xlu0 %1103
    %1107 = vset.pattern.permute.xlu0 0
    %1108 = vperm.xlu0 %1107, %v1050
    %v1109 = vpop.permute.xlu0 %1108
    %1112 = vset.pattern.permute.xlu0 0
    %1113 = vperm.xlu0 %1112, %v1051
    %v1114 = vpop.permute.xlu0 %1113
    %1117 = vset.pattern.permute.xlu0 0
    %1118 = vperm.xlu0 %1117, %v1052
    %v1119 = vpop.permute.xlu0 %1118
    %1122 = vset.pattern.permute.xlu0 0
    %1123 = vperm.xlu0 %1122, %v1053
    %v1124 = vpop.permute.xlu0 %1123
    %1127 = vset.pattern.permute.xlu0 0
    %1128 = vperm.xlu0 %1127, %v1054
    %v1129 = vpop.permute.xlu0 %1128
    %1132 = vset.pattern.permute.xlu0 0
    %1133 = vperm.xlu0 %1132, %v1055
    %v1134 = vpop.permute.xlu0 %1133
    %1137 = vset.pattern.permute.xlu0 0
    %1138 = vperm.xlu0 %1137, %v1056
    %v1139 = vpop.permute.xlu0 %1138
    %1142 = vset.pattern.permute.xlu0 0
    %1143 = vperm.xlu0 %1142, %v1057
    %v1144 = vpop.permute.xlu0 %1143
    %1147 = vset.pattern.permute.xlu0 0
    %1148 = vperm.xlu0 %1147, %v1058
    %v1149 = vpop.permute.xlu0 %1148
    %1152 = vset.pattern.permute.xlu0 0
    %1153 = vperm.xlu0 %1152, %v1059
    %v1154 = vpop.permute.xlu0 %1153
    %1157 = vset.pattern.permute.xlu0 0
    %1158 = vperm.xlu0 %1157, %v1060
    %v1159 = vpop.permute.xlu0 %1158
    %1162 = vset.pattern.permute.xlu0 0
    %1163 = vperm.xlu0 %1162, %v1061
    %v1164 = vpop.permute.xlu0 %1163
    %1167 = vset.pattern.permute.xlu0 0
    %1168 = vperm.xlu0 %1167, %v1062
    %v1169 = vpop.permute.xlu0 %1168
    %1172 = vset.pattern.permute.xlu0 0
    %1173 = vperm.xlu0 %1172, %v1063
    %v1174 = vpop.permute.xlu0 %1173
    %1177 = vset.pattern.permute.xlu0 0
    %1178 = vperm.xlu0 %1177, %v1064
    %v1179 = vpop.permute.xlu0 %1178
    %1182 = vset.pattern.permute.xlu0 0
    %1183 = vperm.xlu0 %1182, %v1065
    %v1184 = vpop.permute.xlu0 %1183
    %1187 = vset.pattern.permute.xlu0 0
    %1188 = vperm.xlu0 %1187, %v1066
    %v1189 = vpop.permute.xlu0 %1188
    %1192 = vset.pattern.permute.xlu0 0
    %1193 = vperm.xlu0 %1192, %v1067
    %v1194 = vpop.permute.xlu0 %1193
    %1197 = vset.pattern.permute.xlu0 0
    %1198 = vperm.xlu0 %1197, %v1068
    %v1199 = vpop.permute.xlu0 %1198
    %1202 = vset.pattern.permute.xlu0 0
    %1203 = vperm.xlu0 %1202, %v1069
    %v1204 = vpop.permute.xlu0 %1203
    %1207 = vset.pattern.permute.xlu0 0
    %1208 = vperm.xlu0 %1207, %v1070
    %v1209 = vpop.permute.xlu0 %1208
    %1212 = vset.pattern.permute.xlu0 0
    %1213 = vperm.xlu0 %1212, %v1071
    %v1214 = vpop.permute.xlu0 %1213
    %1217 = vset.pattern.permute.xlu0 0
    %1218 = vperm.xlu0 %1217, %v1072
    %v1219 = vpop.permute.xlu0 %1218
    %1222 = vset.pattern.permute.xlu0 0
    %1223 = vperm.xlu0 %1222, %v1073
    %v1224 = vpop.permute.xlu0 %1223
    %1227 = vset.pattern.permute.xlu0 0
    %1228 = vperm.xlu0 %1227, %v1074
    %v1229 = vpop.permute.xlu0 %1228
    %1232 = vset.pattern.permute.xlu0 0
    %1233 = vperm.xlu0 %1232, %v1075
    %v1234 = vpop.permute.xlu0 %1233
    %v1236 = vmul.f32 %v385, %v1079
    %v1237 = vmul.f32 %v386, %v1084
    %v1238 = vmul.f32 %v387, %v1089
    %v1239 = vmul.f32 %v388, %v1094
    %v1240 = vmul.f32 %v389, %v1099
    %v1241 = vmul.f32 %v390, %v1104
    %v1242 = vmul.f32 %v391, %v1109
    %v1243 = vmul.f32 %v392, %v1114
    %v1244 = vmul.f32 %v393, %v1119
    %v1245 = vmul.f32 %v394, %v1124
    %v1246 = vmul.f32 %v395, %v1129
    %v1247 = vmul.f32 %v396, %v1134
    %v1248 = vmul.f32 %v397, %v1139
    %v1249 = vmul.f32 %v398, %v1144
    %v1250 = vmul.f32 %v399, %v1149
    %v1251 = vmul.f32 %v400, %v1154
    %v1252 = vmul.f32 %v401, %v1159
    %v1253 = vmul.f32 %v402, %v1164
    %v1254 = vmul.f32 %v403, %v1169
    %v1255 = vmul.f32 %v404, %v1174
    %v1256 = vmul.f32 %v405, %v1179
    %v1257 = vmul.f32 %v406, %v1184
    %v1258 = vmul.f32 %v407, %v1189
    %v1259 = vmul.f32 %v408, %v1194
    %v1260 = vmul.f32 %v409, %v1199
    %v1261 = vmul.f32 %v410, %v1204
    %v1262 = vmul.f32 %v411, %v1209
    %v1263 = vmul.f32 %v412, %v1214
    %v1264 = vmul.f32 %v413, %v1219
    %v1265 = vmul.f32 %v414, %v1224
    %v1266 = vmul.f32 %v415, %v1229
    %v1267 = vmul.f32 %v416, %v1234
    %v1268 = vpack.c.bf16 %v1237, %v1236
    %v1269 = vpack.c.bf16 %v1239, %v1238
    %v1270 = vpack.c.bf16 %v1241, %v1240
    %v1271 = vpack.c.bf16 %v1243, %v1242
    %v1272 = vpack.c.bf16 %v1245, %v1244
    %v1273 = vpack.c.bf16 %v1247, %v1246
    %v1274 = vpack.c.bf16 %v1249, %v1248
    %v1275 = vpack.c.bf16 %v1251, %v1250
    %v1276 = vpack.c.bf16 %v1253, %v1252
    %v1277 = vpack.c.bf16 %v1255, %v1254
    %v1278 = vpack.c.bf16 %v1257, %v1256
    %v1279 = vpack.c.bf16 %v1259, %v1258
    %v1280 = vpack.c.bf16 %v1261, %v1260
    %v1281 = vpack.c.bf16 %v1263, %v1262
    %v1282 = vpack.c.bf16 %v1265, %v1264
    %v1283 = vpack.c.bf16 %v1267, %v1266
    %v1300 = vunpack.c.l.b16 %v1268
    %v1301 = vunpack.c.h.b16 %v1268
    %v1302 = vunpack.c.l.b16 %v1269
    %v1303 = vunpack.c.h.b16 %v1269
    %v1304 = vunpack.c.l.b16 %v1270
    %v1305 = vunpack.c.h.b16 %v1270
    %v1306 = vunpack.c.l.b16 %v1271
    %v1307 = vunpack.c.h.b16 %v1271
    %v1308 = vunpack.c.l.b16 %v1272
    %v1309 = vunpack.c.h.b16 %v1272
    %v1310 = vunpack.c.l.b16 %v1273
    %v1311 = vunpack.c.h.b16 %v1273
    %v1312 = vunpack.c.l.b16 %v1274
    %v1313 = vunpack.c.h.b16 %v1274
    %v1314 = vunpack.c.l.b16 %v1275
    %v1315 = vunpack.c.h.b16 %v1275
    %v1316 = vunpack.c.l.b16 %v1276
    %v1317 = vunpack.c.h.b16 %v1276
    %v1318 = vunpack.c.l.b16 %v1277
    %v1319 = vunpack.c.h.b16 %v1277
    %v1320 = vunpack.c.l.b16 %v1278
    %v1321 = vunpack.c.h.b16 %v1278
    %v1322 = vunpack.c.l.b16 %v1279
    %v1323 = vunpack.c.h.b16 %v1279
    %v1324 = vunpack.c.l.b16 %v1280
    %v1325 = vunpack.c.h.b16 %v1280
    %v1326 = vunpack.c.l.b16 %v1281
    %v1327 = vunpack.c.h.b16 %v1281
    %v1328 = vunpack.c.l.b16 %v1282
    %v1329 = vunpack.c.h.b16 %v1282
    %v1330 = vunpack.c.l.b16 %v1283
    %v1331 = vunpack.c.h.b16 %v1283
    %v1332 = vpack.c.b16 %v1300, %v1300
    %v1333 = vpack.c.b16 %v1301, %v1301
    %v1334 = vpack.c.b16 %v1302, %v1302
    %v1335 = vpack.c.b16 %v1303, %v1303
    %v1336 = vpack.c.b16 %v1304, %v1304
    %v1337 = vpack.c.b16 %v1305, %v1305
    %v1338 = vpack.c.b16 %v1306, %v1306
    %v1339 = vpack.c.b16 %v1307, %v1307
    %v1340 = vpack.c.b16 %v1308, %v1308
    %v1341 = vpack.c.b16 %v1309, %v1309
    %v1342 = vpack.c.b16 %v1310, %v1310
    %v1343 = vpack.c.b16 %v1311, %v1311
    %v1344 = vpack.c.b16 %v1312, %v1312
    %v1345 = vpack.c.b16 %v1313, %v1313
    %v1346 = vpack.c.b16 %v1314, %v1314
    %v1347 = vpack.c.b16 %v1315, %v1315
    %v1348 = vpack.c.b16 %v1316, %v1316
    %v1349 = vpack.c.b16 %v1317, %v1317
    %v1350 = vpack.c.b16 %v1318, %v1318
    %v1351 = vpack.c.b16 %v1319, %v1319
    %v1352 = vpack.c.b16 %v1320, %v1320
    %v1353 = vpack.c.b16 %v1321, %v1321
    %v1354 = vpack.c.b16 %v1322, %v1322
    %v1355 = vpack.c.b16 %v1323, %v1323
    %v1356 = vpack.c.b16 %v1324, %v1324
    %v1357 = vpack.c.b16 %v1325, %v1325
    %v1358 = vpack.c.b16 %v1326, %v1326
    %v1359 = vpack.c.b16 %v1327, %v1327
    %v1360 = vpack.c.b16 %v1328, %v1328
    %v1361 = vpack.c.b16 %v1329, %v1329
    %v1362 = vpack.c.b16 %v1330, %v1330
    %v1363 = vpack.c.b16 %v1331, %v1331
    %vm1396 = vcmask 125952
    %1397 = vst.msk [vmem:[%s7] sm:$0xf] %vm1396, %v1332
    %1398 = vst.msk [vmem:[%s7 + $0x4] sm:$0xf] %vm1396, %v1333
    %1399 = vst.msk [vmem:[%s7 + $0x8] sm:$0xf] %vm1396, %v1334
    %1400 = vst.msk [vmem:[%s7 + $0xc] sm:$0xf] %vm1396, %v1335
    %1401 = vst.msk [vmem:[%s7 + $0x10] sm:$0xf] %vm1396, %v1336
    %1402 = vst.msk [vmem:[%s7 + $0x14] sm:$0xf] %vm1396, %v1337
    %1403 = vst.msk [vmem:[%s7 + $0x18] sm:$0xf] %vm1396, %v1338
    %1404 = vst.msk [vmem:[%s7 + $0x1c] sm:$0xf] %vm1396, %v1339
    %1405 = vst.msk [vmem:[%s7 + $0x20] sm:$0xf] %vm1396, %v1340
    %1406 = vst.msk [vmem:[%s7 + $0x24] sm:$0xf] %vm1396, %v1341
    %1407 = vst.msk [vmem:[%s7 + $0x28] sm:$0xf] %vm1396, %v1342
    %1408 = vst.msk [vmem:[%s7 + $0x2c] sm:$0xf] %vm1396, %v1343
    %1409 = vst.msk [vmem:[%s7 + $0x30] sm:$0xf] %vm1396, %v1344
    %1410 = vst.msk [vmem:[%s7 + $0x34] sm:$0xf] %vm1396, %v1345
    %1411 = vst.msk [vmem:[%s7 + $0x38] sm:$0xf] %vm1396, %v1346
    %1412 = vst.msk [vmem:[%s7 + $0x3c] sm:$0xf] %vm1396, %v1347
    %1413 = vst.msk [vmem:[%s7 + $0x40] sm:$0xf] %vm1396, %v1348
    %1414 = vst.msk [vmem:[%s7 + $0x44] sm:$0xf] %vm1396, %v1349
    %1415 = vst.msk [vmem:[%s7 + $0x48] sm:$0xf] %vm1396, %v1350
    %1416 = vst.msk [vmem:[%s7 + $0x4c] sm:$0xf] %vm1396, %v1351
    %1417 = vst.msk [vmem:[%s7 + $0x50] sm:$0xf] %vm1396, %v1352
    %1418 = vst.msk [vmem:[%s7 + $0x54] sm:$0xf] %vm1396, %v1353
    %1419 = vst.msk [vmem:[%s7 + $0x58] sm:$0xf] %vm1396, %v1354
    %1420 = vst.msk [vmem:[%s7 + $0x5c] sm:$0xf] %vm1396, %v1355
    %1421 = vst.msk [vmem:[%s7 + $0x60] sm:$0xf] %vm1396, %v1356
    %1422 = vst.msk [vmem:[%s7 + $0x64] sm:$0xf] %vm1396, %v1357
    %1423 = vst.msk [vmem:[%s7 + $0x68] sm:$0xf] %vm1396, %v1358
    %1424 = vst.msk [vmem:[%s7 + $0x6c] sm:$0xf] %vm1396, %v1359
    %1425 = vst.msk [vmem:[%s7 + $0x70] sm:$0xf] %vm1396, %v1360
    %1426 = vst.msk [vmem:[%s7 + $0x74] sm:$0xf] %vm1396, %v1361
    %1427 = vst.msk [vmem:[%s7 + $0x78] sm:$0xf] %vm1396, %v1362
    %1428 = vst.msk [vmem:[%s7 + $0x7c] sm:$0xf] %vm1396, %v1363
    %v1429 = vld [vmem:[%s5] sm:$0xf]
    %v1430 = vld [vmem:[%s5 + $0x4] sm:$0xf]
    %v1431 = vld [vmem:[%s6] sm:$0x1]
    %v1433 = vlaneseq
    %v1434 = vshrl.u32 %v1433, 7
    %v1435 = vsub.s32 0, %v1434
    %v1436 = vrot.slane %v1431, %v1435
    %v1440 = vunpack.c.l.b16 %v1429
    %v1441 = vunpack.c.l.b16 %v1430
    %v1442 = vpack.c.b16 %v1441, %v1440
    %v1445 = vsel %vm448, %v1268, 0
    %v1448 = vsel %vm448, %v1269, 0
    %v1451 = vsel %vm448, %v1270, 0
    %v1454 = vsel %vm448, %v1271, 0
    %v1457 = vsel %vm448, %v1272, 0
    %v1460 = vsel %vm448, %v1273, 0
    %v1463 = vsel %vm448, %v1274, 0
    %v1466 = vsel %vm448, %v1275, 0
    %v1469 = vsel %vm448, %v1276, 0
    %v1472 = vsel %vm448, %v1277, 0
    %v1475 = vsel %vm448, %v1278, 0
    %v1478 = vsel %vm448, %v1279, 0
    %v1481 = vsel %vm448, %v1280, 0
    %v1484 = vsel %vm448, %v1281, 0
    %v1487 = vsel %vm448, %v1282, 0
    %v1490 = vsel %vm448, %v1283, 0
    %1492 = vmatprep.subr.bf16.mxu0 0
    %1493 = vmatpush1.bf16.msra.mxu0 %v1442
    %1494 = vmatprep.subr.bf16.mxu0 0
    %1495 = vmatpush1.bf16.msra.mxu0 0
    %1496 = vmatprep.subr.bf16.mxu0 0
    %1497 = vmatpush1.bf16.msra.mxu0 0
    %1498 = vmatprep.subr.bf16.mxu0 0
    %1499 = vmatpush1.bf16.msra.mxu0 0
    %1500 = vmatprep.subr.bf16.mxu0 0
    %1501 = vmatpush1.bf16.msra.mxu0 0
    %1502 = vmatprep.subr.bf16.mxu0 0
    %1503 = vmatpush1.bf16.msra.mxu0 0
    %1504 = vmatprep.subr.bf16.mxu0 0
    %1505 = vmatpush1.bf16.msra.mxu0 0
    %1506 = vmatprep.subr.bf16.mxu0 0
    %1507 = vmatpush1.bf16.msra.mxu0 0
    %1508 = vmatprep.subr.bf16.mxu0 0
    %1509 = vmatpush1.bf16.msra.mxu0 0
    %1510 = vmatprep.subr.bf16.mxu0 0
    %1511 = vmatpush1.bf16.msra.mxu0 0
    %1512 = vmatprep.subr.bf16.mxu0 0
    %1513 = vmatpush1.bf16.msra.mxu0 0
    %1514 = vmatprep.subr.bf16.mxu0 0
    %1515 = vmatpush1.bf16.msra.mxu0 0
    %1516 = vmatprep.subr.bf16.mxu0 0
    %1517 = vmatpush1.bf16.msra.mxu0 0
    %1518 = vmatprep.subr.bf16.mxu0 0
    %1519 = vmatpush1.bf16.msra.mxu0 0
    %1520 = vmatprep.subr.bf16.mxu0 0
    %1521 = vmatpush1.bf16.msra.mxu0 0
    %1522 = vmatprep.subr.bf16.mxu0 0
    %1523 = vmatpush1.bf16.msra.mxu0 0
    %1524 = vmatprep.mubr.bf16.mxu0 0
    %1525 = vmatmul.mubr.bf16.gmra.mrb[0].mxu0 %v1445
    %v1526 = vpop.f32.mrb[0].mxu0
    %v1527 = vadd.f32 %v1436, %v1526
    %v1528 = vpop.f32.mrb[0].mxu0
    %v1529 = vpop.f32.mrb[0].mxu0
    %v1530 = vadd.f32 %v1436, %v1529
    %v1531 = vpop.f32.mrb[0].mxu0
    %1532 = vmatprep.mubr.bf16.mxu0 0
    %1533 = vmatmul.mubr.bf16.gmra.mrb[0].mxu0 %v1448
    %v1534 = vpop.f32.mrb[0].mxu0
    %v1535 = vadd.f32 %v1436, %v1534
    %v1536 = vpop.f32.mrb[0].mxu0
    %v1537 = vpop.f32.mrb[0].mxu0
    %v1538 = vadd.f32 %v1436, %v1537
    %v1539 = vpop.f32.mrb[0].mxu0
    %1540 = vmatprep.mubr.bf16.mxu0 0
    %1541 = vmatmul.mubr.bf16.gmra.mrb[0].mxu0 %v1451
    %v1542 = vpop.f32.mrb[0].mxu0
    %v1543 = vadd.f32 %v1436, %v1542
    %v1544 = vpop.f32.mrb[0].mxu0
    %v1545 = vpop.f32.mrb[0].mxu0
    %v1546 = vadd.f32 %v1436, %v1545
    %v1547 = vpop.f32.mrb[0].mxu0
    %1548 = vmatprep.mubr.bf16.mxu0 0
    %1549 = vmatmul.mubr.bf16.gmra.mrb[0].mxu0 %v1454
    %v1550 = vpop.f32.mrb[0].mxu0
    %v1551 = vadd.f32 %v1436, %v1550
    %v1552 = vpop.f32.mrb[0].mxu0
    %v1553 = vpop.f32.mrb[0].mxu0
    %v1554 = vadd.f32 %v1436, %v1553
    %v1555 = vpop.f32.mrb[0].mxu0
    %1556 = vmatprep.mubr.bf16.mxu0 0
    %1557 = vmatmul.mubr.bf16.gmra.mrb[0].mxu0 %v1457
    %v1558 = vpop.f32.mrb[0].mxu0
    %v1559 = vadd.f32 %v1436, %v1558
    %v1560 = vpop.f32.mrb[0].mxu0
    %v1561 = vpop.f32.mrb[0].mxu0
    %v1562 = vadd.f32 %v1436, %v1561
    %v1563 = vpop.f32.mrb[0].mxu0
    %1564 = vmatprep.mubr.bf16.mxu0 0
    %1565 = vmatmul.mubr.bf16.gmra.mrb[0].mxu0 %v1460
    %v1566 = vpop.f32.mrb[0].mxu0
    %v1567 = vadd.f32 %v1436, %v1566
    %v1568 = vpop.f32.mrb[0].mxu0
    %v1569 = vpop.f32.mrb[0].mxu0
    %v1570 = vadd.f32 %v1436, %v1569
    %v1571 = vpop.f32.mrb[0].mxu0
    %1572 = vmatprep.mubr.bf16.mxu0 0
    %1573 = vmatmul.mubr.bf16.gmra.mrb[0].mxu0 %v1463
    %v1574 = vpop.f32.mrb[0].mxu0
    %v1575 = vadd.f32 %v1436, %v1574
    %v1576 = vpop.f32.mrb[0].mxu0
    %v1577 = vpop.f32.mrb[0].mxu0
    %v1578 = vadd.f32 %v1436, %v1577
    %v1579 = vpop.f32.mrb[0].mxu0
    %1580 = vmatprep.mubr.bf16.mxu0 0
    %1581 = vmatmul.mubr.bf16.gmra.mrb[0].mxu0 %v1466
    %v1582 = vpop.f32.mrb[0].mxu0
    %v1583 = vadd.f32 %v1436, %v1582
    %v1584 = vpop.f32.mrb[0].mxu0
    %v1585 = vpop.f32.mrb[0].mxu0
    %v1586 = vadd.f32 %v1436, %v1585
    %v1587 = vpop.f32.mrb[0].mxu0
    %1588 = vmatprep.mubr.bf16.mxu0 0
    %1589 = vmatmul.mubr.bf16.gmra.mrb[0].mxu0 %v1469
    %v1590 = vpop.f32.mrb[0].mxu0
    %v1591 = vadd.f32 %v1436, %v1590
    %v1592 = vpop.f32.mrb[0].mxu0
    %v1593 = vpop.f32.mrb[0].mxu0
    %v1594 = vadd.f32 %v1436, %v1593
    %v1595 = vpop.f32.mrb[0].mxu0
    %1596 = vmatprep.mubr.bf16.mxu0 0
    %1597 = vmatmul.mubr.bf16.gmra.mrb[0].mxu0 %v1472
    %v1598 = vpop.f32.mrb[0].mxu0
    %v1599 = vadd.f32 %v1436, %v1598
    %v1600 = vpop.f32.mrb[0].mxu0
    %v1601 = vpop.f32.mrb[0].mxu0
    %v1602 = vadd.f32 %v1436, %v1601
    %v1603 = vpop.f32.mrb[0].mxu0
    %1604 = vmatprep.mubr.bf16.mxu0 0
    %1605 = vmatmul.mubr.bf16.gmra.mrb[0].mxu0 %v1475
    %v1606 = vpop.f32.mrb[0].mxu0
    %v1607 = vadd.f32 %v1436, %v1606
    %v1608 = vpop.f32.mrb[0].mxu0
    %v1609 = vpop.f32.mrb[0].mxu0
    %v1610 = vadd.f32 %v1436, %v1609
    %v1611 = vpop.f32.mrb[0].mxu0
    %1612 = vmatprep.mubr.bf16.mxu0 0
    %1613 = vmatmul.mubr.bf16.gmra.mrb[0].mxu0 %v1478
    %v1614 = vpop.f32.mrb[0].mxu0
    %v1615 = vadd.f32 %v1436, %v1614
    %v1616 = vpop.f32.mrb[0].mxu0
    %v1617 = vpop.f32.mrb[0].mxu0
    %v1618 = vadd.f32 %v1436, %v1617
    %v1619 = vpop.f32.mrb[0].mxu0
    %1620 = vmatprep.mubr.bf16.mxu0 0
    %1621 = vmatmul.mubr.bf16.gmra.mrb[0].mxu0 %v1481
    %v1622 = vpop.f32.mrb[0].mxu0
    %v1623 = vadd.f32 %v1436, %v1622
    %v1624 = vpop.f32.mrb[0].mxu0
    %v1625 = vpop.f32.mrb[0].mxu0
    %v1626 = vadd.f32 %v1436, %v1625
    %v1627 = vpop.f32.mrb[0].mxu0
    %1628 = vmatprep.mubr.bf16.mxu0 0
    %1629 = vmatmul.mubr.bf16.gmra.mrb[0].mxu0 %v1484
    %v1630 = vpop.f32.mrb[0].mxu0
    %v1631 = vadd.f32 %v1436, %v1630
    %v1632 = vpop.f32.mrb[0].mxu0
    %v1633 = vpop.f32.mrb[0].mxu0
    %v1634 = vadd.f32 %v1436, %v1633
    %v1635 = vpop.f32.mrb[0].mxu0
    %1636 = vmatprep.mubr.bf16.mxu0 0
    %1637 = vmatmul.mubr.bf16.gmra.mrb[0].mxu0 %v1487
    %v1638 = vpop.f32.mrb[0].mxu0
    %v1639 = vadd.f32 %v1436, %v1638
    %v1640 = vpop.f32.mrb[0].mxu0
    %v1641 = vpop.f32.mrb[0].mxu0
    %v1642 = vadd.f32 %v1436, %v1641
    %v1643 = vpop.f32.mrb[0].mxu0
    %1644 = vmatprep.mubr.bf16.mxu0 0
    %1645 = vmatmul.mubr.bf16.gmra.mrb[0].mxu0 %v1490
    %v1646 = vpop.f32.mrb[0].mxu0
    %v1647 = vadd.f32 %v1436, %v1646
    %v1648 = vpop.f32.mrb[0].mxu0
    %v1649 = vpop.f32.mrb[0].mxu0
    %v1650 = vadd.f32 %v1436, %v1649
    %v1651 = vpop.f32.mrb[0].mxu0
    %1652 = vdwg.mxu0
    %v1653 = vmax.f32 %v1527, 0.0
    %v1654 = vmax.f32 %v1530, 0.0
    %v1655 = vmax.f32 %v1535, 0.0
    %v1656 = vmax.f32 %v1538, 0.0
    %v1657 = vmax.f32 %v1543, 0.0
    %v1658 = vmax.f32 %v1546, 0.0
    %v1659 = vmax.f32 %v1551, 0.0
    %v1660 = vmax.f32 %v1554, 0.0
    %v1661 = vmax.f32 %v1559, 0.0
    %v1662 = vmax.f32 %v1562, 0.0
    %v1663 = vmax.f32 %v1567, 0.0
    %v1664 = vmax.f32 %v1570, 0.0
    %v1665 = vmax.f32 %v1575, 0.0
    %v1666 = vmax.f32 %v1578, 0.0
    %v1667 = vmax.f32 %v1583, 0.0
    %v1668 = vmax.f32 %v1586, 0.0
    %v1669 = vmax.f32 %v1591, 0.0
    %v1670 = vmax.f32 %v1594, 0.0
    %v1671 = vmax.f32 %v1599, 0.0
    %v1672 = vmax.f32 %v1602, 0.0
    %v1673 = vmax.f32 %v1607, 0.0
    %v1674 = vmax.f32 %v1610, 0.0
    %v1675 = vmax.f32 %v1615, 0.0
    %v1676 = vmax.f32 %v1618, 0.0
    %v1677 = vmax.f32 %v1623, 0.0
    %v1678 = vmax.f32 %v1626, 0.0
    %v1679 = vmax.f32 %v1631, 0.0
    %v1680 = vmax.f32 %v1634, 0.0
    %v1681 = vmax.f32 %v1639, 0.0
    %v1682 = vmax.f32 %v1642, 0.0
    %v1683 = vmax.f32 %v1647, 0.0
    %v1684 = vmax.f32 %v1650, 0.0
    %v1685 = vadd.f32 %v1653, %v1654
    %v1686 = vadd.f32 %v1685, %v1655
    %v1687 = vadd.f32 %v1686, %v1656
    %v1688 = vadd.f32 %v1687, %v1657
    %v1689 = vadd.f32 %v1688, %v1658
    %v1690 = vadd.f32 %v1689, %v1659
    %v1691 = vadd.f32 %v1690, %v1660
    %v1692 = vadd.f32 %v1691, %v1661
    %v1693 = vadd.f32 %v1692, %v1662
    %v1694 = vadd.f32 %v1693, %v1663
    %v1695 = vadd.f32 %v1694, %v1664
    %v1696 = vadd.f32 %v1695, %v1665
    %v1697 = vadd.f32 %v1696, %v1666
    %v1698 = vadd.f32 %v1697, %v1667
    %v1699 = vadd.f32 %v1698, %v1668
    %v1700 = vadd.f32 %v1699, %v1669
    %v1701 = vadd.f32 %v1700, %v1670
    %v1702 = vadd.f32 %v1701, %v1671
    %v1703 = vadd.f32 %v1702, %v1672
    %v1704 = vadd.f32 %v1703, %v1673
    %v1705 = vadd.f32 %v1704, %v1674
    %v1706 = vadd.f32 %v1705, %v1675
    %v1707 = vadd.f32 %v1706, %v1676
    %v1708 = vadd.f32 %v1707, %v1677
    %v1709 = vadd.f32 %v1708, %v1678
    %v1710 = vadd.f32 %v1709, %v1679
    %v1711 = vadd.f32 %v1710, %v1680
    %v1712 = vadd.f32 %v1711, %v1681
    %v1713 = vadd.f32 %v1712, %v1682
    %v1714 = vadd.f32 %v1713, %v1683
    %v1715 = vadd.f32 %v1714, %v1684
    %v1716 = vrot.slane %v1715, 4
    %v1717 = vadd.f32 %v1715, %v1716
    %v1718 = vrot.slane %v1717, 2
    %v1719 = vadd.f32 %v1717, %v1718
    %v1720 = vrot.slane %v1719, 1
    %v1721 = vadd.f32 %v1719, %v1720
    %v1722 = vrcp.pop 256.0
    %v1723 = vmul.f32 %v1721, %v1722
    %1724 = vmax.xlane.f32.xlu0 %v1723
    %v1725 = vpop.xlane.xlu0 %1724
    %v1726 = vsub.f32 %v1723, %v1725
    %v1727 = vmul.f32 %v1726, 1.442695
    %v1728 = vpow.pop %v1727
    %1729 = vadd.xlane.f32.xlu0 %v1728
    %v1730 = vpop.xlane.xlu0 %1729
    %v1731 = vrcp.pop %v1730
    %v1732 = vmul.f32 %v1728, %v1731
    %1733 = vst [vmem:[#allocation3] sm:$0x1] %v1732
    %v1734 = vsub.f32 0.0, %v1732
    %v1735 = vadd.f32 %v1732, 1e-30
    %v1736 = vlog2.pop %v1735
    %v1737 = vmul.f32 %v1736, 0.6931472
    %v1738 = vmul.f32 %v1737, %v1011
    %v1739 = vmul.f32 %v1734, %v1738
    %v1740 = vrcp.pop 7.0
    %v1741 = vmul.f32 %v1739, %v1740
    %v1742 = vmul.f32 %v1723, %v1741
    %1743 = vst [vmem:[%s9] sm:$0x1] %v1742
    // Predicated region
    $region30: #{faster_rcnn_meaa_forward.5} parent=1 // pred_check
      _
    $region31: #{faster_rcnn_meaa_forward.5} parent=1 // pred_check_branch
      %1745 = sbr.rel (0) target = $region33
    $region32: #{faster_rcnn_meaa_forward.5} parent=1 // pred_region
      _
    $region33: #{faster_rcnn_meaa_forward.5} parent=1 // pred_fallthru
      _
    // Predicated region
    $region34: #{faster_rcnn_meaa_forward.5} parent=1 // pred_check
      _
    $region35: #{faster_rcnn_meaa_forward.5} parent=1 // pred_check_branch
      %1747 = sbr.rel (0) target = $region37
    $region36: #{faster_rcnn_meaa_forward.5} parent=1 // pred_region
      _
    $region37: #{faster_rcnn_meaa_forward.5} parent=1 // pred_fallthru
      _
    // Predicated region
    $region38: #{faster_rcnn_meaa_forward.5} parent=1 // pred_check
      _
    $region39: #{faster_rcnn_meaa_forward.5} parent=1 // pred_check_branch
      %1749 = sbr.rel (0) target = $region41
    $region40: #{faster_rcnn_meaa_forward.5} parent=1 // pred_region
      _
    $region41: #{faster_rcnn_meaa_forward.5} parent=1 // pred_fallthru
      _
    // Predicated region
    $region42: #{faster_rcnn_meaa_forward.5} parent=1 // pred_check
      _
    $region43: #{faster_rcnn_meaa_forward.5} parent=1 // pred_check_branch
      %1751 = sbr.rel (0) target = $region45
    $region44: #{faster_rcnn_meaa_forward.5} parent=1 // pred_region
      %s1753 = ssub.s32 16, 16
      %1754 = vsyncadd [#allocation4], %s1753
      %s1756 = sshll.u32 [#allocation3], 4
      %s1757 = int_to_ptr.vmem [resolvable:$true] %s1756
      %1759 = dma.vmem_to_hbm [thread:$0]  %s1757, 16, %s10, [#allocation4]
    $region45: #{faster_rcnn_meaa_forward.5} parent=1 // pred_fallthru
      _
    // Predicated region
    $region46: #{faster_rcnn_meaa_forward.5} parent=1 // pred_check
      _
    $region47: #{faster_rcnn_meaa_forward.5} parent=1 // pred_check_branch
      %1761 = sbr.rel (0) target = $region49
    $region48: #{faster_rcnn_meaa_forward.5} parent=1 // pred_region
      _
    $region49: #{faster_rcnn_meaa_forward.5} parent=1 // pred_fallthru
      _
    // Predicated region
    $region50: #{faster_rcnn_meaa_forward.5} parent=1 // pred_check
      _
    $region51: #{faster_rcnn_meaa_forward.5} parent=1 // pred_check_branch
      %1763 = sbr.rel (0) target = $region53
    $region52: #{faster_rcnn_meaa_forward.5} parent=1 // pred_region
      _
    $region53: #{faster_rcnn_meaa_forward.5} parent=1 // pred_fallthru
      _
    // Predicated region
    $region54: #{faster_rcnn_meaa_forward.5} parent=1 // pred_check
      _
    $region55: #{faster_rcnn_meaa_forward.5} parent=1 // pred_check_branch
      %1765 = sbr.rel (0) target = $region57
    $region56: #{faster_rcnn_meaa_forward.5} parent=1 // pred_region
      _
    $region57: #{faster_rcnn_meaa_forward.5} parent=1 // pred_fallthru
      _
    // Predicated region
    $region58: #{faster_rcnn_meaa_forward.5} parent=1 // pred_check
      _
    $region59: #{faster_rcnn_meaa_forward.5} parent=1 // pred_check_branch
      %1767 = sbr.rel (0) target = $region61
    $region60: #{faster_rcnn_meaa_forward.5} parent=1 // pred_region
      %1768 = dma.done [#allocation4], 16
    $region61: #{faster_rcnn_meaa_forward.5} parent=1 // pred_fallthru
      _
    %1769 = vsyncpa [#allocation4], 1

// kernel: faster_rcnn_meaa_forward.6
$region0: #{faster_rcnn_meaa_forward.6}
  #allocation0 [shape = 'u32[]', space=smem, size = 0x4, offset = 0x4, fixed_abs, tag = 'smem constant byte address 0x4 - core index']
  #allocation1 [shape = 'u32[144,128]{1,0:T(1,128)}', space=vmem, size = 0x12000, scoped, tag = 'internal scratch']
  #allocation2 [shape = 'f32[1,1]{1,0:T(1,128)S(1)}', space=vmem, size = 0x200, scoped, tag = 'scoped memory for faster_rcnn_meaa_forward.6']
  %s0 = inlined_call_operand.vmem [shape: bf16[64,144], index: 0, kind: input, shape index: {}]
  %s1 = inlined_call_operand.vmem [shape: bf16[144,32], index: 1, kind: input, shape index: {}]
  %s2 = inlined_call_operand.vmem [shape: f32[1,32], index: 2, kind: input, shape index: {}]
  %s3 = inlined_call_operand.vmem [shape: bf16[32,1], index: 3, kind: input, shape index: {}]
  %s4 = inlined_call_operand.<no memory space> [shape: f32[1,1], index: 4, kind: input, shape index: {}]
  %s5 = inlined_call_operand.vmem [shape: bf16[32,128], index: 5, kind: input, shape index: {}]
  %s6 = inlined_call_operand.vmem [shape: f32[1,128], index: 6, kind: input, shape index: {}]
  %s7 = inlined_call_operand.vmem [shape: bf16[128,2], index: 7, kind: input, shape index: {}]
  %s8 = inlined_call_operand.vmem [shape: f32[1,2], index: 8, kind: input, shape index: {}]
  %s9 = inlined_call_operand.vmem [shape: bf16[64,32], index: 9, kind: output, shape index: {0}]
  %s10 = inlined_call_operand.vmem [shape: f32[64,1], index: 10, kind: output, shape index: {1}]
  %s11 = inlined_call_operand.vmem [shape: f32[1,128], index: 11, kind: output, shape index: {2}]
  %s12 = inlined_call_operand.hbm [shape: f32[1,2], index: 12, kind: output, shape index: {3}]
  %13 = xla_tuple %s9, %s10, %s11, %s12
  %s14 = sld [smem:[#allocation0]]
  $region70: #{faster_rcnn_meaa_forward.6} parent=0
    _
  %s16 = ssub.s32 1, %s14
  %s17 = scalar_select 0, %s16, %s14
  %v18 = vstv %s4
  %19 = vst [vmem:[#allocation2] sm:$0x1] %v18
  $region1: #{faster_rcnn_meaa_forward.6} parent=0
    #allocation3 [shape = 'u8[512]{0}', space=vmem, size = 0x400, scoped, tag = 'output window, operand 3, single buffered']
    #allocation4 [shape = 's32[1]{0}', space=sflag, size = 0x4, scoped, tag = 'scoped memory for faster_rcnn_meaa_forward.6']
    %20 = vsyncpa [#allocation4], 0
    // Predicated region
    $region2: #{faster_rcnn_meaa_forward.6} parent=1 // pred_check
      _
    $region3: #{faster_rcnn_meaa_forward.6} parent=1 // pred_check_branch
      %22 = sbr.rel (0) target = $region5
    $region4: #{faster_rcnn_meaa_forward.6} parent=1 // pred_region
      _
    $region5: #{faster_rcnn_meaa_forward.6} parent=1 // pred_fallthru
      _
    // Predicated region
    $region6: #{faster_rcnn_meaa_forward.6} parent=1 // pred_check
      _
    $region7: #{faster_rcnn_meaa_forward.6} parent=1 // pred_check_branch
      %24 = sbr.rel (0) target = $region9
    $region8: #{faster_rcnn_meaa_forward.6} parent=1 // pred_region
      _
    $region9: #{faster_rcnn_meaa_forward.6} parent=1 // pred_fallthru
      _
    // Predicated region
    $region10: #{faster_rcnn_meaa_forward.6} parent=1 // pred_check
      _
    $region11: #{faster_rcnn_meaa_forward.6} parent=1 // pred_check_branch
      %26 = sbr.rel (0) target = $region13
    $region12: #{faster_rcnn_meaa_forward.6} parent=1 // pred_region
      _
    $region13: #{faster_rcnn_meaa_forward.6} parent=1 // pred_fallthru
      _
    // Predicated region
    $region14: #{faster_rcnn_meaa_forward.6} parent=1 // pred_check
      _
    $region15: #{faster_rcnn_meaa_forward.6} parent=1 // pred_check_branch
      %28 = sbr.rel (0) target = $region17
    $region16: #{faster_rcnn_meaa_forward.6} parent=1 // pred_region
      _
    $region17: #{faster_rcnn_meaa_forward.6} parent=1 // pred_fallthru
      _
    // Predicated region
    $region18: #{faster_rcnn_meaa_forward.6} parent=1 // pred_check
      _
    $region19: #{faster_rcnn_meaa_forward.6} parent=1 // pred_check_branch
      %30 = sbr.rel (0) target = $region21
    $region20: #{faster_rcnn_meaa_forward.6} parent=1 // pred_region
      _
    $region21: #{faster_rcnn_meaa_forward.6} parent=1 // pred_fallthru
      _
    // Predicated region
    $region22: #{faster_rcnn_meaa_forward.6} parent=1 // pred_check
      _
    $region23: #{faster_rcnn_meaa_forward.6} parent=1 // pred_check_branch
      %32 = sbr.rel (0) target = $region25
    $region24: #{faster_rcnn_meaa_forward.6} parent=1 // pred_region
      _
    $region25: #{faster_rcnn_meaa_forward.6} parent=1 // pred_fallthru
      _
    // Predicated region
    $region26: #{faster_rcnn_meaa_forward.6} parent=1 // pred_check
      _
    $region27: #{faster_rcnn_meaa_forward.6} parent=1 // pred_check_branch
      %34 = sbr.rel (0) target = $region29
    $region28: #{faster_rcnn_meaa_forward.6} parent=1 // pred_region
      _
    $region29: #{faster_rcnn_meaa_forward.6} parent=1 // pred_fallthru
      _
    // Predicated region
    $region30: #{faster_rcnn_meaa_forward.6} parent=1 // pred_check
      _
    $region31: #{faster_rcnn_meaa_forward.6} parent=1 // pred_check_branch
      %36 = sbr.rel (0) target = $region33
    $region32: #{faster_rcnn_meaa_forward.6} parent=1 // pred_region
      _
    $region33: #{faster_rcnn_meaa_forward.6} parent=1 // pred_fallthru
      _
    // Predicated region
    $region34: #{faster_rcnn_meaa_forward.6} parent=1 // pred_check
      _
    $region35: #{faster_rcnn_meaa_forward.6} parent=1 // pred_check_branch
      %38 = sbr.rel (0) target = $region37
    $region36: #{faster_rcnn_meaa_forward.6} parent=1 // pred_region
      _
    $region37: #{faster_rcnn_meaa_forward.6} parent=1 // pred_fallthru
      _
    %v40 = vld [vmem:[%s0] sm:$0xff]
    %v41 = vld [vmem:[%s0 + $0x8] sm:$0xff]
    %v42 = vld [vmem:[%s0 + $0x10] sm:$0xff]
    %v43 = vld [vmem:[%s0 + $0x18] sm:$0xff]
    %v44 = vld [vmem:[%s0 + $0x20] sm:$0xff]
    %v45 = vld [vmem:[%s0 + $0x28] sm:$0xff]
    %v46 = vld [vmem:[%s0 + $0x30] sm:$0xff]
    %v47 = vld [vmem:[%s0 + $0x38] sm:$0xff]
    %v48 = vld [vmem:[%s1] sm:$0xf]
    %v49 = vld [vmem:[%s1 + $0x4] sm:$0xf]
    %v50 = vld [vmem:[%s1 + $0x8] sm:$0xf]
    %v51 = vld [vmem:[%s1 + $0xc] sm:$0xf]
    %v52 = vld [vmem:[%s1 + $0x10] sm:$0xf]
    %v53 = vld [vmem:[%s1 + $0x14] sm:$0xf]
    %v54 = vld [vmem:[%s1 + $0x18] sm:$0xf]
    %v55 = vld [vmem:[%s1 + $0x1c] sm:$0xf]
    %v56 = vld [vmem:[%s1 + $0x20] sm:$0xf]
    %v57 = vld [vmem:[%s1 + $0x24] sm:$0xf]
    %v58 = vld [vmem:[%s1 + $0x28] sm:$0xf]
    %v59 = vld [vmem:[%s1 + $0x2c] sm:$0xf]
    %v60 = vld [vmem:[%s1 + $0x30] sm:$0xf]
    %v61 = vld [vmem:[%s1 + $0x34] sm:$0xf]
    %v62 = vld [vmem:[%s1 + $0x38] sm:$0xf]
    %v63 = vld [vmem:[%s1 + $0x3c] sm:$0xf]
    %v64 = vld [vmem:[%s1 + $0x40] sm:$0xf]
    %v65 = vld [vmem:[%s1 + $0x44] sm:$0xf]
    %v66 = vld [vmem:[%s2] sm:$0x1]
    %v68 = vlaneseq
    %v69 = vshrl.u32 %v68, 7
    %v70 = vsub.s32 0, %v69
    %v71 = vrot.slane %v66, %v70
    %v81 = vunpack.c.l.b16 %v40
    %v82 = vunpack.c.h.b16 %v40
    %v83 = vunpack.c.l.b16 %v41
    %v84 = vunpack.c.h.b16 %v41
    %v85 = vunpack.c.l.b16 %v42
    %v86 = vunpack.c.h.b16 %v42
    %v87 = vunpack.c.l.b16 %v43
    %v88 = vunpack.c.h.b16 %v43
    %v89 = vunpack.c.l.b16 %v44
    %v90 = vunpack.c.h.b16 %v44
    %v91 = vunpack.c.l.b16 %v45
    %v92 = vunpack.c.h.b16 %v45
    %v93 = vunpack.c.l.b16 %v46
    %v94 = vunpack.c.h.b16 %v46
    %v95 = vunpack.c.l.b16 %v47
    %v96 = vunpack.c.h.b16 %v47
    %v97 = vpack.c.b16 %v83, %v81
    %v98 = vpack.c.b16 %v84, %v82
    %v99 = vpack.c.b16 %v87, %v85
    %v100 = vpack.c.b16 %v88, %v86
    %v101 = vpack.c.b16 %v91, %v89
    %v102 = vpack.c.b16 %v92, %v90
    %v103 = vpack.c.b16 %v95, %v93
    %v104 = vpack.c.b16 %v96, %v94
    %v127 = vunpack.c.l.b16 %v48
    %v128 = vunpack.c.l.b16 %v49
    %v129 = vunpack.c.l.b16 %v50
    %v130 = vunpack.c.l.b16 %v51
    %v131 = vunpack.c.l.b16 %v52
    %v132 = vunpack.c.l.b16 %v53
    %v133 = vunpack.c.l.b16 %v54
    %v134 = vunpack.c.l.b16 %v55
    %v135 = vunpack.c.l.b16 %v56
    %v136 = vunpack.c.l.b16 %v57
    %v137 = vunpack.c.l.b16 %v58
    %v138 = vunpack.c.l.b16 %v59
    %v139 = vunpack.c.l.b16 %v60
    %v140 = vunpack.c.l.b16 %v61
    %v141 = vunpack.c.l.b16 %v62
    %v142 = vunpack.c.l.b16 %v63
    %v143 = vunpack.c.l.b16 %v64
    %v144 = vunpack.c.l.b16 %v65
    %v145 = vpack.c.b16 %v128, %v127
    %v146 = vpack.c.b16 %v130, %v129
    %v147 = vpack.c.b16 %v132, %v131
    %v148 = vpack.c.b16 %v134, %v133
    %v149 = vpack.c.b16 %v136, %v135
    %v150 = vpack.c.b16 %v138, %v137
    %v151 = vpack.c.b16 %v140, %v139
    %v152 = vpack.c.b16 %v142, %v141
    %v153 = vpack.c.b16 %v144, %v143
    %vm163 = vcmask 130048
    %v165 = vsel %vm163, %v98, 0
    %v168 = vsel %vm163, %v100, 0
    %v171 = vsel %vm163, %v102, 0
    %v174 = vsel %vm163, %v104, 0
    %176 = vmatprep.subr.bf16.mxu0 0
    %177 = vmatpush1.bf16.msra.mxu0 %v145
    %178 = vmatprep.subr.bf16.mxu0 0
    %179 = vmatpush1.bf16.msra.mxu0 %v146
    %180 = vmatprep.subr.bf16.mxu0 0
    %181 = vmatpush1.bf16.msra.mxu0 %v147
    %182 = vmatprep.subr.bf16.mxu0 0
    %183 = vmatpush1.bf16.msra.mxu0 %v148
    %184 = vmatprep.subr.bf16.mxu0 0
    %185 = vmatpush1.bf16.msra.mxu0 %v149
    %186 = vmatprep.subr.bf16.mxu0 0
    %187 = vmatpush1.bf16.msra.mxu0 %v150
    %188 = vmatprep.subr.bf16.mxu0 0
    %189 = vmatpush1.bf16.msra.mxu0 %v151
    %190 = vmatprep.subr.bf16.mxu0 0
    %191 = vmatpush1.bf16.msra.mxu0 %v152
    %192 = vmatprep.subr.bf16.mxu0 0
    %193 = vmatpush1.bf16.msra.mxu0 %v153
    %194 = vmatprep.subr.bf16.mxu0 0
    %195 = vmatpush1.bf16.msra.mxu0 0
    %196 = vmatprep.subr.bf16.mxu0 0
    %197 = vmatpush1.bf16.msra.mxu0 0
    %198 = vmatprep.subr.bf16.mxu0 0
    %199 = vmatpush1.bf16.msra.mxu0 0
    %200 = vmatprep.subr.bf16.mxu0 0
    %201 = vmatpush1.bf16.msra.mxu0 0
    %202 = vmatprep.subr.bf16.mxu0 0
    %203 = vmatpush1.bf16.msra.mxu0 0
    %204 = vmatprep.subr.bf16.mxu0 0
    %205 = vmatpush1.bf16.msra.mxu0 0
    %206 = vmatprep.subr.bf16.mxu0 0
    %207 = vmatpush1.bf16.msra.mxu0 0
    %208 = vmatprep.mubr.bf16.mxu0 %v165
    %209 = vmatmul.mubr.bf16.gmra.mrb[0].mxu0 %v97
    %v210 = vpop.f32.mrb[0].mxu0
    %v211 = vadd.f32 %v71, %v210
    %v212 = vpop.f32.mrb[0].mxu0
    %v213 = vpop.f32.mrb[0].mxu0
    %v214 = vadd.f32 %v71, %v213
    %v215 = vpop.f32.mrb[0].mxu0
    %216 = vmatprep.mubr.bf16.mxu0 %v168
    %217 = vmatmul.mubr.bf16.gmra.mrb[0].mxu0 %v99
    %v218 = vpop.f32.mrb[0].mxu0
    %v219 = vadd.f32 %v71, %v218
    %v220 = vpop.f32.mrb[0].mxu0
    %v221 = vpop.f32.mrb[0].mxu0
    %v222 = vadd.f32 %v71, %v221
    %v223 = vpop.f32.mrb[0].mxu0
    %224 = vmatprep.mubr.bf16.mxu0 %v171
    %225 = vmatmul.mubr.bf16.gmra.mrb[0].mxu0 %v101
    %v226 = vpop.f32.mrb[0].mxu0
    %v227 = vadd.f32 %v71, %v226
    %v228 = vpop.f32.mrb[0].mxu0
    %v229 = vpop.f32.mrb[0].mxu0
    %v230 = vadd.f32 %v71, %v229
    %v231 = vpop.f32.mrb[0].mxu0
    %232 = vmatprep.mubr.bf16.mxu0 %v174
    %233 = vmatmul.mubr.bf16.gmra.mrb[0].mxu0 %v103
    %v234 = vpop.f32.mrb[0].mxu0
    %v235 = vadd.f32 %v71, %v234
    %v236 = vpop.f32.mrb[0].mxu0
    %v237 = vpop.f32.mrb[0].mxu0
    %v238 = vadd.f32 %v71, %v237
    %v239 = vpop.f32.mrb[0].mxu0
    %240 = vdwg.mxu0
    %v241 = vmax.f32 %v211, 0.0
    %v242 = vmax.f32 %v214, 0.0
    %v243 = vmax.f32 %v219, 0.0
    %v244 = vmax.f32 %v222, 0.0
    %v245 = vmax.f32 %v227, 0.0
    %v246 = vmax.f32 %v230, 0.0
    %v247 = vmax.f32 %v235, 0.0
    %v248 = vmax.f32 %v238, 0.0
    %v249 = vpack.c.bf16 %v242, %v241
    %v250 = vpack.c.bf16 %v244, %v243
    %v251 = vpack.c.bf16 %v246, %v245
    %v252 = vpack.c.bf16 %v248, %v247
    %v257 = vunpack.c.l.b16 %v249
    %v258 = vunpack.c.h.b16 %v249
    %v259 = vunpack.c.l.b16 %v250
    %v260 = vunpack.c.h.b16 %v250
    %v261 = vunpack.c.l.b16 %v251
    %v262 = vunpack.c.h.b16 %v251
    %v263 = vunpack.c.l.b16 %v252
    %v264 = vunpack.c.h.b16 %v252
    %v265 = vpack.c.b16 %v257, %v257
    %v266 = vpack.c.b16 %v258, %v258
    %v267 = vpack.c.b16 %v259, %v259
    %v268 = vpack.c.b16 %v260, %v260
    %v269 = vpack.c.b16 %v261, %v261
    %v270 = vpack.c.b16 %v262, %v262
    %v271 = vpack.c.b16 %v263, %v263
    %v272 = vpack.c.b16 %v264, %v264
    %vm281 = vcmask 257024
    %282 = vst.msk [vmem:[%s9] sm:$0xf] %vm281, %v265
    %283 = vst.msk [vmem:[%s9 + $0x4] sm:$0xf] %vm281, %v266
    %284 = vst.msk [vmem:[%s9 + $0x8] sm:$0xf] %vm281, %v267
    %285 = vst.msk [vmem:[%s9 + $0xc] sm:$0xf] %vm281, %v268
    %286 = vst.msk [vmem:[%s9 + $0x10] sm:$0xf] %vm281, %v269
    %287 = vst.msk [vmem:[%s9 + $0x14] sm:$0xf] %vm281, %v270
    %288 = vst.msk [vmem:[%s9 + $0x18] sm:$0xf] %vm281, %v271
    %289 = vst.msk [vmem:[%s9 + $0x1c] sm:$0xf] %vm281, %v272
    %v290 = vld [vmem:[%s3] sm:$0xf]
    %v291 = vld [vmem:[%s3 + $0x4] sm:$0xf]
    %v292 = vld [vmem:[%s3 + $0x8] sm:$0xf]
    %v293 = vld [vmem:[%s3 + $0xc] sm:$0xf]
    %v294 = vld [vmem:[#allocation2] sm:$0x1]
    %v296 = vlaneseq
    %v297 = vshrl.u32 %v296, 7
    %v298 = vsub.s32 0, %v297
    %v299 = vrot.slane %v294, %v298
    %v305 = vunpack.c.l.b16 %v290
    %v306 = vunpack.c.l.b16 %v291
    %v307 = vunpack.c.l.b16 %v292
    %v308 = vunpack.c.l.b16 %v293
    %v309 = vpack.c.b16 %v306, %v305
    %v310 = vpack.c.b16 %v308, %v307
    %vm313 = vcmask 261120
    %v315 = vsel %vm313, %v249, 0
    %v318 = vsel %vm313, %v250, 0
    %v321 = vsel %vm313, %v251, 0
    %v324 = vsel %vm313, %v252, 0
    %326 = vmatprep.subr.bf16.mxu0 0
    %327 = vmatpush1.bf16.msra.mxu0 %v309
    %328 = vmatprep.subr.bf16.mxu0 0
    %329 = vmatpush1.bf16.msra.mxu0 %v310
    %330 = vmatprep.subr.bf16.mxu0 0
    %331 = vmatpush1.bf16.msra.mxu0 0
    %332 = vmatprep.subr.bf16.mxu0 0
    %333 = vmatpush1.bf16.msra.mxu0 0
    %334 = vmatprep.subr.bf16.mxu0 0
    %335 = vmatpush1.bf16.msra.mxu0 0
    %336 = vmatprep.subr.bf16.mxu0 0
    %337 = vmatpush1.bf16.msra.mxu0 0
    %338 = vmatprep.subr.bf16.mxu0 0
    %339 = vmatpush1.bf16.msra.mxu0 0
    %340 = vmatprep.subr.bf16.mxu0 0
    %341 = vmatpush1.bf16.msra.mxu0 0
    %342 = vmatprep.subr.bf16.mxu0 0
    %343 = vmatpush1.bf16.msra.mxu0 0
    %344 = vmatprep.subr.bf16.mxu0 0
    %345 = vmatpush1.bf16.msra.mxu0 0
    %346 = vmatprep.subr.bf16.mxu0 0
    %347 = vmatpush1.bf16.msra.mxu0 0
    %348 = vmatprep.subr.bf16.mxu0 0
    %349 = vmatpush1.bf16.msra.mxu0 0
    %350 = vmatprep.subr.bf16.mxu0 0
    %351 = vmatpush1.bf16.msra.mxu0 0
    %352 = vmatprep.subr.bf16.mxu0 0
    %353 = vmatpush1.bf16.msra.mxu0 0
    %354 = vmatprep.subr.bf16.mxu0 0
    %355 = vmatpush1.bf16.msra.mxu0 0
    %356 = vmatprep.subr.bf16.mxu0 0
    %357 = vmatpush1.bf16.msra.mxu0 0
    %358 = vmatprep.mubr.bf16.mxu0 0
    %359 = vmatmul.mubr.bf16.gmra.mrb[0].mxu0 %v315
    %v360 = vpop.f32.mrb[0].mxu0
    %v361 = vadd.f32 %v299, %v360
    %v362 = vpop.f32.mrb[0].mxu0
    %v363 = vpop.f32.mrb[0].mxu0
    %v364 = vadd.f32 %v299, %v363
    %v365 = vpop.f32.mrb[0].mxu0
    %366 = vmatprep.mubr.bf16.mxu0 0
    %367 = vmatmul.mubr.bf16.gmra.mrb[0].mxu0 %v318
    %v368 = vpop.f32.mrb[0].mxu0
    %v369 = vadd.f32 %v299, %v368
    %v370 = vpop.f32.mrb[0].mxu0
    %v371 = vpop.f32.mrb[0].mxu0
    %v372 = vadd.f32 %v299, %v371
    %v373 = vpop.f32.mrb[0].mxu0
    %374 = vmatprep.mubr.bf16.mxu0 0
    %375 = vmatmul.mubr.bf16.gmra.mrb[0].mxu0 %v321
    %v376 = vpop.f32.mrb[0].mxu0
    %v377 = vadd.f32 %v299, %v376
    %v378 = vpop.f32.mrb[0].mxu0
    %v379 = vpop.f32.mrb[0].mxu0
    %v380 = vadd.f32 %v299, %v379
    %v381 = vpop.f32.mrb[0].mxu0
    %382 = vmatprep.mubr.bf16.mxu0 0
    %383 = vmatmul.mubr.bf16.gmra.mrb[0].mxu0 %v324
    %v384 = vpop.f32.mrb[0].mxu0
    %v385 = vadd.f32 %v299, %v384
    %v386 = vpop.f32.mrb[0].mxu0
    %v387 = vpop.f32.mrb[0].mxu0
    %v388 = vadd.f32 %v299, %v387
    %v389 = vpop.f32.mrb[0].mxu0
    %390 = vdwg.mxu0
    %v391 = vxor.u32 %v361, 2147483648
    %v392 = vxor.u32 %v364, 2147483648
    %v393 = vxor.u32 %v369, 2147483648
    %v394 = vxor.u32 %v372, 2147483648
    %v395 = vxor.u32 %v377, 2147483648
    %v396 = vxor.u32 %v380, 2147483648
    %v397 = vxor.u32 %v385, 2147483648
    %v398 = vxor.u32 %v388, 2147483648
    %v399 = vmul.f32 %v391, 1.442695
    %v400 = vpow.pop %v399
    %v401 = vmul.f32 %v392, 1.442695
    %v402 = vpow.pop %v401
    %v403 = vmul.f32 %v393, 1.442695
    %v404 = vpow.pop %v403
    %v405 = vmul.f32 %v394, 1.442695
    %v406 = vpow.pop %v405
    %v407 = vmul.f32 %v395, 1.442695
    %v408 = vpow.pop %v407
    %v409 = vmul.f32 %v396, 1.442695
    %v410 = vpow.pop %v409
    %v411 = vmul.f32 %v397, 1.442695
    %v412 = vpow.pop %v411
    %v413 = vmul.f32 %v398, 1.442695
    %v414 = vpow.pop %v413
    %v415 = vadd.f32 %v400, 1.0
    %v416 = vadd.f32 %v402, 1.0
    %v417 = vadd.f32 %v404, 1.0
    %v418 = vadd.f32 %v406, 1.0
    %v419 = vadd.f32 %v408, 1.0
    %v420 = vadd.f32 %v410, 1.0
    %v421 = vadd.f32 %v412, 1.0
    %v422 = vadd.f32 %v414, 1.0
    %v423 = vrcp.pop %v415
    %v424 = vmul.f32 1.0, %v423
    %v425 = vrcp.pop %v416
    %v426 = vmul.f32 1.0, %v425
    %v427 = vrcp.pop %v417
    %v428 = vmul.f32 1.0, %v427
    %v429 = vrcp.pop %v418
    %v430 = vmul.f32 1.0, %v429
    %v431 = vrcp.pop %v419
    %v432 = vmul.f32 1.0, %v431
    %v433 = vrcp.pop %v420
    %v434 = vmul.f32 1.0, %v433
    %v435 = vrcp.pop %v421
    %v436 = vmul.f32 1.0, %v435
    %v437 = vrcp.pop %v422
    %v438 = vmul.f32 1.0, %v437
    %vm439 = vcmask 7168
    %440 = vst.msk [vmem:[%s10] sm:$0xff] %vm439, %v424
    %441 = vst.msk [vmem:[%s10 + $0x8] sm:$0xff] %vm439, %v426
    %442 = vst.msk [vmem:[%s10 + $0x10] sm:$0xff] %vm439, %v428
    %443 = vst.msk [vmem:[%s10 + $0x18] sm:$0xff] %vm439, %v430
    %444 = vst.msk [vmem:[%s10 + $0x20] sm:$0xff] %vm439, %v432
    %445 = vst.msk [vmem:[%s10 + $0x28] sm:$0xff] %vm439, %v434
    %446 = vst.msk [vmem:[%s10 + $0x30] sm:$0xff] %vm439, %v436
    %447 = vst.msk [vmem:[%s10 + $0x38] sm:$0xff] %vm439, %v438
    %v448 = vld [vmem:[%s5] sm:$0xf]
    %v449 = vld [vmem:[%s5 + $0x4] sm:$0xf]
    %v450 = vld [vmem:[%s5 + $0x8] sm:$0xf]
    %v451 = vld [vmem:[%s5 + $0xc] sm:$0xf]
    %v452 = vld [vmem:[%s6] sm:$0x1]
    %v454 = vlaneseq
    %v455 = vshrl.u32 %v454, 7
    %v456 = vsub.s32 0, %v455
    %v457 = vrot.slane %v452, %v456
    %v463 = vunpack.c.l.b16 %v448
    %v464 = vunpack.c.l.b16 %v449
    %v465 = vunpack.c.l.b16 %v450
    %v466 = vunpack.c.l.b16 %v451
    %v467 = vpack.c.b16 %v464, %v463
    %v468 = vpack.c.b16 %v466, %v465
    %471 = vmatprep.subr.bf16.mxu0 0
    %472 = vmatpush1.bf16.msra.mxu0 %v467
    %473 = vmatprep.subr.bf16.mxu0 0
    %474 = vmatpush1.bf16.msra.mxu0 %v468
    %475 = vmatprep.subr.bf16.mxu0 0
    %476 = vmatpush1.bf16.msra.mxu0 0
    %477 = vmatprep.subr.bf16.mxu0 0
    %478 = vmatpush1.bf16.msra.mxu0 0
    %479 = vmatprep.subr.bf16.mxu0 0
    %480 = vmatpush1.bf16.msra.mxu0 0
    %481 = vmatprep.subr.bf16.mxu0 0
    %482 = vmatpush1.bf16.msra.mxu0 0
    %483 = vmatprep.subr.bf16.mxu0 0
    %484 = vmatpush1.bf16.msra.mxu0 0
    %485 = vmatprep.subr.bf16.mxu0 0
    %486 = vmatpush1.bf16.msra.mxu0 0
    %487 = vmatprep.subr.bf16.mxu0 0
    %488 = vmatpush1.bf16.msra.mxu0 0
    %489 = vmatprep.subr.bf16.mxu0 0
    %490 = vmatpush1.bf16.msra.mxu0 0
    %491 = vmatprep.subr.bf16.mxu0 0
    %492 = vmatpush1.bf16.msra.mxu0 0
    %493 = vmatprep.subr.bf16.mxu0 0
    %494 = vmatpush1.bf16.msra.mxu0 0
    %495 = vmatprep.subr.bf16.mxu0 0
    %496 = vmatpush1.bf16.msra.mxu0 0
    %497 = vmatprep.subr.bf16.mxu0 0
    %498 = vmatpush1.bf16.msra.mxu0 0
    %499 = vmatprep.subr.bf16.mxu0 0
    %500 = vmatpush1.bf16.msra.mxu0 0
    %501 = vmatprep.subr.bf16.mxu0 0
    %502 = vmatpush1.bf16.msra.mxu0 0
    %503 = vmatprep.mubr.bf16.mxu0 0
    %504 = vmatmul.mubr.bf16.gmra.mrb[0].mxu0 %v315
    %v505 = vpop.f32.mrb[0].mxu0
    %v506 = vadd.f32 %v457, %v505
    %v507 = vpop.f32.mrb[0].mxu0
    %v508 = vpop.f32.mrb[0].mxu0
    %v509 = vadd.f32 %v457, %v508
    %v510 = vpop.f32.mrb[0].mxu0
    %511 = vmatprep.mubr.bf16.mxu0 0
    %512 = vmatmul.mubr.bf16.gmra.mrb[0].mxu0 %v318
    %v513 = vpop.f32.mrb[0].mxu0
    %v514 = vadd.f32 %v457, %v513
    %v515 = vpop.f32.mrb[0].mxu0
    %v516 = vpop.f32.mrb[0].mxu0
    %v517 = vadd.f32 %v457, %v516
    %v518 = vpop.f32.mrb[0].mxu0
    %519 = vmatprep.mubr.bf16.mxu0 0
    %520 = vmatmul.mubr.bf16.gmra.mrb[0].mxu0 %v321
    %v521 = vpop.f32.mrb[0].mxu0
    %v522 = vadd.f32 %v457, %v521
    %v523 = vpop.f32.mrb[0].mxu0
    %v524 = vpop.f32.mrb[0].mxu0
    %v525 = vadd.f32 %v457, %v524
    %v526 = vpop.f32.mrb[0].mxu0
    %527 = vmatprep.mubr.bf16.mxu0 0
    %528 = vmatmul.mubr.bf16.gmra.mrb[0].mxu0 %v324
    %v529 = vpop.f32.mrb[0].mxu0
    %v530 = vadd.f32 %v457, %v529
    %v531 = vpop.f32.mrb[0].mxu0
    %v532 = vpop.f32.mrb[0].mxu0
    %v533 = vadd.f32 %v457, %v532
    %v534 = vpop.f32.mrb[0].mxu0
    %535 = vdwg.mxu0
    %v536 = vmax.f32 %v506, 0.0
    %v537 = vmax.f32 %v509, 0.0
    %v538 = vmax.f32 %v514, 0.0
    %v539 = vmax.f32 %v517, 0.0
    %v540 = vmax.f32 %v522, 0.0
    %v541 = vmax.f32 %v525, 0.0
    %v542 = vmax.f32 %v530, 0.0
    %v543 = vmax.f32 %v533, 0.0
    %v544 = vadd.f32 %v536, %v537
    %v545 = vadd.f32 %v544, %v538
    %v546 = vadd.f32 %v545, %v539
    %v547 = vadd.f32 %v546, %v540
    %v548 = vadd.f32 %v547, %v541
    %v549 = vadd.f32 %v548, %v542
    %v550 = vadd.f32 %v549, %v543
    %v551 = vrot.slane %v550, 4
    %v552 = vadd.f32 %v550, %v551
    %v553 = vrot.slane %v552, 2
    %v554 = vadd.f32 %v552, %v553
    %v555 = vrot.slane %v554, 1
    %v556 = vadd.f32 %v554, %v555
    %v557 = vrcp.pop 64.0
    %v558 = vmul.f32 %v556, %v557
    %v559 = vpack.c.bf16 %v558, %v558
    %v560 = vld [vmem:[%s7] sm:$0xf]
    %v561 = vld [vmem:[%s7 + $0x4] sm:$0xf]
    %v562 = vld [vmem:[%s7 + $0x8] sm:$0xf]
    %v563 = vld [vmem:[%s7 + $0xc] sm:$0xf]
    %v564 = vld [vmem:[%s7 + $0x10] sm:$0xf]
    %v565 = vld [vmem:[%s7 + $0x14] sm:$0xf]
    %v566 = vld [vmem:[%s7 + $0x18] sm:$0xf]
    %v567 = vld [vmem:[%s7 + $0x1c] sm:$0xf]
    %v568 = vld [vmem:[%s7 + $0x20] sm:$0xf]
    %v569 = vld [vmem:[%s7 + $0x24] sm:$0xf]
    %v570 = vld [vmem:[%s7 + $0x28] sm:$0xf]
    %v571 = vld [vmem:[%s7 + $0x2c] sm:$0xf]
    %v572 = vld [vmem:[%s7 + $0x30] sm:$0xf]
    %v573 = vld [vmem:[%s7 + $0x34] sm:$0xf]
    %v574 = vld [vmem:[%s7 + $0x38] sm:$0xf]
    %v575 = vld [vmem:[%s7 + $0x3c] sm:$0xf]
    %v576 = vld [vmem:[%s8] sm:$0x1]
    %v593 = vunpack.c.l.b16 %v560
    %v594 = vunpack.c.l.b16 %v561
    %v595 = vunpack.c.l.b16 %v562
    %v596 = vunpack.c.l.b16 %v563
    %v597 = vunpack.c.l.b16 %v564
    %v598 = vunpack.c.l.b16 %v565
    %v599 = vunpack.c.l.b16 %v566
    %v600 = vunpack.c.l.b16 %v567
    %v601 = vunpack.c.l.b16 %v568
    %v602 = vunpack.c.l.b16 %v569
    %v603 = vunpack.c.l.b16 %v570
    %v604 = vunpack.c.l.b16 %v571
    %v605 = vunpack.c.l.b16 %v572
    %v606 = vunpack.c.l.b16 %v573
    %v607 = vunpack.c.l.b16 %v574
    %v608 = vunpack.c.l.b16 %v575
    %v609 = vpack.c.b16 %v594, %v593
    %v610 = vpack.c.b16 %v596, %v595
    %v611 = vpack.c.b16 %v598, %v597
    %v612 = vpack.c.b16 %v600, %v599
    %v613 = vpack.c.b16 %v602, %v601
    %v614 = vpack.c.b16 %v604, %v603
    %v615 = vpack.c.b16 %v606, %v605
    %v616 = vpack.c.b16 %v608, %v607
    %625 = vmatprep.subr.bf16.mxu0 0
    %626 = vmatpush1.bf16.msra.mxu0 %v609
    %627 = vmatprep.subr.bf16.mxu0 0
    %628 = vmatpush1.bf16.msra.mxu0 %v610
    %629 = vmatprep.subr.bf16.mxu0 0
    %630 = vmatpush1.bf16.msra.mxu0 %v611
    %631 = vmatprep.subr.bf16.mxu0 0
    %632 = vmatpush1.bf16.msra.mxu0 %v612
    %633 = vmatprep.subr.bf16.mxu0 0
    %634 = vmatpush1.bf16.msra.mxu0 %v613
    %635 = vmatprep.subr.bf16.mxu0 0
    %636 = vmatpush1.bf16.msra.mxu0 %v614
    %637 = vmatprep.subr.bf16.mxu0 0
    %638 = vmatpush1.bf16.msra.mxu0 %v615
    %639 = vmatprep.subr.bf16.mxu0 0
    %640 = vmatpush1.bf16.msra.mxu0 %v616
    %641 = vmatprep.subr.bf16.mxu0 0
    %642 = vmatpush1.bf16.msra.mxu0 0
    %643 = vmatprep.subr.bf16.mxu0 0
    %644 = vmatpush1.bf16.msra.mxu0 0
    %645 = vmatprep.subr.bf16.mxu0 0
    %646 = vmatpush1.bf16.msra.mxu0 0
    %647 = vmatprep.subr.bf16.mxu0 0
    %648 = vmatpush1.bf16.msra.mxu0 0
    %649 = vmatprep.subr.bf16.mxu0 0
    %650 = vmatpush1.bf16.msra.mxu0 0
    %651 = vmatprep.subr.bf16.mxu0 0
    %652 = vmatpush1.bf16.msra.mxu0 0
    %653 = vmatprep.subr.bf16.mxu0 0
    %654 = vmatpush1.bf16.msra.mxu0 0
    %655 = vmatprep.subr.bf16.mxu0 0
    %656 = vmatpush1.bf16.msra.mxu0 0
    %657 = vmatprep.mubr.bf16.mxu0 0
    %658 = vmatmul.mubr.bf16.gmra.mrb[0].mxu0 %v559
    %v659 = vpop.f32.mrb[0].mxu0
    %v660 = vadd.f32 %v576, %v659
    %v661 = vpop.f32.mrb[0].mxu0
    %v662 = vpop.f32.mrb[0].mxu0
    %v663 = vpop.f32.mrb[0].mxu0
    %664 = vdwg.mxu0
    %vm665 = vcmask 8192
    %666 = vst.msk [vmem:[#allocation3] sm:$0x1] %vm665, %v660
    %v667 = vsel %vm665, %v660, -inf
    %668 = vmax.xlane.f32.xlu0 %v667
    %v669 = vpop.xlane.xlu0 %668
    %v670 = vsub.f32 %v660, %v669
    %v671 = vmul.f32 %v670, 1.442695
    %v672 = vpow.pop %v671
    %v673 = vsel %vm665, %v672, 0.0
    %674 = vadd.xlane.f32.xlu0 %v673
    %v675 = vpop.xlane.xlu0 %674
    %v676 = vrcp.pop %v675
    %v677 = vmul.f32 %v672, %v676
    %v678 = vadd.f32 %v677, 1e-30
    %v679 = vlog2.pop %v678
    %v680 = vmul.f32 %v679, 0.6931472
    %v681 = vrcp.pop 0.6931472
    %v682 = vmul.f32 %v680, %v681
    %v683 = vmul.f32 %v677, %v682
    %v684 = vsel %vm665, %v683, 0.0
    %685 = vadd.xlane.f32.xlu0 %v684
    %v686 = vpop.xlane.xlu0 %685
    %v687 = vsub.f32 0.0, %v686
    %v688 = vmul.f32 %v558, %v687
    %689 = vst [vmem:[%s11] sm:$0x1] %v688
    // Predicated region
    $region38: #{faster_rcnn_meaa_forward.6} parent=1 // pred_check
      _
    $region39: #{faster_rcnn_meaa_forward.6} parent=1 // pred_check_branch
      %691 = sbr.rel (0) target = $region41
    $region40: #{faster_rcnn_meaa_forward.6} parent=1 // pred_region
      _
    $region41: #{faster_rcnn_meaa_forward.6} parent=1 // pred_fallthru
      _
    // Predicated region
    $region42: #{faster_rcnn_meaa_forward.6} parent=1 // pred_check
      _
    $region43: #{faster_rcnn_meaa_forward.6} parent=1 // pred_check_branch
      %693 = sbr.rel (0) target = $region45
    $region44: #{faster_rcnn_meaa_forward.6} parent=1 // pred_region
      _
    $region45: #{faster_rcnn_meaa_forward.6} parent=1 // pred_fallthru
      _
    // Predicated region
    $region46: #{faster_rcnn_meaa_forward.6} parent=1 // pred_check
      _
    $region47: #{faster_rcnn_meaa_forward.6} parent=1 // pred_check_branch
      %695 = sbr.rel (0) target = $region49
    $region48: #{faster_rcnn_meaa_forward.6} parent=1 // pred_region
      _
    $region49: #{faster_rcnn_meaa_forward.6} parent=1 // pred_fallthru
      _
    // Predicated region
    $region50: #{faster_rcnn_meaa_forward.6} parent=1 // pred_check
      _
    $region51: #{faster_rcnn_meaa_forward.6} parent=1 // pred_check_branch
      %697 = sbr.rel (0) target = $region53
    $region52: #{faster_rcnn_meaa_forward.6} parent=1 // pred_region
      %s699 = ssub.s32 16, 16
      %700 = vsyncadd [#allocation4], %s699
      %s702 = sshll.u32 [#allocation3], 4
      %s703 = int_to_ptr.vmem [resolvable:$true] %s702
      %705 = dma.vmem_to_hbm [thread:$0]  %s703, 16, %s12, [#allocation4]
    $region53: #{faster_rcnn_meaa_forward.6} parent=1 // pred_fallthru
      _
    // Predicated region
    $region54: #{faster_rcnn_meaa_forward.6} parent=1 // pred_check
      _
    $region55: #{faster_rcnn_meaa_forward.6} parent=1 // pred_check_branch
      %707 = sbr.rel (0) target = $region57
    $region56: #{faster_rcnn_meaa_forward.6} parent=1 // pred_region
      _
    $region57: #{faster_rcnn_meaa_forward.6} parent=1 // pred_fallthru
      _
    // Predicated region
    $region58: #{faster_rcnn_meaa_forward.6} parent=1 // pred_check
      _
    $region59: #{faster_rcnn_meaa_forward.6} parent=1 // pred_check_branch
      %709 = sbr.rel (0) target = $region61
    $region60: #{faster_rcnn_meaa_forward.6} parent=1 // pred_region
      _
    $region61: #{faster_rcnn_meaa_forward.6} parent=1 // pred_fallthru
      _
    // Predicated region
    $region62: #{faster_rcnn_meaa_forward.6} parent=1 // pred_check
      _
    $region63: #{faster_rcnn_meaa_forward.6} parent=1 // pred_check_branch
      %711 = sbr.rel (0) target = $region65
    $region64: #{faster_rcnn_meaa_forward.6} parent=1 // pred_region
      _
    $region65: #{faster_rcnn_meaa_forward.6} parent=1 // pred_fallthru
      _
    // Predicated region
    $region66: #{faster_rcnn_meaa_forward.6} parent=1 // pred_check
      _
    $region67: #{faster_rcnn_meaa_forward.6} parent=1 // pred_check_branch
      %713 = sbr.rel (0) target = $region69
    $region68: #{faster_rcnn_meaa_forward.6} parent=1 // pred_region
      %714 = dma.done [#allocation4], 16
    $region69: #{faster_rcnn_meaa_forward.6} parent=1 // pred_fallthru
      _
    %715 = vsyncpa [#allocation4], 1

// kernel: faster_rcnn_meaa_forward.7
$region0: #{faster_rcnn_meaa_forward.7}
  #allocation0 [shape = 'u32[]', space=smem, size = 0x4, offset = 0x4, fixed_abs, tag = 'smem constant byte address 0x4 - core index']
  #allocation1 [shape = 'u32[144,128]{1,0:T(1,128)}', space=vmem, size = 0x12000, scoped, tag = 'internal scratch']
  #allocation2 [shape = 'f32[1,1]{1,0:T(1,128)S(1)}', space=vmem, size = 0x200, scoped, tag = 'scoped memory for faster_rcnn_meaa_forward.7']
  %s0 = inlined_call_operand.vmem [shape: bf16[16,288], index: 0, kind: input, shape index: {}]
  %s1 = inlined_call_operand.vmem [shape: bf16[288,64], index: 1, kind: input, shape index: {}]
  %s2 = inlined_call_operand.vmem [shape: f32[1,64], index: 2, kind: input, shape index: {}]
  %s3 = inlined_call_operand.vmem [shape: bf16[64,1], index: 3, kind: input, shape index: {}]
  %s4 = inlined_call_operand.<no memory space> [shape: f32[1,1], index: 4, kind: input, shape index: {}]
  %s5 = inlined_call_operand.vmem [shape: bf16[64,128], index: 5, kind: input, shape index: {}]
  %s6 = inlined_call_operand.vmem [shape: f32[1,128], index: 6, kind: input, shape index: {}]
  %s7 = inlined_call_operand.vmem [shape: bf16[128,2], index: 7, kind: input, shape index: {}]
  %s8 = inlined_call_operand.vmem [shape: f32[1,2], index: 8, kind: input, shape index: {}]
  %s9 = inlined_call_operand.vmem [shape: bf16[16,64], index: 9, kind: output, shape index: {0}]
  %s10 = inlined_call_operand.vmem [shape: f32[16,1], index: 10, kind: output, shape index: {1}]
  %s11 = inlined_call_operand.vmem [shape: f32[1,128], index: 11, kind: output, shape index: {2}]
  %s12 = inlined_call_operand.hbm [shape: f32[1,2], index: 12, kind: output, shape index: {3}]
  %13 = xla_tuple %s9, %s10, %s11, %s12
  %s14 = sld [smem:[#allocation0]]
  $region70: #{faster_rcnn_meaa_forward.7} parent=0
    _
  %s16 = ssub.s32 1, %s14
  %s17 = scalar_select 0, %s16, %s14
  %v18 = vstv %s4
  %19 = vst [vmem:[#allocation2] sm:$0x1] %v18
  $region1: #{faster_rcnn_meaa_forward.7} parent=0
    #allocation3 [shape = 'u8[512]{0}', space=vmem, size = 0x400, scoped, tag = 'output window, operand 3, single buffered']
    #allocation4 [shape = 's32[1]{0}', space=sflag, size = 0x4, scoped, tag = 'scoped memory for faster_rcnn_meaa_forward.7']
    %20 = vsyncpa [#allocation4], 0
    // Predicated region
    $region2: #{faster_rcnn_meaa_forward.7} parent=1 // pred_check
      _
    $region3: #{faster_rcnn_meaa_forward.7} parent=1 // pred_check_branch
      %22 = sbr.rel (0) target = $region5
    $region4: #{faster_rcnn_meaa_forward.7} parent=1 // pred_region
      _
    $region5: #{faster_rcnn_meaa_forward.7} parent=1 // pred_fallthru
      _
    // Predicated region
    $region6: #{faster_rcnn_meaa_forward.7} parent=1 // pred_check
      _
    $region7: #{faster_rcnn_meaa_forward.7} parent=1 // pred_check_branch
      %24 = sbr.rel (0) target = $region9
    $region8: #{faster_rcnn_meaa_forward.7} parent=1 // pred_region
      _
    $region9: #{faster_rcnn_meaa_forward.7} parent=1 // pred_fallthru
      _
    // Predicated region
    $region10: #{faster_rcnn_meaa_forward.7} parent=1 // pred_check
      _
    $region11: #{faster_rcnn_meaa_forward.7} parent=1 // pred_check_branch
      %26 = sbr.rel (0) target = $region13
    $region12: #{faster_rcnn_meaa_forward.7} parent=1 // pred_region
      _
    $region13: #{faster_rcnn_meaa_forward.7} parent=1 // pred_fallthru
      _
    // Predicated region
    $region14: #{faster_rcnn_meaa_forward.7} parent=1 // pred_check
      _
    $region15: #{faster_rcnn_meaa_forward.7} parent=1 // pred_check_branch
      %28 = sbr.rel (0) target = $region17
    $region16: #{faster_rcnn_meaa_forward.7} parent=1 // pred_region
      _
    $region17: #{faster_rcnn_meaa_forward.7} parent=1 // pred_fallthru
      _
    // Predicated region
    $region18: #{faster_rcnn_meaa_forward.7} parent=1 // pred_check
      _
    $region19: #{faster_rcnn_meaa_forward.7} parent=1 // pred_check_branch
      %30 = sbr.rel (0) target = $region21
    $region20: #{faster_rcnn_meaa_forward.7} parent=1 // pred_region
      _
    $region21: #{faster_rcnn_meaa_forward.7} parent=1 // pred_fallthru
      _
    // Predicated region
    $region22: #{faster_rcnn_meaa_forward.7} parent=1 // pred_check
      _
    $region23: #{faster_rcnn_meaa_forward.7} parent=1 // pred_check_branch
      %32 = sbr.rel (0) target = $region25
    $region24: #{faster_rcnn_meaa_forward.7} parent=1 // pred_region
      _
    $region25: #{faster_rcnn_meaa_forward.7} parent=1 // pred_fallthru
      _
    // Predicated region
    $region26: #{faster_rcnn_meaa_forward.7} parent=1 // pred_check
      _
    $region27: #{faster_rcnn_meaa_forward.7} parent=1 // pred_check_branch
      %34 = sbr.rel (0) target = $region29
    $region28: #{faster_rcnn_meaa_forward.7} parent=1 // pred_region
      _
    $region29: #{faster_rcnn_meaa_forward.7} parent=1 // pred_fallthru
      _
    // Predicated region
    $region30: #{faster_rcnn_meaa_forward.7} parent=1 // pred_check
      _
    $region31: #{faster_rcnn_meaa_forward.7} parent=1 // pred_check_branch
      %36 = sbr.rel (0) target = $region33
    $region32: #{faster_rcnn_meaa_forward.7} parent=1 // pred_region
      _
    $region33: #{faster_rcnn_meaa_forward.7} parent=1 // pred_fallthru
      _
    // Predicated region
    $region34: #{faster_rcnn_meaa_forward.7} parent=1 // pred_check
      _
    $region35: #{faster_rcnn_meaa_forward.7} parent=1 // pred_check_branch
      %38 = sbr.rel (0) target = $region37
    $region36: #{faster_rcnn_meaa_forward.7} parent=1 // pred_region
      _
    $region37: #{faster_rcnn_meaa_forward.7} parent=1 // pred_fallthru
      _
    %v40 = vld [vmem:[%s0] sm:$0xff]
    %v41 = vld [vmem:[%s0 + $0x8] sm:$0xf]
    %v42 = vld [vmem:[%s0 + $0xc] sm:$0xff]
    %v43 = vld [vmem:[%s0 + $0x14] sm:$0xf]
    %v44 = vld [vmem:[%s1] sm:$0xf]
    %v45 = vld [vmem:[%s1 + $0x4] sm:$0xf]
    %v46 = vld [vmem:[%s1 + $0x8] sm:$0xf]
    %v47 = vld [vmem:[%s1 + $0xc] sm:$0xf]
    %v48 = vld [vmem:[%s1 + $0x10] sm:$0xf]
    %v49 = vld [vmem:[%s1 + $0x14] sm:$0xf]
    %v50 = vld [vmem:[%s1 + $0x18] sm:$0xf]
    %v51 = vld [vmem:[%s1 + $0x1c] sm:$0xf]
    %v52 = vld [vmem:[%s1 + $0x20] sm:$0xf]
    %v53 = vld [vmem:[%s1 + $0x24] sm:$0xf]
    %v54 = vld [vmem:[%s1 + $0x28] sm:$0xf]
    %v55 = vld [vmem:[%s1 + $0x2c] sm:$0xf]
    %v56 = vld [vmem:[%s1 + $0x30] sm:$0xf]
    %v57 = vld [vmem:[%s1 + $0x34] sm:$0xf]
    %v58 = vld [vmem:[%s1 + $0x38] sm:$0xf]
    %v59 = vld [vmem:[%s1 + $0x3c] sm:$0xf]
    %v60 = vld [vmem:[%s1 + $0x40] sm:$0xf]
    %v61 = vld [vmem:[%s1 + $0x44] sm:$0xf]
    %v62 = vld [vmem:[%s1 + $0x48] sm:$0xf]
    %v63 = vld [vmem:[%s1 + $0x4c] sm:$0xf]
    %v64 = vld [vmem:[%s1 + $0x50] sm:$0xf]
    %v65 = vld [vmem:[%s1 + $0x54] sm:$0xf]
    %v66 = vld [vmem:[%s1 + $0x58] sm:$0xf]
    %v67 = vld [vmem:[%s1 + $0x5c] sm:$0xf]
    %v68 = vld [vmem:[%s1 + $0x60] sm:$0xf]
    %v69 = vld [vmem:[%s1 + $0x64] sm:$0xf]
    %v70 = vld [vmem:[%s1 + $0x68] sm:$0xf]
    %v71 = vld [vmem:[%s1 + $0x6c] sm:$0xf]
    %v72 = vld [vmem:[%s1 + $0x70] sm:$0xf]
    %v73 = vld [vmem:[%s1 + $0x74] sm:$0xf]
    %v74 = vld [vmem:[%s1 + $0x78] sm:$0xf]
    %v75 = vld [vmem:[%s1 + $0x7c] sm:$0xf]
    %v76 = vld [vmem:[%s1 + $0x80] sm:$0xf]
    %v77 = vld [vmem:[%s1 + $0x84] sm:$0xf]
    %v78 = vld [vmem:[%s1 + $0x88] sm:$0xf]
    %v79 = vld [vmem:[%s1 + $0x8c] sm:$0xf]
    %v80 = vld [vmem:[%s2] sm:$0x1]
    %v82 = vlaneseq
    %v83 = vshrl.u32 %v82, 7
    %v84 = vsub.s32 0, %v83
    %v85 = vrot.slane %v80, %v84
    %v91 = vunpack.c.l.b16 %v40
    %v92 = vunpack.c.h.b16 %v40
    %v93 = vunpack.c.l.b16 %v41
    %v94 = vunpack.c.l.b16 %v42
    %v95 = vunpack.c.h.b16 %v42
    %v96 = vunpack.c.l.b16 %v43
    %v97 = vpack.c.b16 %v94, %v91
    %v98 = vpack.c.b16 %v95, %v92
    %v99 = vpack.c.b16 %v96, %v93
    %v138 = vunpack.c.l.b16 %v44
    %v139 = vunpack.c.l.b16 %v45
    %v140 = vunpack.c.l.b16 %v46
    %v141 = vunpack.c.l.b16 %v47
    %v142 = vunpack.c.l.b16 %v48
    %v143 = vunpack.c.l.b16 %v49
    %v144 = vunpack.c.l.b16 %v50
    %v145 = vunpack.c.l.b16 %v51
    %v146 = vunpack.c.l.b16 %v52
    %v147 = vunpack.c.l.b16 %v53
    %v148 = vunpack.c.l.b16 %v54
    %v149 = vunpack.c.l.b16 %v55
    %v150 = vunpack.c.l.b16 %v56
    %v151 = vunpack.c.l.b16 %v57
    %v152 = vunpack.c.l.b16 %v58
    %v153 = vunpack.c.l.b16 %v59
    %v154 = vunpack.c.l.b16 %v60
    %v155 = vunpack.c.l.b16 %v61
    %v156 = vunpack.c.l.b16 %v62
    %v157 = vunpack.c.l.b16 %v63
    %v158 = vunpack.c.l.b16 %v64
    %v159 = vunpack.c.l.b16 %v65
    %v160 = vunpack.c.l.b16 %v66
    %v161 = vunpack.c.l.b16 %v67
    %v162 = vunpack.c.l.b16 %v68
    %v163 = vunpack.c.l.b16 %v69
    %v164 = vunpack.c.l.b16 %v70
    %v165 = vunpack.c.l.b16 %v71
    %v166 = vunpack.c.l.b16 %v72
    %v167 = vunpack.c.l.b16 %v73
    %v168 = vunpack.c.l.b16 %v74
    %v169 = vunpack.c.l.b16 %v75
    %v170 = vunpack.c.l.b16 %v76
    %v171 = vunpack.c.l.b16 %v77
    %v172 = vunpack.c.l.b16 %v78
    %v173 = vunpack.c.l.b16 %v79
    %v174 = vpack.c.b16 %v139, %v138
    %v175 = vpack.c.b16 %v141, %v140
    %v176 = vpack.c.b16 %v143, %v142
    %v177 = vpack.c.b16 %v145, %v144
    %v178 = vpack.c.b16 %v147, %v146
    %v179 = vpack.c.b16 %v149, %v148
    %v180 = vpack.c.b16 %v151, %v150
    %v181 = vpack.c.b16 %v153, %v152
    %v182 = vpack.c.b16 %v155, %v154
    %v183 = vpack.c.b16 %v157, %v156
    %v184 = vpack.c.b16 %v159, %v158
    %v185 = vpack.c.b16 %v161, %v160
    %v186 = vpack.c.b16 %v163, %v162
    %v187 = vpack.c.b16 %v165, %v164
    %v188 = vpack.c.b16 %v167, %v166
    %v189 = vpack.c.b16 %v169, %v168
    %v190 = vpack.c.b16 %v171, %v170
    %v191 = vpack.c.b16 %v173, %v172
    %vm210 = vcmask 261120
    %v212 = vsel %vm210, %v99, 0
    %214 = vmatprep.subr.bf16.mxu0 0
    %215 = vmatpush1.bf16.msra.mxu0 %v174
    %216 = vmatprep.subr.bf16.mxu0 0
    %217 = vmatpush1.bf16.msra.mxu0 %v175
    %218 = vmatprep.subr.bf16.mxu0 0
    %219 = vmatpush1.bf16.msra.mxu0 %v176
    %220 = vmatprep.subr.bf16.mxu0 0
    %221 = vmatpush1.bf16.msra.mxu0 %v177
    %222 = vmatprep.subr.bf16.mxu0 0
    %223 = vmatpush1.bf16.msra.mxu0 %v178
    %224 = vmatprep.subr.bf16.mxu0 0
    %225 = vmatpush1.bf16.msra.mxu0 %v179
    %226 = vmatprep.subr.bf16.mxu0 0
    %227 = vmatpush1.bf16.msra.mxu0 %v180
    %228 = vmatprep.subr.bf16.mxu0 0
    %229 = vmatpush1.bf16.msra.mxu0 %v181
    %230 = vmatprep.subr.bf16.mxu0 0
    %231 = vmatpush1.bf16.msra.mxu0 %v182
    %232 = vmatprep.subr.bf16.mxu0 0
    %233 = vmatpush1.bf16.msra.mxu0 %v183
    %234 = vmatprep.subr.bf16.mxu0 0
    %235 = vmatpush1.bf16.msra.mxu0 %v184
    %236 = vmatprep.subr.bf16.mxu0 0
    %237 = vmatpush1.bf16.msra.mxu0 %v185
    %238 = vmatprep.subr.bf16.mxu0 0
    %239 = vmatpush1.bf16.msra.mxu0 %v186
    %240 = vmatprep.subr.bf16.mxu0 0
    %241 = vmatpush1.bf16.msra.mxu0 %v187
    %242 = vmatprep.subr.bf16.mxu0 0
    %243 = vmatpush1.bf16.msra.mxu0 %v188
    %244 = vmatprep.subr.bf16.mxu0 0
    %245 = vmatpush1.bf16.msra.mxu0 %v189
    %246 = vmatprep.mubr.bf16.mxu0 %v98
    %247 = vmatmul.mubr.bf16.gmra.mrb[0].mxu0 %v97
    %v248 = vpop.f32.mrb[0].mxu0
    %v249 = vadd.f32 %v85, %v248
    %v250 = vpop.f32.mrb[0].mxu0
    %v251 = vpop.f32.mrb[0].mxu0
    %v252 = vadd.f32 %v85, %v251
    %v253 = vpop.f32.mrb[0].mxu0
    %254 = vdwg.mxu0
    %255 = vmatprep.subr.bf16.mxu0 0
    %256 = vmatpush1.bf16.msra.mxu0 %v190
    %257 = vmatprep.subr.bf16.mxu0 0
    %258 = vmatpush1.bf16.msra.mxu0 %v191
    %259 = vmatprep.subr.bf16.mxu0 0
    %260 = vmatpush1.bf16.msra.mxu0 0
    %261 = vmatprep.subr.bf16.mxu0 0
    %262 = vmatpush1.bf16.msra.mxu0 0
    %263 = vmatprep.subr.bf16.mxu0 0
    %264 = vmatpush1.bf16.msra.mxu0 0
    %265 = vmatprep.subr.bf16.mxu0 0
    %266 = vmatpush1.bf16.msra.mxu0 0
    %267 = vmatprep.subr.bf16.mxu0 0
    %268 = vmatpush1.bf16.msra.mxu0 0
    %269 = vmatprep.subr.bf16.mxu0 0
    %270 = vmatpush1.bf16.msra.mxu0 0
    %271 = vmatprep.subr.bf16.mxu0 0
    %272 = vmatpush1.bf16.msra.mxu0 0
    %273 = vmatprep.subr.bf16.mxu0 0
    %274 = vmatpush1.bf16.msra.mxu0 0
    %275 = vmatprep.subr.bf16.mxu0 0
    %276 = vmatpush1.bf16.msra.mxu0 0
    %277 = vmatprep.subr.bf16.mxu0 0
    %278 = vmatpush1.bf16.msra.mxu0 0
    %279 = vmatprep.subr.bf16.mxu0 0
    %280 = vmatpush1.bf16.msra.mxu0 0
    %281 = vmatprep.subr.bf16.mxu0 0
    %282 = vmatpush1.bf16.msra.mxu0 0
    %283 = vmatprep.subr.bf16.mxu0 0
    %284 = vmatpush1.bf16.msra.mxu0 0
    %285 = vmatprep.subr.bf16.mxu0 0
    %286 = vmatpush1.bf16.msra.mxu0 0
    %287 = vmatprep.mubr.bf16.mxu0 0
    %288 = vmatmul.mubr.bf16.gmra.mrb[0].mxu0 %v212
    %v289 = vpop.f32.mrb[0].mxu0
    %v290 = vadd.f32 %v249, %v289
    %v291 = vpop.f32.mrb[0].mxu0
    %v292 = vpop.f32.mrb[0].mxu0
    %v293 = vadd.f32 %v252, %v292
    %v294 = vpop.f32.mrb[0].mxu0
    %295 = vdwg.mxu0
    %v296 = vmax.f32 %v290, 0.0
    %v297 = vmax.f32 %v293, 0.0
    %v298 = vpack.c.bf16 %v297, %v296
    %v300 = vunpack.c.l.b16 %v298
    %v301 = vunpack.c.h.b16 %v298
    %v302 = vpack.c.b16 %v300, %v300
    %v303 = vpack.c.b16 %v301, %v301
    %vm306 = vcmask 519168
    %307 = vst.msk [vmem:[%s9] sm:$0xf] %vm306, %v302
    %308 = vst.msk [vmem:[%s9 + $0x4] sm:$0xf] %vm306, %v303
    %v309 = vld [vmem:[%s3] sm:$0xf]
    %v310 = vld [vmem:[%s3 + $0x4] sm:$0xf]
    %v311 = vld [vmem:[%s3 + $0x8] sm:$0xf]
    %v312 = vld [vmem:[%s3 + $0xc] sm:$0xf]
    %v313 = vld [vmem:[%s3 + $0x10] sm:$0xf]
    %v314 = vld [vmem:[%s3 + $0x14] sm:$0xf]
    %v315 = vld [vmem:[%s3 + $0x18] sm:$0xf]
    %v316 = vld [vmem:[%s3 + $0x1c] sm:$0xf]
    %v317 = vld [vmem:[#allocation2] sm:$0x1]
    %v319 = vlaneseq
    %v320 = vshrl.u32 %v319, 7
    %v321 = vsub.s32 0, %v320
    %v322 = vrot.slane %v317, %v321
    %v332 = vunpack.c.l.b16 %v309
    %v333 = vunpack.c.l.b16 %v310
    %v334 = vunpack.c.l.b16 %v311
    %v335 = vunpack.c.l.b16 %v312
    %v336 = vunpack.c.l.b16 %v313
    %v337 = vunpack.c.l.b16 %v314
    %v338 = vunpack.c.l.b16 %v315
    %v339 = vunpack.c.l.b16 %v316
    %v340 = vpack.c.b16 %v333, %v332
    %v341 = vpack.c.b16 %v335, %v334
    %v342 = vpack.c.b16 %v337, %v336
    %v343 = vpack.c.b16 %v339, %v338
    %vm348 = vcmask 523264
    %v350 = vsel %vm348, %v298, 0
    %352 = vmatprep.subr.bf16.mxu0 0
    %353 = vmatpush1.bf16.msra.mxu0 %v340
    %354 = vmatprep.subr.bf16.mxu0 0
    %355 = vmatpush1.bf16.msra.mxu0 %v341
    %356 = vmatprep.subr.bf16.mxu0 0
    %357 = vmatpush1.bf16.msra.mxu0 %v342
    %358 = vmatprep.subr.bf16.mxu0 0
    %359 = vmatpush1.bf16.msra.mxu0 %v343
    %360 = vmatprep.subr.bf16.mxu0 0
    %361 = vmatpush1.bf16.msra.mxu0 0
    %362 = vmatprep.subr.bf16.mxu0 0
    %363 = vmatpush1.bf16.msra.mxu0 0
    %364 = vmatprep.subr.bf16.mxu0 0
    %365 = vmatpush1.bf16.msra.mxu0 0
    %366 = vmatprep.subr.bf16.mxu0 0
    %367 = vmatpush1.bf16.msra.mxu0 0
    %368 = vmatprep.subr.bf16.mxu0 0
    %369 = vmatpush1.bf16.msra.mxu0 0
    %370 = vmatprep.subr.bf16.mxu0 0
    %371 = vmatpush1.bf16.msra.mxu0 0
    %372 = vmatprep.subr.bf16.mxu0 0
    %373 = vmatpush1.bf16.msra.mxu0 0
    %374 = vmatprep.subr.bf16.mxu0 0
    %375 = vmatpush1.bf16.msra.mxu0 0
    %376 = vmatprep.subr.bf16.mxu0 0
    %377 = vmatpush1.bf16.msra.mxu0 0
    %378 = vmatprep.subr.bf16.mxu0 0
    %379 = vmatpush1.bf16.msra.mxu0 0
    %380 = vmatprep.subr.bf16.mxu0 0
    %381 = vmatpush1.bf16.msra.mxu0 0
    %382 = vmatprep.subr.bf16.mxu0 0
    %383 = vmatpush1.bf16.msra.mxu0 0
    %384 = vmatprep.mubr.bf16.mxu0 0
    %385 = vmatmul.mubr.bf16.gmra.mrb[0].mxu0 %v350
    %v386 = vpop.f32.mrb[0].mxu0
    %v387 = vadd.f32 %v322, %v386
    %v388 = vpop.f32.mrb[0].mxu0
    %v389 = vpop.f32.mrb[0].mxu0
    %v390 = vadd.f32 %v322, %v389
    %v391 = vpop.f32.mrb[0].mxu0
    %392 = vdwg.mxu0
    %v393 = vxor.u32 %v387, 2147483648
    %v394 = vxor.u32 %v390, 2147483648
    %v395 = vmul.f32 %v393, 1.442695
    %v396 = vpow.pop %v395
    %v397 = vmul.f32 %v394, 1.442695
    %v398 = vpow.pop %v397
    %v399 = vadd.f32 %v396, 1.0
    %v400 = vadd.f32 %v398, 1.0
    %v401 = vrcp.pop %v399
    %v402 = vmul.f32 1.0, %v401
    %v403 = vrcp.pop %v400
    %v404 = vmul.f32 1.0, %v403
    %vm405 = vcmask 7168
    %406 = vst.msk [vmem:[%s10] sm:$0xff] %vm405, %v402
    %407 = vst.msk [vmem:[%s10 + $0x8] sm:$0xff] %vm405, %v404
    %v408 = vld [vmem:[%s5] sm:$0xf]
    %v409 = vld [vmem:[%s5 + $0x4] sm:$0xf]
    %v410 = vld [vmem:[%s5 + $0x8] sm:$0xf]
    %v411 = vld [vmem:[%s5 + $0xc] sm:$0xf]
    %v412 = vld [vmem:[%s5 + $0x10] sm:$0xf]
    %v413 = vld [vmem:[%s5 + $0x14] sm:$0xf]
    %v414 = vld [vmem:[%s5 + $0x18] sm:$0xf]
    %v415 = vld [vmem:[%s5 + $0x1c] sm:$0xf]
    %v416 = vld [vmem:[%s6] sm:$0x1]
    %v418 = vlaneseq
    %v419 = vshrl.u32 %v418, 7
    %v420 = vsub.s32 0, %v419
    %v421 = vrot.slane %v416, %v420
    %v431 = vunpack.c.l.b16 %v408
    %v432 = vunpack.c.l.b16 %v409
    %v433 = vunpack.c.l.b16 %v410
    %v434 = vunpack.c.l.b16 %v411
    %v435 = vunpack.c.l.b16 %v412
    %v436 = vunpack.c.l.b16 %v413
    %v437 = vunpack.c.l.b16 %v414
    %v438 = vunpack.c.l.b16 %v415
    %v439 = vpack.c.b16 %v432, %v431
    %v440 = vpack.c.b16 %v434, %v433
    %v441 = vpack.c.b16 %v436, %v435
    %v442 = vpack.c.b16 %v438, %v437
    %447 = vmatprep.subr.bf16.mxu0 0
    %448 = vmatpush1.bf16.msra.mxu0 %v439
    %449 = vmatprep.subr.bf16.mxu0 0
    %450 = vmatpush1.bf16.msra.mxu0 %v440
    %451 = vmatprep.subr.bf16.mxu0 0
    %452 = vmatpush1.bf16.msra.mxu0 %v441
    %453 = vmatprep.subr.bf16.mxu0 0
    %454 = vmatpush1.bf16.msra.mxu0 %v442
    %455 = vmatprep.subr.bf16.mxu0 0
    %456 = vmatpush1.bf16.msra.mxu0 0
    %457 = vmatprep.subr.bf16.mxu0 0
    %458 = vmatpush1.bf16.msra.mxu0 0
    %459 = vmatprep.subr.bf16.mxu0 0
    %460 = vmatpush1.bf16.msra.mxu0 0
    %461 = vmatprep.subr.bf16.mxu0 0
    %462 = vmatpush1.bf16.msra.mxu0 0
    %463 = vmatprep.subr.bf16.mxu0 0
    %464 = vmatpush1.bf16.msra.mxu0 0
    %465 = vmatprep.subr.bf16.mxu0 0
    %466 = vmatpush1.bf16.msra.mxu0 0
    %467 = vmatprep.subr.bf16.mxu0 0
    %468 = vmatpush1.bf16.msra.mxu0 0
    %469 = vmatprep.subr.bf16.mxu0 0
    %470 = vmatpush1.bf16.msra.mxu0 0
    %471 = vmatprep.subr.bf16.mxu0 0
    %472 = vmatpush1.bf16.msra.mxu0 0
    %473 = vmatprep.subr.bf16.mxu0 0
    %474 = vmatpush1.bf16.msra.mxu0 0
    %475 = vmatprep.subr.bf16.mxu0 0
    %476 = vmatpush1.bf16.msra.mxu0 0
    %477 = vmatprep.subr.bf16.mxu0 0
    %478 = vmatpush1.bf16.msra.mxu0 0
    %479 = vmatprep.mubr.bf16.mxu0 0
    %480 = vmatmul.mubr.bf16.gmra.mrb[0].mxu0 %v350
    %v481 = vpop.f32.mrb[0].mxu0
    %v482 = vadd.f32 %v421, %v481
    %v483 = vpop.f32.mrb[0].mxu0
    %v484 = vpop.f32.mrb[0].mxu0
    %v485 = vadd.f32 %v421, %v484
    %v486 = vpop.f32.mrb[0].mxu0
    %487 = vdwg.mxu0
    %v488 = vmax.f32 %v482, 0.0
    %v489 = vmax.f32 %v485, 0.0
    %v490 = vadd.f32 %v488, %v489
    %v491 = vrot.slane %v490, 4
    %v492 = vadd.f32 %v490, %v491
    %v493 = vrot.slane %v492, 2
    %v494 = vadd.f32 %v492, %v493
    %v495 = vrot.slane %v494, 1
    %v496 = vadd.f32 %v494, %v495
    %v497 = vrcp.pop 16.0
    %v498 = vmul.f32 %v496, %v497
    %v499 = vpack.c.bf16 %v498, %v498
    %v500 = vld [vmem:[%s7] sm:$0xf]
    %v501 = vld [vmem:[%s7 + $0x4] sm:$0xf]
    %v502 = vld [vmem:[%s7 + $0x8] sm:$0xf]
    %v503 = vld [vmem:[%s7 + $0xc] sm:$0xf]
    %v504 = vld [vmem:[%s7 + $0x10] sm:$0xf]
    %v505 = vld [vmem:[%s7 + $0x14] sm:$0xf]
    %v506 = vld [vmem:[%s7 + $0x18] sm:$0xf]
    %v507 = vld [vmem:[%s7 + $0x1c] sm:$0xf]
    %v508 = vld [vmem:[%s7 + $0x20] sm:$0xf]
    %v509 = vld [vmem:[%s7 + $0x24] sm:$0xf]
    %v510 = vld [vmem:[%s7 + $0x28] sm:$0xf]
    %v511 = vld [vmem:[%s7 + $0x2c] sm:$0xf]
    %v512 = vld [vmem:[%s7 + $0x30] sm:$0xf]
    %v513 = vld [vmem:[%s7 + $0x34] sm:$0xf]
    %v514 = vld [vmem:[%s7 + $0x38] sm:$0xf]
    %v515 = vld [vmem:[%s7 + $0x3c] sm:$0xf]
    %v516 = vld [vmem:[%s8] sm:$0x1]
    %v533 = vunpack.c.l.b16 %v500
    %v534 = vunpack.c.l.b16 %v501
    %v535 = vunpack.c.l.b16 %v502
    %v536 = vunpack.c.l.b16 %v503
    %v537 = vunpack.c.l.b16 %v504
    %v538 = vunpack.c.l.b16 %v505
    %v539 = vunpack.c.l.b16 %v506
    %v540 = vunpack.c.l.b16 %v507
    %v541 = vunpack.c.l.b16 %v508
    %v542 = vunpack.c.l.b16 %v509
    %v543 = vunpack.c.l.b16 %v510
    %v544 = vunpack.c.l.b16 %v511
    %v545 = vunpack.c.l.b16 %v512
    %v546 = vunpack.c.l.b16 %v513
    %v547 = vunpack.c.l.b16 %v514
    %v548 = vunpack.c.l.b16 %v515
    %v549 = vpack.c.b16 %v534, %v533
    %v550 = vpack.c.b16 %v536, %v535
    %v551 = vpack.c.b16 %v538, %v537
    %v552 = vpack.c.b16 %v540, %v539
    %v553 = vpack.c.b16 %v542, %v541
    %v554 = vpack.c.b16 %v544, %v543
    %v555 = vpack.c.b16 %v546, %v545
    %v556 = vpack.c.b16 %v548, %v547
    %565 = vmatprep.subr.bf16.mxu0 0
    %566 = vmatpush1.bf16.msra.mxu0 %v549
    %567 = vmatprep.subr.bf16.mxu0 0
    %568 = vmatpush1.bf16.msra.mxu0 %v550
    %569 = vmatprep.subr.bf16.mxu0 0
    %570 = vmatpush1.bf16.msra.mxu0 %v551
    %571 = vmatprep.subr.bf16.mxu0 0
    %572 = vmatpush1.bf16.msra.mxu0 %v552
    %573 = vmatprep.subr.bf16.mxu0 0
    %574 = vmatpush1.bf16.msra.mxu0 %v553
    %575 = vmatprep.subr.bf16.mxu0 0
    %576 = vmatpush1.bf16.msra.mxu0 %v554
    %577 = vmatprep.subr.bf16.mxu0 0
    %578 = vmatpush1.bf16.msra.mxu0 %v555
    %579 = vmatprep.subr.bf16.mxu0 0
    %580 = vmatpush1.bf16.msra.mxu0 %v556
    %581 = vmatprep.subr.bf16.mxu0 0
    %582 = vmatpush1.bf16.msra.mxu0 0
    %583 = vmatprep.subr.bf16.mxu0 0
    %584 = vmatpush1.bf16.msra.mxu0 0
    %585 = vmatprep.subr.bf16.mxu0 0
    %586 = vmatpush1.bf16.msra.mxu0 0
    %587 = vmatprep.subr.bf16.mxu0 0
    %588 = vmatpush1.bf16.msra.mxu0 0
    %589 = vmatprep.subr.bf16.mxu0 0
    %590 = vmatpush1.bf16.msra.mxu0 0
    %591 = vmatprep.subr.bf16.mxu0 0
    %592 = vmatpush1.bf16.msra.mxu0 0
    %593 = vmatprep.subr.bf16.mxu0 0
    %594 = vmatpush1.bf16.msra.mxu0 0
    %595 = vmatprep.subr.bf16.mxu0 0
    %596 = vmatpush1.bf16.msra.mxu0 0
    %597 = vmatprep.mubr.bf16.mxu0 0
    %598 = vmatmul.mubr.bf16.gmra.mrb[0].mxu0 %v499
    %v599 = vpop.f32.mrb[0].mxu0
    %v600 = vadd.f32 %v516, %v599
    %v601 = vpop.f32.mrb[0].mxu0
    %v602 = vpop.f32.mrb[0].mxu0
    %v603 = vpop.f32.mrb[0].mxu0
    %604 = vdwg.mxu0
    %vm605 = vcmask 8192
    %606 = vst.msk [vmem:[#allocation3] sm:$0x1] %vm605, %v600
    %v607 = vsel %vm605, %v600, -inf
    %608 = vmax.xlane.f32.xlu0 %v607
    %v609 = vpop.xlane.xlu0 %608
    %v610 = vsub.f32 %v600, %v609
    %v611 = vmul.f32 %v610, 1.442695
    %v612 = vpow.pop %v611
    %v613 = vsel %vm605, %v612, 0.0
    %614 = vadd.xlane.f32.xlu0 %v613
    %v615 = vpop.xlane.xlu0 %614
    %v616 = vrcp.pop %v615
    %v617 = vmul.f32 %v612, %v616
    %v618 = vadd.f32 %v617, 1e-30
    %v619 = vlog2.pop %v618
    %v620 = vmul.f32 %v619, 0.6931472
    %v621 = vrcp.pop 0.6931472
    %v622 = vmul.f32 %v620, %v621
    %v623 = vmul.f32 %v617, %v622
    %v624 = vsel %vm605, %v623, 0.0
    %625 = vadd.xlane.f32.xlu0 %v624
    %v626 = vpop.xlane.xlu0 %625
    %v627 = vsub.f32 0.0, %v626
    %v628 = vmul.f32 %v498, %v627
    %629 = vst [vmem:[%s11] sm:$0x1] %v628
    // Predicated region
    $region38: #{faster_rcnn_meaa_forward.7} parent=1 // pred_check
      _
    $region39: #{faster_rcnn_meaa_forward.7} parent=1 // pred_check_branch
      %631 = sbr.rel (0) target = $region41
    $region40: #{faster_rcnn_meaa_forward.7} parent=1 // pred_region
      _
    $region41: #{faster_rcnn_meaa_forward.7} parent=1 // pred_fallthru
      _
    // Predicated region
    $region42: #{faster_rcnn_meaa_forward.7} parent=1 // pred_check
      _
    $region43: #{faster_rcnn_meaa_forward.7} parent=1 // pred_check_branch
      %633 = sbr.rel (0) target = $region45
    $region44: #{faster_rcnn_meaa_forward.7} parent=1 // pred_region
      _
    $region45: #{faster_rcnn_meaa_forward.7} parent=1 // pred_fallthru
      _
    // Predicated region
    $region46: #{faster_rcnn_meaa_forward.7} parent=1 // pred_check
      _
    $region47: #{faster_rcnn_meaa_forward.7} parent=1 // pred_check_branch
      %635 = sbr.rel (0) target = $region49
    $region48: #{faster_rcnn_meaa_forward.7} parent=1 // pred_region
      _
    $region49: #{faster_rcnn_meaa_forward.7} parent=1 // pred_fallthru
      _
    // Predicated region
    $region50: #{faster_rcnn_meaa_forward.7} parent=1 // pred_check
      _
    $region51: #{faster_rcnn_meaa_forward.7} parent=1 // pred_check_branch
      %637 = sbr.rel (0) target = $region53
    $region52: #{faster_rcnn_meaa_forward.7} parent=1 // pred_region
      %s639 = ssub.s32 16, 16
      %640 = vsyncadd [#allocation4], %s639
      %s642 = sshll.u32 [#allocation3], 4
      %s643 = int_to_ptr.vmem [resolvable:$true] %s642
      %645 = dma.vmem_to_hbm [thread:$0]  %s643, 16, %s12, [#allocation4]
    $region53: #{faster_rcnn_meaa_forward.7} parent=1 // pred_fallthru
      _
    // Predicated region
    $region54: #{faster_rcnn_meaa_forward.7} parent=1 // pred_check
      _
    $region55: #{faster_rcnn_meaa_forward.7} parent=1 // pred_check_branch
      %647 = sbr.rel (0) target = $region57
    $region56: #{faster_rcnn_meaa_forward.7} parent=1 // pred_region
      _
    $region57: #{faster_rcnn_meaa_forward.7} parent=1 // pred_fallthru
      _
    // Predicated region
    $region58: #{faster_rcnn_meaa_forward.7} parent=1 // pred_check
      _
    $region59: #{faster_rcnn_meaa_forward.7} parent=1 // pred_check_branch
      %649 = sbr.rel (0) target = $region61
    $region60: #{faster_rcnn_meaa_forward.7} parent=1 // pred_region
      _
    $region61: #{faster_rcnn_meaa_forward.7} parent=1 // pred_fallthru
      _
    // Predicated region
    $region62: #{faster_rcnn_meaa_forward.7} parent=1 // pred_check
      _
    $region63: #{faster_rcnn_meaa_forward.7} parent=1 // pred_check_branch
      %651 = sbr.rel (0) target = $region65
    $region64: #{faster_rcnn_meaa_forward.7} parent=1 // pred_region
      _
    $region65: #{faster_rcnn_meaa_forward.7} parent=1 // pred_fallthru
      _
    // Predicated region
    $region66: #{faster_rcnn_meaa_forward.7} parent=1 // pred_check
      _
    $region67: #{faster_rcnn_meaa_forward.7} parent=1 // pred_check_branch
      %653 = sbr.rel (0) target = $region69
    $region68: #{faster_rcnn_meaa_forward.7} parent=1 // pred_region
      %654 = dma.done [#allocation4], 16
    $region69: #{faster_rcnn_meaa_forward.7} parent=1 // pred_fallthru
      _
    %655 = vsyncpa [#allocation4], 1

// kernel: faster_rcnn_meaa_forward.8
$region0: #{faster_rcnn_meaa_forward.8}
  #allocation0 [shape = 'u32[]', space=smem, size = 0x4, offset = 0x4, fixed_abs, tag = 'smem constant byte address 0x4 - core index']
  #allocation1 [shape = 'u32[144,128]{1,0:T(1,128)}', space=vmem, size = 0x12000, scoped, tag = 'internal scratch']
  %s0 = inlined_call_operand.vmem [shape: bf16[16,576], index: 0, kind: input, shape index: {}]
  %s1 = inlined_call_operand.vmem [shape: bf16[576,64], index: 1, kind: input, shape index: {}]
  %s2 = inlined_call_operand.vmem [shape: f32[1,64], index: 2, kind: input, shape index: {}]
  %s3 = inlined_call_operand.vmem [shape: bf16[64,18], index: 3, kind: input, shape index: {}]
  %s4 = inlined_call_operand.vmem [shape: f32[1,18], index: 4, kind: input, shape index: {}]
  %s5 = inlined_call_operand.vmem [shape: f32[16,18], index: 5, kind: output, shape index: {}]
  %s6 = sld [smem:[#allocation0]]
  $region30: #{faster_rcnn_meaa_forward.8} parent=0
    _
  %s8 = ssub.s32 1, %s6
  %s9 = scalar_select 0, %s8, %s6
  // Predicated region
  $region2: #{faster_rcnn_meaa_forward.8} parent=0 // pred_check
    _
  $region3: #{faster_rcnn_meaa_forward.8} parent=0 // pred_check_branch
    %11 = sbr.rel (0) target = $region5
  $region4: #{faster_rcnn_meaa_forward.8} parent=0 // pred_region
    _
  $region5: #{faster_rcnn_meaa_forward.8} parent=0 // pred_fallthru
    _
  // Predicated region
  $region6: #{faster_rcnn_meaa_forward.8} parent=0 // pred_check
    _
  $region7: #{faster_rcnn_meaa_forward.8} parent=0 // pred_check_branch
    %13 = sbr.rel (0) target = $region9
  $region8: #{faster_rcnn_meaa_forward.8} parent=0 // pred_region
    _
  $region9: #{faster_rcnn_meaa_forward.8} parent=0 // pred_fallthru
    _
  // Predicated region
  $region10: #{faster_rcnn_meaa_forward.8} parent=0 // pred_check
    _
  $region11: #{faster_rcnn_meaa_forward.8} parent=0 // pred_check_branch
    %15 = sbr.rel (0) target = $region13
  $region12: #{faster_rcnn_meaa_forward.8} parent=0 // pred_region
    _
  $region13: #{faster_rcnn_meaa_forward.8} parent=0 // pred_fallthru
    _
  // Predicated region
  $region14: #{faster_rcnn_meaa_forward.8} parent=0 // pred_check
    _
  $region15: #{faster_rcnn_meaa_forward.8} parent=0 // pred_check_branch
    %17 = sbr.rel (0) target = $region17
  $region16: #{faster_rcnn_meaa_forward.8} parent=0 // pred_region
    _
  $region17: #{faster_rcnn_meaa_forward.8} parent=0 // pred_fallthru
    _
  // Predicated region
  $region18: #{faster_rcnn_meaa_forward.8} parent=0 // pred_check
    _
  $region19: #{faster_rcnn_meaa_forward.8} parent=0 // pred_check_branch
    %19 = sbr.rel (0) target = $region21
  $region20: #{faster_rcnn_meaa_forward.8} parent=0 // pred_region
    _
  $region21: #{faster_rcnn_meaa_forward.8} parent=0 // pred_fallthru
    _
  %v21 = vld [vmem:[%s0] sm:$0xff]
  %v22 = vld [vmem:[%s0 + $0x8] sm:$0xff]
  %v23 = vld [vmem:[%s0 + $0x10] sm:$0xf]
  %v24 = vld [vmem:[%s0 + $0x14] sm:$0xff]
  %v25 = vld [vmem:[%s0 + $0x1c] sm:$0xff]
  %v26 = vld [vmem:[%s0 + $0x24] sm:$0xf]
  %v27 = vld [vmem:[%s1] sm:$0xf]
  %v28 = vld [vmem:[%s1 + $0x4] sm:$0xf]
  %v29 = vld [vmem:[%s1 + $0x8] sm:$0xf]
  %v30 = vld [vmem:[%s1 + $0xc] sm:$0xf]
  %v31 = vld [vmem:[%s1 + $0x10] sm:$0xf]
  %v32 = vld [vmem:[%s1 + $0x14] sm:$0xf]
  %v33 = vld [vmem:[%s1 + $0x18] sm:$0xf]
  %v34 = vld [vmem:[%s1 + $0x1c] sm:$0xf]
  %v35 = vld [vmem:[%s1 + $0x20] sm:$0xf]
  %v36 = vld [vmem:[%s1 + $0x24] sm:$0xf]
  %v37 = vld [vmem:[%s1 + $0x28] sm:$0xf]
  %v38 = vld [vmem:[%s1 + $0x2c] sm:$0xf]
  %v39 = vld [vmem:[%s1 + $0x30] sm:$0xf]
  %v40 = vld [vmem:[%s1 + $0x34] sm:$0xf]
  %v41 = vld [vmem:[%s1 + $0x38] sm:$0xf]
  %v42 = vld [vmem:[%s1 + $0x3c] sm:$0xf]
  %v43 = vld [vmem:[%s1 + $0x40] sm:$0xf]
  %v44 = vld [vmem:[%s1 + $0x44] sm:$0xf]
  %v45 = vld [vmem:[%s1 + $0x48] sm:$0xf]
  %v46 = vld [vmem:[%s1 + $0x4c] sm:$0xf]
  %v47 = vld [vmem:[%s1 + $0x50] sm:$0xf]
  %v48 = vld [vmem:[%s1 + $0x54] sm:$0xf]
  %v49 = vld [vmem:[%s1 + $0x58] sm:$0xf]
  %v50 = vld [vmem:[%s1 + $0x5c] sm:$0xf]
  %v51 = vld [vmem:[%s1 + $0x60] sm:$0xf]
  %v52 = vld [vmem:[%s1 + $0x64] sm:$0xf]
  %v53 = vld [vmem:[%s1 + $0x68] sm:$0xf]
  %v54 = vld [vmem:[%s1 + $0x6c] sm:$0xf]
  %v55 = vld [vmem:[%s1 + $0x70] sm:$0xf]
  %v56 = vld [vmem:[%s1 + $0x74] sm:$0xf]
  %v57 = vld [vmem:[%s1 + $0x78] sm:$0xf]
  %v58 = vld [vmem:[%s1 + $0x7c] sm:$0xf]
  %v59 = vld [vmem:[%s1 + $0x80] sm:$0xf]
  %v60 = vld [vmem:[%s1 + $0x84] sm:$0xf]
  %v61 = vld [vmem:[%s1 + $0x88] sm:$0xf]
  %v62 = vld [vmem:[%s1 + $0x8c] sm:$0xf]
  %v63 = vld [vmem:[%s1 + $0x90] sm:$0xf]
  %v64 = vld [vmem:[%s1 + $0x94] sm:$0xf]
  %v65 = vld [vmem:[%s1 + $0x98] sm:$0xf]
  %v66 = vld [vmem:[%s1 + $0x9c] sm:$0xf]
  %v67 = vld [vmem:[%s1 + $0xa0] sm:$0xf]
  %v68 = vld [vmem:[%s1 + $0xa4] sm:$0xf]
  %v69 = vld [vmem:[%s1 + $0xa8] sm:$0xf]
  %v70 = vld [vmem:[%s1 + $0xac] sm:$0xf]
  %v71 = vld [vmem:[%s1 + $0xb0] sm:$0xf]
  %v72 = vld [vmem:[%s1 + $0xb4] sm:$0xf]
  %v73 = vld [vmem:[%s1 + $0xb8] sm:$0xf]
  %v74 = vld [vmem:[%s1 + $0xbc] sm:$0xf]
  %v75 = vld [vmem:[%s1 + $0xc0] sm:$0xf]
  %v76 = vld [vmem:[%s1 + $0xc4] sm:$0xf]
  %v77 = vld [vmem:[%s1 + $0xc8] sm:$0xf]
  %v78 = vld [vmem:[%s1 + $0xcc] sm:$0xf]
  %v79 = vld [vmem:[%s1 + $0xd0] sm:$0xf]
  %v80 = vld [vmem:[%s1 + $0xd4] sm:$0xf]
  %v81 = vld [vmem:[%s1 + $0xd8] sm:$0xf]
  %v82 = vld [vmem:[%s1 + $0xdc] sm:$0xf]
  %v83 = vld [vmem:[%s1 + $0xe0] sm:$0xf]
  %v84 = vld [vmem:[%s1 + $0xe4] sm:$0xf]
  %v85 = vld [vmem:[%s1 + $0xe8] sm:$0xf]
  %v86 = vld [vmem:[%s1 + $0xec] sm:$0xf]
  %v87 = vld [vmem:[%s1 + $0xf0] sm:$0xf]
  %v88 = vld [vmem:[%s1 + $0xf4] sm:$0xf]
  %v89 = vld [vmem:[%s1 + $0xf8] sm:$0xf]
  %v90 = vld [vmem:[%s1 + $0xfc] sm:$0xf]
  %v91 = vld [vmem:[%s1 + $0x100] sm:$0xf]
  %v92 = vld [vmem:[%s1 + $0x104] sm:$0xf]
  %v93 = vld [vmem:[%s1 + $0x108] sm:$0xf]
  %v94 = vld [vmem:[%s1 + $0x10c] sm:$0xf]
  %v95 = vld [vmem:[%s1 + $0x110] sm:$0xf]
  %v96 = vld [vmem:[%s1 + $0x114] sm:$0xf]
  %v97 = vld [vmem:[%s1 + $0x118] sm:$0xf]
  %v98 = vld [vmem:[%s1 + $0x11c] sm:$0xf]
  %v99 = vld [vmem:[%s2] sm:$0x1]
  %v101 = vlaneseq
  %v102 = vshrl.u32 %v101, 7
  %v103 = vsub.s32 0, %v102
  %v104 = vrot.slane %v99, %v103
  %v112 = vunpack.c.l.b16 %v21
  %v113 = vunpack.c.h.b16 %v21
  %v114 = vunpack.c.l.b16 %v22
  %v115 = vunpack.c.h.b16 %v22
  %v116 = vunpack.c.l.b16 %v23
  %v117 = vunpack.c.l.b16 %v24
  %v118 = vunpack.c.h.b16 %v24
  %v119 = vunpack.c.l.b16 %v25
  %v120 = vunpack.c.h.b16 %v25
  %v121 = vunpack.c.l.b16 %v26
  %v122 = vpack.c.b16 %v117, %v112
  %v123 = vpack.c.b16 %v118, %v113
  %v124 = vpack.c.b16 %v119, %v114
  %v125 = vpack.c.b16 %v120, %v115
  %v126 = vpack.c.b16 %v121, %v116
  %v203 = vunpack.c.l.b16 %v27
  %v204 = vunpack.c.l.b16 %v28
  %v205 = vunpack.c.l.b16 %v29
  %v206 = vunpack.c.l.b16 %v30
  %v207 = vunpack.c.l.b16 %v31
  %v208 = vunpack.c.l.b16 %v32
  %v209 = vunpack.c.l.b16 %v33
  %v210 = vunpack.c.l.b16 %v34
  %v211 = vunpack.c.l.b16 %v35
  %v212 = vunpack.c.l.b16 %v36
  %v213 = vunpack.c.l.b16 %v37
  %v214 = vunpack.c.l.b16 %v38
  %v215 = vunpack.c.l.b16 %v39
  %v216 = vunpack.c.l.b16 %v40
  %v217 = vunpack.c.l.b16 %v41
  %v218 = vunpack.c.l.b16 %v42
  %v219 = vunpack.c.l.b16 %v43
  %v220 = vunpack.c.l.b16 %v44
  %v221 = vunpack.c.l.b16 %v45
  %v222 = vunpack.c.l.b16 %v46
  %v223 = vunpack.c.l.b16 %v47
  %v224 = vunpack.c.l.b16 %v48
  %v225 = vunpack.c.l.b16 %v49
  %v226 = vunpack.c.l.b16 %v50
  %v227 = vunpack.c.l.b16 %v51
  %v228 = vunpack.c.l.b16 %v52
  %v229 = vunpack.c.l.b16 %v53
  %v230 = vunpack.c.l.b16 %v54
  %v231 = vunpack.c.l.b16 %v55
  %v232 = vunpack.c.l.b16 %v56
  %v233 = vunpack.c.l.b16 %v57
  %v234 = vunpack.c.l.b16 %v58
  %v235 = vunpack.c.l.b16 %v59
  %v236 = vunpack.c.l.b16 %v60
  %v237 = vunpack.c.l.b16 %v61
  %v238 = vunpack.c.l.b16 %v62
  %v239 = vunpack.c.l.b16 %v63
  %v240 = vunpack.c.l.b16 %v64
  %v241 = vunpack.c.l.b16 %v65
  %v242 = vunpack.c.l.b16 %v66
  %v243 = vunpack.c.l.b16 %v67
  %v244 = vunpack.c.l.b16 %v68
  %v245 = vunpack.c.l.b16 %v69
  %v246 = vunpack.c.l.b16 %v70
  %v247 = vunpack.c.l.b16 %v71
  %v248 = vunpack.c.l.b16 %v72
  %v249 = vunpack.c.l.b16 %v73
  %v250 = vunpack.c.l.b16 %v74
  %v251 = vunpack.c.l.b16 %v75
  %v252 = vunpack.c.l.b16 %v76
  %v253 = vunpack.c.l.b16 %v77
  %v254 = vunpack.c.l.b16 %v78
  %v255 = vunpack.c.l.b16 %v79
  %v256 = vunpack.c.l.b16 %v80
  %v257 = vunpack.c.l.b16 %v81
  %v258 = vunpack.c.l.b16 %v82
  %v259 = vunpack.c.l.b16 %v83
  %v260 = vunpack.c.l.b16 %v84
  %v261 = vunpack.c.l.b16 %v85
  %v262 = vunpack.c.l.b16 %v86
  %v263 = vunpack.c.l.b16 %v87
  %v264 = vunpack.c.l.b16 %v88
  %v265 = vunpack.c.l.b16 %v89
  %v266 = vunpack.c.l.b16 %v90
  %v267 = vunpack.c.l.b16 %v91
  %v268 = vunpack.c.l.b16 %v92
  %v269 = vunpack.c.l.b16 %v93
  %v270 = vunpack.c.l.b16 %v94
  %v271 = vunpack.c.l.b16 %v95
  %v272 = vunpack.c.l.b16 %v96
  %v273 = vunpack.c.l.b16 %v97
  %v274 = vunpack.c.l.b16 %v98
  %v275 = vpack.c.b16 %v204, %v203
  %v276 = vpack.c.b16 %v206, %v205
  %v277 = vpack.c.b16 %v208, %v207
  %v278 = vpack.c.b16 %v210, %v209
  %v279 = vpack.c.b16 %v212, %v211
  %v280 = vpack.c.b16 %v214, %v213
  %v281 = vpack.c.b16 %v216, %v215
  %v282 = vpack.c.b16 %v218, %v217
  %v283 = vpack.c.b16 %v220, %v219
  %v284 = vpack.c.b16 %v222, %v221
  %v285 = vpack.c.b16 %v224, %v223
  %v286 = vpack.c.b16 %v226, %v225
  %v287 = vpack.c.b16 %v228, %v227
  %v288 = vpack.c.b16 %v230, %v229
  %v289 = vpack.c.b16 %v232, %v231
  %v290 = vpack.c.b16 %v234, %v233
  %v291 = vpack.c.b16 %v236, %v235
  %v292 = vpack.c.b16 %v238, %v237
  %v293 = vpack.c.b16 %v240, %v239
  %v294 = vpack.c.b16 %v242, %v241
  %v295 = vpack.c.b16 %v244, %v243
  %v296 = vpack.c.b16 %v246, %v245
  %v297 = vpack.c.b16 %v248, %v247
  %v298 = vpack.c.b16 %v250, %v249
  %v299 = vpack.c.b16 %v252, %v251
  %v300 = vpack.c.b16 %v254, %v253
  %v301 = vpack.c.b16 %v256, %v255
  %v302 = vpack.c.b16 %v258, %v257
  %v303 = vpack.c.b16 %v260, %v259
  %v304 = vpack.c.b16 %v262, %v261
  %v305 = vpack.c.b16 %v264, %v263
  %v306 = vpack.c.b16 %v266, %v265
  %v307 = vpack.c.b16 %v268, %v267
  %v308 = vpack.c.b16 %v270, %v269
  %v309 = vpack.c.b16 %v272, %v271
  %v310 = vpack.c.b16 %v274, %v273
  %vm347 = vcmask 523264
  %v349 = vsel %vm347, %v126, 0
  %351 = vmatprep.subr.bf16.mxu0 0
  %352 = vmatpush1.bf16.msra.mxu0 %v275
  %353 = vmatprep.subr.bf16.mxu0 0
  %354 = vmatpush1.bf16.msra.mxu0 %v276
  %355 = vmatprep.subr.bf16.mxu0 0
  %356 = vmatpush1.bf16.msra.mxu0 %v277
  %357 = vmatprep.subr.bf16.mxu0 0
  %358 = vmatpush1.bf16.msra.mxu0 %v278
  %359 = vmatprep.subr.bf16.mxu0 0
  %360 = vmatpush1.bf16.msra.mxu0 %v279
  %361 = vmatprep.subr.bf16.mxu0 0
  %362 = vmatpush1.bf16.msra.mxu0 %v280
  %363 = vmatprep.subr.bf16.mxu0 0
  %364 = vmatpush1.bf16.msra.mxu0 %v281
  %365 = vmatprep.subr.bf16.mxu0 0
  %366 = vmatpush1.bf16.msra.mxu0 %v282
  %367 = vmatprep.subr.bf16.mxu0 0
  %368 = vmatpush1.bf16.msra.mxu0 %v283
  %369 = vmatprep.subr.bf16.mxu0 0
  %370 = vmatpush1.bf16.msra.mxu0 %v284
  %371 = vmatprep.subr.bf16.mxu0 0
  %372 = vmatpush1.bf16.msra.mxu0 %v285
  %373 = vmatprep.subr.bf16.mxu0 0
  %374 = vmatpush1.bf16.msra.mxu0 %v286
  %375 = vmatprep.subr.bf16.mxu0 0
  %376 = vmatpush1.bf16.msra.mxu0 %v287
  %377 = vmatprep.subr.bf16.mxu0 0
  %378 = vmatpush1.bf16.msra.mxu0 %v288
  %379 = vmatprep.subr.bf16.mxu0 0
  %380 = vmatpush1.bf16.msra.mxu0 %v289
  %381 = vmatprep.subr.bf16.mxu0 0
  %382 = vmatpush1.bf16.msra.mxu0 %v290
  %383 = vmatprep.mubr.bf16.mxu0 %v123
  %384 = vmatmul.mubr.bf16.gmra.mrb[0].mxu0 %v122
  %v385 = vpop.f32.mrb[0].mxu0
  %v386 = vadd.f32 %v104, %v385
  %v387 = vpop.f32.mrb[0].mxu0
  %v388 = vpop.f32.mrb[0].mxu0
  %v389 = vadd.f32 %v104, %v388
  %v390 = vpop.f32.mrb[0].mxu0
  %391 = vdwg.mxu0
  %392 = vmatprep.subr.bf16.mxu0 0
  %393 = vmatpush1.bf16.msra.mxu0 %v291
  %394 = vmatprep.subr.bf16.mxu0 0
  %395 = vmatpush1.bf16.msra.mxu0 %v292
  %396 = vmatprep.subr.bf16.mxu0 0
  %397 = vmatpush1.bf16.msra.mxu0 %v293
  %398 = vmatprep.subr.bf16.mxu0 0
  %399 = vmatpush1.bf16.msra.mxu0 %v294
  %400 = vmatprep.subr.bf16.mxu0 0
  %401 = vmatpush1.bf16.msra.mxu0 %v295
  %402 = vmatprep.subr.bf16.mxu0 0
  %403 = vmatpush1.bf16.msra.mxu0 %v296
  %404 = vmatprep.subr.bf16.mxu0 0
  %405 = vmatpush1.bf16.msra.mxu0 %v297
  %406 = vmatprep.subr.bf16.mxu0 0
  %407 = vmatpush1.bf16.msra.mxu0 %v298
  %408 = vmatprep.subr.bf16.mxu0 0
  %409 = vmatpush1.bf16.msra.mxu0 %v299
  %410 = vmatprep.subr.bf16.mxu0 0
  %411 = vmatpush1.bf16.msra.mxu0 %v300
  %412 = vmatprep.subr.bf16.mxu0 0
  %413 = vmatpush1.bf16.msra.mxu0 %v301
  %414 = vmatprep.subr.bf16.mxu0 0
  %415 = vmatpush1.bf16.msra.mxu0 %v302
  %416 = vmatprep.subr.bf16.mxu0 0
  %417 = vmatpush1.bf16.msra.mxu0 %v303
  %418 = vmatprep.subr.bf16.mxu0 0
  %419 = vmatpush1.bf16.msra.mxu0 %v304
  %420 = vmatprep.subr.bf16.mxu0 0
  %421 = vmatpush1.bf16.msra.mxu0 %v305
  %422 = vmatprep.subr.bf16.mxu0 0
  %423 = vmatpush1.bf16.msra.mxu0 %v306
  %424 = vmatprep.mubr.bf16.mxu0 %v125
  %425 = vmatmul.mubr.bf16.gmra.mrb[0].mxu0 %v124
  %v426 = vpop.f32.mrb[0].mxu0
  %v427 = vadd.f32 %v386, %v426
  %v428 = vpop.f32.mrb[0].mxu0
  %v429 = vpop.f32.mrb[0].mxu0
  %v430 = vadd.f32 %v389, %v429
  %v431 = vpop.f32.mrb[0].mxu0
  %432 = vdwg.mxu0
  %433 = vmatprep.subr.bf16.mxu0 0
  %434 = vmatpush1.bf16.msra.mxu0 %v307
  %435 = vmatprep.subr.bf16.mxu0 0
  %436 = vmatpush1.bf16.msra.mxu0 %v308
  %437 = vmatprep.subr.bf16.mxu0 0
  %438 = vmatpush1.bf16.msra.mxu0 %v309
  %439 = vmatprep.subr.bf16.mxu0 0
  %440 = vmatpush1.bf16.msra.mxu0 %v310
  %441 = vmatprep.subr.bf16.mxu0 0
  %442 = vmatpush1.bf16.msra.mxu0 0
  %443 = vmatprep.subr.bf16.mxu0 0
  %444 = vmatpush1.bf16.msra.mxu0 0
  %445 = vmatprep.subr.bf16.mxu0 0
  %446 = vmatpush1.bf16.msra.mxu0 0
  %447 = vmatprep.subr.bf16.mxu0 0
  %448 = vmatpush1.bf16.msra.mxu0 0
  %449 = vmatprep.subr.bf16.mxu0 0
  %450 = vmatpush1.bf16.msra.mxu0 0
  %451 = vmatprep.subr.bf16.mxu0 0
  %452 = vmatpush1.bf16.msra.mxu0 0
  %453 = vmatprep.subr.bf16.mxu0 0
  %454 = vmatpush1.bf16.msra.mxu0 0
  %455 = vmatprep.subr.bf16.mxu0 0
  %456 = vmatpush1.bf16.msra.mxu0 0
  %457 = vmatprep.subr.bf16.mxu0 0
  %458 = vmatpush1.bf16.msra.mxu0 0
  %459 = vmatprep.subr.bf16.mxu0 0
  %460 = vmatpush1.bf16.msra.mxu0 0
  %461 = vmatprep.subr.bf16.mxu0 0
  %462 = vmatpush1.bf16.msra.mxu0 0
  %463 = vmatprep.subr.bf16.mxu0 0
  %464 = vmatpush1.bf16.msra.mxu0 0
  %465 = vmatprep.mubr.bf16.mxu0 0
  %466 = vmatmul.mubr.bf16.gmra.mrb[0].mxu0 %v349
  %v467 = vpop.f32.mrb[0].mxu0
  %v468 = vadd.f32 %v427, %v467
  %v469 = vpop.f32.mrb[0].mxu0
  %v470 = vpop.f32.mrb[0].mxu0
  %v471 = vadd.f32 %v430, %v470
  %v472 = vpop.f32.mrb[0].mxu0
  %473 = vdwg.mxu0
  %v474 = vmax.f32 %v468, 0.0
  %v475 = vmax.f32 %v471, 0.0
  %v476 = vpack.c.bf16 %v475, %v474
  %v477 = vld [vmem:[%s3] sm:$0xf]
  %v478 = vld [vmem:[%s3 + $0x4] sm:$0xf]
  %v479 = vld [vmem:[%s3 + $0x8] sm:$0xf]
  %v480 = vld [vmem:[%s3 + $0xc] sm:$0xf]
  %v481 = vld [vmem:[%s3 + $0x10] sm:$0xf]
  %v482 = vld [vmem:[%s3 + $0x14] sm:$0xf]
  %v483 = vld [vmem:[%s3 + $0x18] sm:$0xf]
  %v484 = vld [vmem:[%s3 + $0x1c] sm:$0xf]
  %v485 = vld [vmem:[%s4] sm:$0x1]
  %v487 = vlaneseq
  %v488 = vshrl.u32 %v487, 7
  %v489 = vsub.s32 0, %v488
  %v490 = vrot.slane %v485, %v489
  %v500 = vunpack.c.l.b16 %v477
  %v501 = vunpack.c.l.b16 %v478
  %v502 = vunpack.c.l.b16 %v479
  %v503 = vunpack.c.l.b16 %v480
  %v504 = vunpack.c.l.b16 %v481
  %v505 = vunpack.c.l.b16 %v482
  %v506 = vunpack.c.l.b16 %v483
  %v507 = vunpack.c.l.b16 %v484
  %v508 = vpack.c.b16 %v501, %v500
  %v509 = vpack.c.b16 %v503, %v502
  %v510 = vpack.c.b16 %v505, %v504
  %v511 = vpack.c.b16 %v507, %v506
  %v517 = vsel %vm347, %v476, 0
  %519 = vmatprep.subr.bf16.mxu0 0
  %520 = vmatpush1.bf16.msra.mxu0 %v508
  %521 = vmatprep.subr.bf16.mxu0 0
  %522 = vmatpush1.bf16.msra.mxu0 %v509
  %523 = vmatprep.subr.bf16.mxu0 0
  %524 = vmatpush1.bf16.msra.mxu0 %v510
  %525 = vmatprep.subr.bf16.mxu0 0
  %526 = vmatpush1.bf16.msra.mxu0 %v511
  %527 = vmatprep.subr.bf16.mxu0 0
  %528 = vmatpush1.bf16.msra.mxu0 0
  %529 = vmatprep.subr.bf16.mxu0 0
  %530 = vmatpush1.bf16.msra.mxu0 0
  %531 = vmatprep.subr.bf16.mxu0 0
  %532 = vmatpush1.bf16.msra.mxu0 0
  %533 = vmatprep.subr.bf16.mxu0 0
  %534 = vmatpush1.bf16.msra.mxu0 0
  %535 = vmatprep.subr.bf16.mxu0 0
  %536 = vmatpush1.bf16.msra.mxu0 0
  %537 = vmatprep.subr.bf16.mxu0 0
  %538 = vmatpush1.bf16.msra.mxu0 0
  %539 = vmatprep.subr.bf16.mxu0 0
  %540 = vmatpush1.bf16.msra.mxu0 0
  %541 = vmatprep.subr.bf16.mxu0 0
  %542 = vmatpush1.bf16.msra.mxu0 0
  %543 = vmatprep.subr.bf16.mxu0 0
  %544 = vmatpush1.bf16.msra.mxu0 0
  %545 = vmatprep.subr.bf16.mxu0 0
  %546 = vmatpush1.bf16.msra.mxu0 0
  %547 = vmatprep.subr.bf16.mxu0 0
  %548 = vmatpush1.bf16.msra.mxu0 0
  %549 = vmatprep.subr.bf16.mxu0 0
  %550 = vmatpush1.bf16.msra.mxu0 0
  %551 = vmatprep.mubr.bf16.mxu0 0
  %552 = vmatmul.mubr.bf16.gmra.mrb[0].mxu0 %v517
  %v553 = vpop.f32.mrb[0].mxu0
  %v554 = vadd.f32 %v490, %v553
  %v555 = vpop.f32.mrb[0].mxu0
  %v556 = vpop.f32.mrb[0].mxu0
  %v557 = vadd.f32 %v490, %v556
  %v558 = vpop.f32.mrb[0].mxu0
  %559 = vdwg.mxu0
  %vm560 = vcmask 146432
  %561 = vst.msk [vmem:[%s5] sm:$0xff] %vm560, %v554
  %562 = vst.msk [vmem:[%s5 + $0x8] sm:$0xff] %vm560, %v557
  // Predicated region
  $region22: #{faster_rcnn_meaa_forward.8} parent=0 // pred_check
    _
  $region23: #{faster_rcnn_meaa_forward.8} parent=0 // pred_check_branch
    %564 = sbr.rel (0) target = $region25
  $region24: #{faster_rcnn_meaa_forward.8} parent=0 // pred_region
    _
  $region25: #{faster_rcnn_meaa_forward.8} parent=0 // pred_fallthru
    _
  // Predicated region
  $region26: #{faster_rcnn_meaa_forward.8} parent=0 // pred_check
    _
  $region27: #{faster_rcnn_meaa_forward.8} parent=0 // pred_check_branch
    %566 = sbr.rel (0) target = $region29
  $region28: #{faster_rcnn_meaa_forward.8} parent=0 // pred_region
    _
  $region29: #{faster_rcnn_meaa_forward.8} parent=0 // pred_fallthru
    _

// kernel: faster_rcnn_meaa_forward.9
$region0: #{faster_rcnn_meaa_forward.9}
  #allocation0 [shape = 'u32[]', space=smem, size = 0x4, offset = 0x4, fixed_abs, tag = 'smem constant byte address 0x4 - core index']
  #allocation1 [shape = 'u32[144,128]{1,0:T(1,128)}', space=vmem, size = 0x12000, scoped, tag = 'internal scratch']
  %s0 = inlined_call_operand.vmem [shape: bf16[8,1024], index: 0, kind: input, shape index: {}]
  %s1 = inlined_call_operand.vmem [shape: bf16[1024,256], index: 1, kind: input, shape index: {}]
  %s2 = inlined_call_operand.vmem [shape: f32[1,256], index: 2, kind: input, shape index: {}]
  %s3 = inlined_call_operand.vmem [shape: bf16[1,384], index: 3, kind: input, shape index: {}]
  %s4 = inlined_call_operand.vmem [shape: bf16[384,128], index: 4, kind: input, shape index: {}]
  %s5 = inlined_call_operand.vmem [shape: bf16[256,128], index: 5, kind: input, shape index: {}]
  %s6 = inlined_call_operand.vmem [shape: f32[1,128], index: 6, kind: input, shape index: {}]
  %s7 = inlined_call_operand.vmem [shape: f32[8,128], index: 7, kind: output, shape index: {0}]
  %s8 = inlined_call_operand.vmem [shape: f32[8,128], index: 8, kind: output, shape index: {1}]
  %9 = xla_tuple %s7, %s8
  %s10 = sld [smem:[#allocation0]]
  $region46: #{faster_rcnn_meaa_forward.9} parent=0
    _
  %s12 = ssub.s32 1, %s10
  %s13 = scalar_select 0, %s12, %s10
  // Predicated region
  $region2: #{faster_rcnn_meaa_forward.9} parent=0 // pred_check
    _
  $region3: #{faster_rcnn_meaa_forward.9} parent=0 // pred_check_branch
    %15 = sbr.rel (0) target = $region5
  $region4: #{faster_rcnn_meaa_forward.9} parent=0 // pred_region
    _
  $region5: #{faster_rcnn_meaa_forward.9} parent=0 // pred_fallthru
    _
  // Predicated region
  $region6: #{faster_rcnn_meaa_forward.9} parent=0 // pred_check
    _
  $region7: #{faster_rcnn_meaa_forward.9} parent=0 // pred_check_branch
    %17 = sbr.rel (0) target = $region9
  $region8: #{faster_rcnn_meaa_forward.9} parent=0 // pred_region
    _
  $region9: #{faster_rcnn_meaa_forward.9} parent=0 // pred_fallthru
    _
  // Predicated region
  $region10: #{faster_rcnn_meaa_forward.9} parent=0 // pred_check
    _
  $region11: #{faster_rcnn_meaa_forward.9} parent=0 // pred_check_branch
    %19 = sbr.rel (0) target = $region13
  $region12: #{faster_rcnn_meaa_forward.9} parent=0 // pred_region
    _
  $region13: #{faster_rcnn_meaa_forward.9} parent=0 // pred_fallthru
    _
  // Predicated region
  $region14: #{faster_rcnn_meaa_forward.9} parent=0 // pred_check
    _
  $region15: #{faster_rcnn_meaa_forward.9} parent=0 // pred_check_branch
    %21 = sbr.rel (0) target = $region17
  $region16: #{faster_rcnn_meaa_forward.9} parent=0 // pred_region
    _
  $region17: #{faster_rcnn_meaa_forward.9} parent=0 // pred_fallthru
    _
  // Predicated region
  $region18: #{faster_rcnn_meaa_forward.9} parent=0 // pred_check
    _
  $region19: #{faster_rcnn_meaa_forward.9} parent=0 // pred_check_branch
    %23 = sbr.rel (0) target = $region21
  $region20: #{faster_rcnn_meaa_forward.9} parent=0 // pred_region
    _
  $region21: #{faster_rcnn_meaa_forward.9} parent=0 // pred_fallthru
    _
  // Predicated region
  $region22: #{faster_rcnn_meaa_forward.9} parent=0 // pred_check
    _
  $region23: #{faster_rcnn_meaa_forward.9} parent=0 // pred_check_branch
    %25 = sbr.rel (0) target = $region25
  $region24: #{faster_rcnn_meaa_forward.9} parent=0 // pred_region
    _
  $region25: #{faster_rcnn_meaa_forward.9} parent=0 // pred_fallthru
    _
  // Predicated region
  $region26: #{faster_rcnn_meaa_forward.9} parent=0 // pred_check
    _
  $region27: #{faster_rcnn_meaa_forward.9} parent=0 // pred_check_branch
    %27 = sbr.rel (0) target = $region29
  $region28: #{faster_rcnn_meaa_forward.9} parent=0 // pred_region
    _
  $region29: #{faster_rcnn_meaa_forward.9} parent=0 // pred_fallthru
    _
  %v29 = vld [vmem:[%s0] sm:$0xff]
  %v30 = vld [vmem:[%s0 + $0x8] sm:$0xff]
  %v31 = vld [vmem:[%s0 + $0x10] sm:$0xff]
  %v32 = vld [vmem:[%s0 + $0x18] sm:$0xff]
  %v33 = vld [vmem:[%s1] sm:$0xff]
  %v34 = vld [vmem:[%s1 + $0x8] sm:$0xff]
  %v35 = vld [vmem:[%s1 + $0x10] sm:$0xff]
  %v36 = vld [vmem:[%s1 + $0x18] sm:$0xff]
  %v37 = vld [vmem:[%s1 + $0x20] sm:$0xff]
  %v38 = vld [vmem:[%s1 + $0x28] sm:$0xff]
  %v39 = vld [vmem:[%s1 + $0x30] sm:$0xff]
  %v40 = vld [vmem:[%s1 + $0x38] sm:$0xff]
  %v41 = vld [vmem:[%s1 + $0x40] sm:$0xff]
  %v42 = vld [vmem:[%s1 + $0x48] sm:$0xff]
  %v43 = vld [vmem:[%s1 + $0x50] sm:$0xff]
  %v44 = vld [vmem:[%s1 + $0x58] sm:$0xff]
  %v45 = vld [vmem:[%s1 + $0x60] sm:$0xff]
  %v46 = vld [vmem:[%s1 + $0x68] sm:$0xff]
  %v47 = vld [vmem:[%s1 + $0x70] sm:$0xff]
  %v48 = vld [vmem:[%s1 + $0x78] sm:$0xff]
  %v49 = vld [vmem:[%s1 + $0x80] sm:$0xff]
  %v50 = vld [vmem:[%s1 + $0x88] sm:$0xff]
  %v51 = vld [vmem:[%s1 + $0x90] sm:$0xff]
  %v52 = vld [vmem:[%s1 + $0x98] sm:$0xff]
  %v53 = vld [vmem:[%s1 + $0xa0] sm:$0xff]
  %v54 = vld [vmem:[%s1 + $0xa8] sm:$0xff]
  %v55 = vld [vmem:[%s1 + $0xb0] sm:$0xff]
  %v56 = vld [vmem:[%s1 + $0xb8] sm:$0xff]
  %v57 = vld [vmem:[%s1 + $0xc0] sm:$0xff]
  %v58 = vld [vmem:[%s1 + $0xc8] sm:$0xff]
  %v59 = vld [vmem:[%s1 + $0xd0] sm:$0xff]
  %v60 = vld [vmem:[%s1 + $0xd8] sm:$0xff]
  %v61 = vld [vmem:[%s1 + $0xe0] sm:$0xff]
  %v62 = vld [vmem:[%s1 + $0xe8] sm:$0xff]
  %v63 = vld [vmem:[%s1 + $0xf0] sm:$0xff]
  %v64 = vld [vmem:[%s1 + $0xf8] sm:$0xff]
  %v65 = vld [vmem:[%s1 + $0x100] sm:$0xff]
  %v66 = vld [vmem:[%s1 + $0x108] sm:$0xff]
  %v67 = vld [vmem:[%s1 + $0x110] sm:$0xff]
  %v68 = vld [vmem:[%s1 + $0x118] sm:$0xff]
  %v69 = vld [vmem:[%s1 + $0x120] sm:$0xff]
  %v70 = vld [vmem:[%s1 + $0x128] sm:$0xff]
  %v71 = vld [vmem:[%s1 + $0x130] sm:$0xff]
  %v72 = vld [vmem:[%s1 + $0x138] sm:$0xff]
  %v73 = vld [vmem:[%s1 + $0x140] sm:$0xff]
  %v74 = vld [vmem:[%s1 + $0x148] sm:$0xff]
  %v75 = vld [vmem:[%s1 + $0x150] sm:$0xff]
  %v76 = vld [vmem:[%s1 + $0x158] sm:$0xff]
  %v77 = vld [vmem:[%s1 + $0x160] sm:$0xff]
  %v78 = vld [vmem:[%s1 + $0x168] sm:$0xff]
  %v79 = vld [vmem:[%s1 + $0x170] sm:$0xff]
  %v80 = vld [vmem:[%s1 + $0x178] sm:$0xff]
  %v81 = vld [vmem:[%s1 + $0x180] sm:$0xff]
  %v82 = vld [vmem:[%s1 + $0x188] sm:$0xff]
  %v83 = vld [vmem:[%s1 + $0x190] sm:$0xff]
  %v84 = vld [vmem:[%s1 + $0x198] sm:$0xff]
  %v85 = vld [vmem:[%s1 + $0x1a0] sm:$0xff]
  %v86 = vld [vmem:[%s1 + $0x1a8] sm:$0xff]
  %v87 = vld [vmem:[%s1 + $0x1b0] sm:$0xff]
  %v88 = vld [vmem:[%s1 + $0x1b8] sm:$0xff]
  %v89 = vld [vmem:[%s1 + $0x1c0] sm:$0xff]
  %v90 = vld [vmem:[%s1 + $0x1c8] sm:$0xff]
  %v91 = vld [vmem:[%s1 + $0x1d0] sm:$0xff]
  %v92 = vld [vmem:[%s1 + $0x1d8] sm:$0xff]
  %v93 = vld [vmem:[%s1 + $0x1e0] sm:$0xff]
  %v94 = vld [vmem:[%s1 + $0x1e8] sm:$0xff]
  %v95 = vld [vmem:[%s1 + $0x1f0] sm:$0xff]
  %v96 = vld [vmem:[%s1 + $0x1f8] sm:$0xff]
  %v97 = vld [vmem:[%s1 + $0x200] sm:$0xff]
  %v98 = vld [vmem:[%s1 + $0x208] sm:$0xff]
  %v99 = vld [vmem:[%s1 + $0x210] sm:$0xff]
  %v100 = vld [vmem:[%s1 + $0x218] sm:$0xff]
  %v101 = vld [vmem:[%s1 + $0x220] sm:$0xff]
  %v102 = vld [vmem:[%s1 + $0x228] sm:$0xff]
  %v103 = vld [vmem:[%s1 + $0x230] sm:$0xff]
  %v104 = vld [vmem:[%s1 + $0x238] sm:$0xff]
  %v105 = vld [vmem:[%s1 + $0x240] sm:$0xff]
  %v106 = vld [vmem:[%s1 + $0x248] sm:$0xff]
  %v107 = vld [vmem:[%s1 + $0x250] sm:$0xff]
  %v108 = vld [vmem:[%s1 + $0x258] sm:$0xff]
  %v109 = vld [vmem:[%s1 + $0x260] sm:$0xff]
  %v110 = vld [vmem:[%s1 + $0x268] sm:$0xff]
  %v111 = vld [vmem:[%s1 + $0x270] sm:$0xff]
  %v112 = vld [vmem:[%s1 + $0x278] sm:$0xff]
  %v113 = vld [vmem:[%s1 + $0x280] sm:$0xff]
  %v114 = vld [vmem:[%s1 + $0x288] sm:$0xff]
  %v115 = vld [vmem:[%s1 + $0x290] sm:$0xff]
  %v116 = vld [vmem:[%s1 + $0x298] sm:$0xff]
  %v117 = vld [vmem:[%s1 + $0x2a0] sm:$0xff]
  %v118 = vld [vmem:[%s1 + $0x2a8] sm:$0xff]
  %v119 = vld [vmem:[%s1 + $0x2b0] sm:$0xff]
  %v120 = vld [vmem:[%s1 + $0x2b8] sm:$0xff]
  %v121 = vld [vmem:[%s1 + $0x2c0] sm:$0xff]
  %v122 = vld [vmem:[%s1 + $0x2c8] sm:$0xff]
  %v123 = vld [vmem:[%s1 + $0x2d0] sm:$0xff]
  %v124 = vld [vmem:[%s1 + $0x2d8] sm:$0xff]
  %v125 = vld [vmem:[%s1 + $0x2e0] sm:$0xff]
  %v126 = vld [vmem:[%s1 + $0x2e8] sm:$0xff]
  %v127 = vld [vmem:[%s1 + $0x2f0] sm:$0xff]
  %v128 = vld [vmem:[%s1 + $0x2f8] sm:$0xff]
  %v129 = vld [vmem:[%s1 + $0x300] sm:$0xff]
  %v130 = vld [vmem:[%s1 + $0x308] sm:$0xff]
  %v131 = vld [vmem:[%s1 + $0x310] sm:$0xff]
  %v132 = vld [vmem:[%s1 + $0x318] sm:$0xff]
  %v133 = vld [vmem:[%s1 + $0x320] sm:$0xff]
  %v134 = vld [vmem:[%s1 + $0x328] sm:$0xff]
  %v135 = vld [vmem:[%s1 + $0x330] sm:$0xff]
  %v136 = vld [vmem:[%s1 + $0x338] sm:$0xff]
  %v137 = vld [vmem:[%s1 + $0x340] sm:$0xff]
  %v138 = vld [vmem:[%s1 + $0x348] sm:$0xff]
  %v139 = vld [vmem:[%s1 + $0x350] sm:$0xff]
  %v140 = vld [vmem:[%s1 + $0x358] sm:$0xff]
  %v141 = vld [vmem:[%s1 + $0x360] sm:$0xff]
  %v142 = vld [vmem:[%s1 + $0x368] sm:$0xff]
  %v143 = vld [vmem:[%s1 + $0x370] sm:$0xff]
  %v144 = vld [vmem:[%s1 + $0x378] sm:$0xff]
  %v145 = vld [vmem:[%s1 + $0x380] sm:$0xff]
  %v146 = vld [vmem:[%s1 + $0x388] sm:$0xff]
  %v147 = vld [vmem:[%s1 + $0x390] sm:$0xff]
  %v148 = vld [vmem:[%s1 + $0x398] sm:$0xff]
  %v149 = vld [vmem:[%s1 + $0x3a0] sm:$0xff]
  %v150 = vld [vmem:[%s1 + $0x3a8] sm:$0xff]
  %v151 = vld [vmem:[%s1 + $0x3b0] sm:$0xff]
  %v152 = vld [vmem:[%s1 + $0x3b8] sm:$0xff]
  %v153 = vld [vmem:[%s1 + $0x3c0] sm:$0xff]
  %v154 = vld [vmem:[%s1 + $0x3c8] sm:$0xff]
  %v155 = vld [vmem:[%s1 + $0x3d0] sm:$0xff]
  %v156 = vld [vmem:[%s1 + $0x3d8] sm:$0xff]
  %v157 = vld [vmem:[%s1 + $0x3e0] sm:$0xff]
  %v158 = vld [vmem:[%s1 + $0x3e8] sm:$0xff]
  %v159 = vld [vmem:[%s1 + $0x3f0] sm:$0xff]
  %v160 = vld [vmem:[%s1 + $0x3f8] sm:$0xff]
  %v161 = vld [vmem:[%s2] sm:$0x3]
  %v163 = vlaneseq
  %v164 = vshrl.u32 %v163, 7
  %v165 = vsub.s32 0, %v164
  %v166 = vrot.slane %v161, %v165
  %v167 = vlaneseq
  %v168 = vshrl.u32 %v167, 7
  %v169 = vsub.s32 1, %v168
  %v170 = vrot.slane %v161, %v169
  %v177 = vunpack.c.l.b16 %v29
  %v178 = vunpack.c.h.b16 %v29
  %v179 = vunpack.c.l.b16 %v30
  %v180 = vunpack.c.h.b16 %v30
  %v181 = vunpack.c.l.b16 %v31
  %v182 = vunpack.c.h.b16 %v31
  %v183 = vunpack.c.l.b16 %v32
  %v184 = vunpack.c.h.b16 %v32
  %v185 = vpack.c.b16 %v177, %v177
  %v186 = vpack.c.b16 %v178, %v178
  %v187 = vpack.c.b16 %v179, %v179
  %v188 = vpack.c.b16 %v180, %v180
  %v189 = vpack.c.b16 %v181, %v181
  %v190 = vpack.c.b16 %v182, %v182
  %v191 = vpack.c.b16 %v183, %v183
  %v192 = vpack.c.b16 %v184, %v184
  %v329 = vunpack.c.l.b16 %v33
  %v330 = vunpack.c.h.b16 %v33
  %v331 = vunpack.c.l.b16 %v34
  %v332 = vunpack.c.h.b16 %v34
  %v333 = vunpack.c.l.b16 %v35
  %v334 = vunpack.c.h.b16 %v35
  %v335 = vunpack.c.l.b16 %v36
  %v336 = vunpack.c.h.b16 %v36
  %v337 = vunpack.c.l.b16 %v37
  %v338 = vunpack.c.h.b16 %v37
  %v339 = vunpack.c.l.b16 %v38
  %v340 = vunpack.c.h.b16 %v38
  %v341 = vunpack.c.l.b16 %v39
  %v342 = vunpack.c.h.b16 %v39
  %v343 = vunpack.c.l.b16 %v40
  %v344 = vunpack.c.h.b16 %v40
  %v345 = vunpack.c.l.b16 %v41
  %v346 = vunpack.c.h.b16 %v41
  %v347 = vunpack.c.l.b16 %v42
  %v348 = vunpack.c.h.b16 %v42
  %v349 = vunpack.c.l.b16 %v43
  %v350 = vunpack.c.h.b16 %v43
  %v351 = vunpack.c.l.b16 %v44
  %v352 = vunpack.c.h.b16 %v44
  %v353 = vunpack.c.l.b16 %v45
  %v354 = vunpack.c.h.b16 %v45
  %v355 = vunpack.c.l.b16 %v46
  %v356 = vunpack.c.h.b16 %v46
  %v357 = vunpack.c.l.b16 %v47
  %v358 = vunpack.c.h.b16 %v47
  %v359 = vunpack.c.l.b16 %v48
  %v360 = vunpack.c.h.b16 %v48
  %v361 = vunpack.c.l.b16 %v49
  %v362 = vunpack.c.h.b16 %v49
  %v363 = vunpack.c.l.b16 %v50
  %v364 = vunpack.c.h.b16 %v50
  %v365 = vunpack.c.l.b16 %v51
  %v366 = vunpack.c.h.b16 %v51
  %v367 = vunpack.c.l.b16 %v52
  %v368 = vunpack.c.h.b16 %v52
  %v369 = vunpack.c.l.b16 %v53
  %v370 = vunpack.c.h.b16 %v53
  %v371 = vunpack.c.l.b16 %v54
  %v372 = vunpack.c.h.b16 %v54
  %v373 = vunpack.c.l.b16 %v55
  %v374 = vunpack.c.h.b16 %v55
  %v375 = vunpack.c.l.b16 %v56
  %v376 = vunpack.c.h.b16 %v56
  %v377 = vunpack.c.l.b16 %v57
  %v378 = vunpack.c.h.b16 %v57
  %v379 = vunpack.c.l.b16 %v58
  %v380 = vunpack.c.h.b16 %v58
  %v381 = vunpack.c.l.b16 %v59
  %v382 = vunpack.c.h.b16 %v59
  %v383 = vunpack.c.l.b16 %v60
  %v384 = vunpack.c.h.b16 %v60
  %v385 = vunpack.c.l.b16 %v61
  %v386 = vunpack.c.h.b16 %v61
  %v387 = vunpack.c.l.b16 %v62
  %v388 = vunpack.c.h.b16 %v62
  %v389 = vunpack.c.l.b16 %v63
  %v390 = vunpack.c.h.b16 %v63
  %v391 = vunpack.c.l.b16 %v64
  %v392 = vunpack.c.h.b16 %v64
  %v393 = vunpack.c.l.b16 %v65
  %v394 = vunpack.c.h.b16 %v65
  %v395 = vunpack.c.l.b16 %v66
  %v396 = vunpack.c.h.b16 %v66
  %v397 = vunpack.c.l.b16 %v67
  %v398 = vunpack.c.h.b16 %v67
  %v399 = vunpack.c.l.b16 %v68
  %v400 = vunpack.c.h.b16 %v68
  %v401 = vunpack.c.l.b16 %v69
  %v402 = vunpack.c.h.b16 %v69
  %v403 = vunpack.c.l.b16 %v70
  %v404 = vunpack.c.h.b16 %v70
  %v405 = vunpack.c.l.b16 %v71
  %v406 = vunpack.c.h.b16 %v71
  %v407 = vunpack.c.l.b16 %v72
  %v408 = vunpack.c.h.b16 %v72
  %v409 = vunpack.c.l.b16 %v73
  %v410 = vunpack.c.h.b16 %v73
  %v411 = vunpack.c.l.b16 %v74
  %v412 = vunpack.c.h.b16 %v74
  %v413 = vunpack.c.l.b16 %v75
  %v414 = vunpack.c.h.b16 %v75
  %v415 = vunpack.c.l.b16 %v76
  %v416 = vunpack.c.h.b16 %v76
  %v417 = vunpack.c.l.b16 %v77
  %v418 = vunpack.c.h.b16 %v77
  %v419 = vunpack.c.l.b16 %v78
  %v420 = vunpack.c.h.b16 %v78
  %v421 = vunpack.c.l.b16 %v79
  %v422 = vunpack.c.h.b16 %v79
  %v423 = vunpack.c.l.b16 %v80
  %v424 = vunpack.c.h.b16 %v80
  %v425 = vunpack.c.l.b16 %v81
  %v426 = vunpack.c.h.b16 %v81
  %v427 = vunpack.c.l.b16 %v82
  %v428 = vunpack.c.h.b16 %v82
  %v429 = vunpack.c.l.b16 %v83
  %v430 = vunpack.c.h.b16 %v83
  %v431 = vunpack.c.l.b16 %v84
  %v432 = vunpack.c.h.b16 %v84
  %v433 = vunpack.c.l.b16 %v85
  %v434 = vunpack.c.h.b16 %v85
  %v435 = vunpack.c.l.b16 %v86
  %v436 = vunpack.c.h.b16 %v86
  %v437 = vunpack.c.l.b16 %v87
  %v438 = vunpack.c.h.b16 %v87
  %v439 = vunpack.c.l.b16 %v88
  %v440 = vunpack.c.h.b16 %v88
  %v441 = vunpack.c.l.b16 %v89
  %v442 = vunpack.c.h.b16 %v89
  %v443 = vunpack.c.l.b16 %v90
  %v444 = vunpack.c.h.b16 %v90
  %v445 = vunpack.c.l.b16 %v91
  %v446 = vunpack.c.h.b16 %v91
  %v447 = vunpack.c.l.b16 %v92
  %v448 = vunpack.c.h.b16 %v92
  %v449 = vunpack.c.l.b16 %v93
  %v450 = vunpack.c.h.b16 %v93
  %v451 = vunpack.c.l.b16 %v94
  %v452 = vunpack.c.h.b16 %v94
  %v453 = vunpack.c.l.b16 %v95
  %v454 = vunpack.c.h.b16 %v95
  %v455 = vunpack.c.l.b16 %v96
  %v456 = vunpack.c.h.b16 %v96
  %v457 = vunpack.c.l.b16 %v97
  %v458 = vunpack.c.h.b16 %v97
  %v459 = vunpack.c.l.b16 %v98
  %v460 = vunpack.c.h.b16 %v98
  %v461 = vunpack.c.l.b16 %v99
  %v462 = vunpack.c.h.b16 %v99
  %v463 = vunpack.c.l.b16 %v100
  %v464 = vunpack.c.h.b16 %v100
  %v465 = vunpack.c.l.b16 %v101
  %v466 = vunpack.c.h.b16 %v101
  %v467 = vunpack.c.l.b16 %v102
  %v468 = vunpack.c.h.b16 %v102
  %v469 = vunpack.c.l.b16 %v103
  %v470 = vunpack.c.h.b16 %v103
  %v471 = vunpack.c.l.b16 %v104
  %v472 = vunpack.c.h.b16 %v104
  %v473 = vunpack.c.l.b16 %v105
  %v474 = vunpack.c.h.b16 %v105
  %v475 = vunpack.c.l.b16 %v106
  %v476 = vunpack.c.h.b16 %v106
  %v477 = vunpack.c.l.b16 %v107
  %v478 = vunpack.c.h.b16 %v107
  %v479 = vunpack.c.l.b16 %v108
  %v480 = vunpack.c.h.b16 %v108
  %v481 = vunpack.c.l.b16 %v109
  %v482 = vunpack.c.h.b16 %v109
  %v483 = vunpack.c.l.b16 %v110
  %v484 = vunpack.c.h.b16 %v110
  %v485 = vunpack.c.l.b16 %v111
  %v486 = vunpack.c.h.b16 %v111
  %v487 = vunpack.c.l.b16 %v112
  %v488 = vunpack.c.h.b16 %v112
  %v489 = vunpack.c.l.b16 %v113
  %v490 = vunpack.c.h.b16 %v113
  %v491 = vunpack.c.l.b16 %v114
  %v492 = vunpack.c.h.b16 %v114
  %v493 = vunpack.c.l.b16 %v115
  %v494 = vunpack.c.h.b16 %v115
  %v495 = vunpack.c.l.b16 %v116
  %v496 = vunpack.c.h.b16 %v116
  %v497 = vunpack.c.l.b16 %v117
  %v498 = vunpack.c.h.b16 %v117
  %v499 = vunpack.c.l.b16 %v118
  %v500 = vunpack.c.h.b16 %v118
  %v501 = vunpack.c.l.b16 %v119
  %v502 = vunpack.c.h.b16 %v119
  %v503 = vunpack.c.l.b16 %v120
  %v504 = vunpack.c.h.b16 %v120
  %v505 = vunpack.c.l.b16 %v121
  %v506 = vunpack.c.h.b16 %v121
  %v507 = vunpack.c.l.b16 %v122
  %v508 = vunpack.c.h.b16 %v122
  %v509 = vunpack.c.l.b16 %v123
  %v510 = vunpack.c.h.b16 %v123
  %v511 = vunpack.c.l.b16 %v124
  %v512 = vunpack.c.h.b16 %v124
  %v513 = vunpack.c.l.b16 %v125
  %v514 = vunpack.c.h.b16 %v125
  %v515 = vunpack.c.l.b16 %v126
  %v516 = vunpack.c.h.b16 %v126
  %v517 = vunpack.c.l.b16 %v127
  %v518 = vunpack.c.h.b16 %v127
  %v519 = vunpack.c.l.b16 %v128
  %v520 = vunpack.c.h.b16 %v128
  %v521 = vunpack.c.l.b16 %v129
  %v522 = vunpack.c.h.b16 %v129
  %v523 = vunpack.c.l.b16 %v130
  %v524 = vunpack.c.h.b16 %v130
  %v525 = vunpack.c.l.b16 %v131
  %v526 = vunpack.c.h.b16 %v131
  %v527 = vunpack.c.l.b16 %v132
  %v528 = vunpack.c.h.b16 %v132
  %v529 = vunpack.c.l.b16 %v133
  %v530 = vunpack.c.h.b16 %v133
  %v531 = vunpack.c.l.b16 %v134
  %v532 = vunpack.c.h.b16 %v134
  %v533 = vunpack.c.l.b16 %v135
  %v534 = vunpack.c.h.b16 %v135
  %v535 = vunpack.c.l.b16 %v136
  %v536 = vunpack.c.h.b16 %v136
  %v537 = vunpack.c.l.b16 %v137
  %v538 = vunpack.c.h.b16 %v137
  %v539 = vunpack.c.l.b16 %v138
  %v540 = vunpack.c.h.b16 %v138
  %v541 = vunpack.c.l.b16 %v139
  %v542 = vunpack.c.h.b16 %v139
  %v543 = vunpack.c.l.b16 %v140
  %v544 = vunpack.c.h.b16 %v140
  %v545 = vunpack.c.l.b16 %v141
  %v546 = vunpack.c.h.b16 %v141
  %v547 = vunpack.c.l.b16 %v142
  %v548 = vunpack.c.h.b16 %v142
  %v549 = vunpack.c.l.b16 %v143
  %v550 = vunpack.c.h.b16 %v143
  %v551 = vunpack.c.l.b16 %v144
  %v552 = vunpack.c.h.b16 %v144
  %v553 = vunpack.c.l.b16 %v145
  %v554 = vunpack.c.h.b16 %v145
  %v555 = vunpack.c.l.b16 %v146
  %v556 = vunpack.c.h.b16 %v146
  %v557 = vunpack.c.l.b16 %v147
  %v558 = vunpack.c.h.b16 %v147
  %v559 = vunpack.c.l.b16 %v148
  %v560 = vunpack.c.h.b16 %v148
  %v561 = vunpack.c.l.b16 %v149
  %v562 = vunpack.c.h.b16 %v149
  %v563 = vunpack.c.l.b16 %v150
  %v564 = vunpack.c.h.b16 %v150
  %v565 = vunpack.c.l.b16 %v151
  %v566 = vunpack.c.h.b16 %v151
  %v567 = vunpack.c.l.b16 %v152
  %v568 = vunpack.c.h.b16 %v152
  %v569 = vunpack.c.l.b16 %v153
  %v570 = vunpack.c.h.b16 %v153
  %v571 = vunpack.c.l.b16 %v154
  %v572 = vunpack.c.h.b16 %v154
  %v573 = vunpack.c.l.b16 %v155
  %v574 = vunpack.c.h.b16 %v155
  %v575 = vunpack.c.l.b16 %v156
  %v576 = vunpack.c.h.b16 %v156
  %v577 = vunpack.c.l.b16 %v157
  %v578 = vunpack.c.h.b16 %v157
  %v579 = vunpack.c.l.b16 %v158
  %v580 = vunpack.c.h.b16 %v158
  %v581 = vunpack.c.l.b16 %v159
  %v582 = vunpack.c.h.b16 %v159
  %v583 = vunpack.c.l.b16 %v160
  %v584 = vunpack.c.h.b16 %v160
  %v585 = vpack.c.b16 %v331, %v329
  %v586 = vpack.c.b16 %v332, %v330
  %v587 = vpack.c.b16 %v335, %v333
  %v588 = vpack.c.b16 %v336, %v334
  %v589 = vpack.c.b16 %v339, %v337
  %v590 = vpack.c.b16 %v340, %v338
  %v591 = vpack.c.b16 %v343, %v341
  %v592 = vpack.c.b16 %v344, %v342
  %v593 = vpack.c.b16 %v347, %v345
  %v594 = vpack.c.b16 %v348, %v346
  %v595 = vpack.c.b16 %v351, %v349
  %v596 = vpack.c.b16 %v352, %v350
  %v597 = vpack.c.b16 %v355, %v353
  %v598 = vpack.c.b16 %v356, %v354
  %v599 = vpack.c.b16 %v359, %v357
  %v600 = vpack.c.b16 %v360, %v358
  %v601 = vpack.c.b16 %v363, %v361
  %v602 = vpack.c.b16 %v364, %v362
  %v603 = vpack.c.b16 %v367, %v365
  %v604 = vpack.c.b16 %v368, %v366
  %v605 = vpack.c.b16 %v371, %v369
  %v606 = vpack.c.b16 %v372, %v370
  %v607 = vpack.c.b16 %v375, %v373
  %v608 = vpack.c.b16 %v376, %v374
  %v609 = vpack.c.b16 %v379, %v377
  %v610 = vpack.c.b16 %v380, %v378
  %v611 = vpack.c.b16 %v383, %v381
  %v612 = vpack.c.b16 %v384, %v382
  %v613 = vpack.c.b16 %v387, %v385
  %v614 = vpack.c.b16 %v388, %v386
  %v615 = vpack.c.b16 %v391, %v389
  %v616 = vpack.c.b16 %v392, %v390
  %v617 = vpack.c.b16 %v395, %v393
  %v618 = vpack.c.b16 %v396, %v394
  %v619 = vpack.c.b16 %v399, %v397
  %v620 = vpack.c.b16 %v400, %v398
  %v621 = vpack.c.b16 %v403, %v401
  %v622 = vpack.c.b16 %v404, %v402
  %v623 = vpack.c.b16 %v407, %v405
  %v624 = vpack.c.b16 %v408, %v406
  %v625 = vpack.c.b16 %v411, %v409
  %v626 = vpack.c.b16 %v412, %v410
  %v627 = vpack.c.b16 %v415, %v413
  %v628 = vpack.c.b16 %v416, %v414
  %v629 = vpack.c.b16 %v419, %v417
  %v630 = vpack.c.b16 %v420, %v418
  %v631 = vpack.c.b16 %v423, %v421
  %v632 = vpack.c.b16 %v424, %v422
  %v633 = vpack.c.b16 %v427, %v425
  %v634 = vpack.c.b16 %v428, %v426
  %v635 = vpack.c.b16 %v431, %v429
  %v636 = vpack.c.b16 %v432, %v430
  %v637 = vpack.c.b16 %v435, %v433
  %v638 = vpack.c.b16 %v436, %v434
  %v639 = vpack.c.b16 %v439, %v437
  %v640 = vpack.c.b16 %v440, %v438
  %v641 = vpack.c.b16 %v443, %v441
  %v642 = vpack.c.b16 %v444, %v442
  %v643 = vpack.c.b16 %v447, %v445
  %v644 = vpack.c.b16 %v448, %v446
  %v645 = vpack.c.b16 %v451, %v449
  %v646 = vpack.c.b16 %v452, %v450
  %v647 = vpack.c.b16 %v455, %v453
  %v648 = vpack.c.b16 %v456, %v454
  %v649 = vpack.c.b16 %v459, %v457
  %v650 = vpack.c.b16 %v460, %v458
  %v651 = vpack.c.b16 %v463, %v461
  %v652 = vpack.c.b16 %v464, %v462
  %v653 = vpack.c.b16 %v467, %v465
  %v654 = vpack.c.b16 %v468, %v466
  %v655 = vpack.c.b16 %v471, %v469
  %v656 = vpack.c.b16 %v472, %v470
  %v657 = vpack.c.b16 %v475, %v473
  %v658 = vpack.c.b16 %v476, %v474
  %v659 = vpack.c.b16 %v479, %v477
  %v660 = vpack.c.b16 %v480, %v478
  %v661 = vpack.c.b16 %v483, %v481
  %v662 = vpack.c.b16 %v484, %v482
  %v663 = vpack.c.b16 %v487, %v485
  %v664 = vpack.c.b16 %v488, %v486
  %v665 = vpack.c.b16 %v491, %v489
  %v666 = vpack.c.b16 %v492, %v490
  %v667 = vpack.c.b16 %v495, %v493
  %v668 = vpack.c.b16 %v496, %v494
  %v669 = vpack.c.b16 %v499, %v497
  %v670 = vpack.c.b16 %v500, %v498
  %v671 = vpack.c.b16 %v503, %v501
  %v672 = vpack.c.b16 %v504, %v502
  %v673 = vpack.c.b16 %v507, %v505
  %v674 = vpack.c.b16 %v508, %v506
  %v675 = vpack.c.b16 %v511, %v509
  %v676 = vpack.c.b16 %v512, %v510
  %v677 = vpack.c.b16 %v515, %v513
  %v678 = vpack.c.b16 %v516, %v514
  %v679 = vpack.c.b16 %v519, %v517
  %v680 = vpack.c.b16 %v520, %v518
  %v681 = vpack.c.b16 %v523, %v521
  %v682 = vpack.c.b16 %v524, %v522
  %v683 = vpack.c.b16 %v527, %v525
  %v684 = vpack.c.b16 %v528, %v526
  %v685 = vpack.c.b16 %v531, %v529
  %v686 = vpack.c.b16 %v532, %v530
  %v687 = vpack.c.b16 %v535, %v533
  %v688 = vpack.c.b16 %v536, %v534
  %v689 = vpack.c.b16 %v539, %v537
  %v690 = vpack.c.b16 %v540, %v538
  %v691 = vpack.c.b16 %v543, %v541
  %v692 = vpack.c.b16 %v544, %v542
  %v693 = vpack.c.b16 %v547, %v545
  %v694 = vpack.c.b16 %v548, %v546
  %v695 = vpack.c.b16 %v551, %v549
  %v696 = vpack.c.b16 %v552, %v550
  %v697 = vpack.c.b16 %v555, %v553
  %v698 = vpack.c.b16 %v556, %v554
  %v699 = vpack.c.b16 %v559, %v557
  %v700 = vpack.c.b16 %v560, %v558
  %v701 = vpack.c.b16 %v563, %v561
  %v702 = vpack.c.b16 %v564, %v562
  %v703 = vpack.c.b16 %v567, %v565
  %v704 = vpack.c.b16 %v568, %v566
  %v705 = vpack.c.b16 %v571, %v569
  %v706 = vpack.c.b16 %v572, %v570
  %v707 = vpack.c.b16 %v575, %v573
  %v708 = vpack.c.b16 %v576, %v574
  %v709 = vpack.c.b16 %v579, %v577
  %v710 = vpack.c.b16 %v580, %v578
  %v711 = vpack.c.b16 %v583, %v581
  %v712 = vpack.c.b16 %v584, %v582
  %841 = vmatprep.subr.bf16.mxu0 %v586
  %842 = vmatpush1.bf16.msra.mxu0 %v585
  %843 = vmatprep.subr.bf16.mxu0 %v588
  %844 = vmatpush1.bf16.msra.mxu0 %v587
  %845 = vmatprep.subr.bf16.mxu0 %v590
  %846 = vmatpush1.bf16.msra.mxu0 %v589
  %847 = vmatprep.subr.bf16.mxu0 %v592
  %848 = vmatpush1.bf16.msra.mxu0 %v591
  %849 = vmatprep.subr.bf16.mxu0 %v594
  %850 = vmatpush1.bf16.msra.mxu0 %v593
  %851 = vmatprep.subr.bf16.mxu0 %v596
  %852 = vmatpush1.bf16.msra.mxu0 %v595
  %853 = vmatprep.subr.bf16.mxu0 %v598
  %854 = vmatpush1.bf16.msra.mxu0 %v597
  %855 = vmatprep.subr.bf16.mxu0 %v600
  %856 = vmatpush1.bf16.msra.mxu0 %v599
  %857 = vmatprep.subr.bf16.mxu0 %v602
  %858 = vmatpush1.bf16.msra.mxu0 %v601
  %859 = vmatprep.subr.bf16.mxu0 %v604
  %860 = vmatpush1.bf16.msra.mxu0 %v603
  %861 = vmatprep.subr.bf16.mxu0 %v606
  %862 = vmatpush1.bf16.msra.mxu0 %v605
  %863 = vmatprep.subr.bf16.mxu0 %v608
  %864 = vmatpush1.bf16.msra.mxu0 %v607
  %865 = vmatprep.subr.bf16.mxu0 %v610
  %866 = vmatpush1.bf16.msra.mxu0 %v609
  %867 = vmatprep.subr.bf16.mxu0 %v612
  %868 = vmatpush1.bf16.msra.mxu0 %v611
  %869 = vmatprep.subr.bf16.mxu0 %v614
  %870 = vmatpush1.bf16.msra.mxu0 %v613
  %871 = vmatprep.subr.bf16.mxu0 %v616
  %872 = vmatpush1.bf16.msra.mxu0 %v615
  %873 = vmatprep.mubr.bf16.mxu0 %v186
  %874 = vmatmul.mubr.bf16.gmra.mrb[0].mxu0 %v185
  %v875 = vpop.f32.mrb[0].mxu0
  %v876 = vadd.f32 %v166, %v875
  %v877 = vpop.f32.mrb[0].mxu0
  %v878 = vadd.f32 %v170, %v877
  %v879 = vpop.f32.mrb[0].mxu0
  %v880 = vpop.f32.mrb[0].mxu0
  %881 = vdwg.mxu0
  %882 = vmatprep.subr.bf16.mxu0 %v618
  %883 = vmatpush1.bf16.msra.mxu0 %v617
  %884 = vmatprep.subr.bf16.mxu0 %v620
  %885 = vmatpush1.bf16.msra.mxu0 %v619
  %886 = vmatprep.subr.bf16.mxu0 %v622
  %887 = vmatpush1.bf16.msra.mxu0 %v621
  %888 = vmatprep.subr.bf16.mxu0 %v624
  %889 = vmatpush1.bf16.msra.mxu0 %v623
  %890 = vmatprep.subr.bf16.mxu0 %v626
  %891 = vmatpush1.bf16.msra.mxu0 %v625
  %892 = vmatprep.subr.bf16.mxu0 %v628
  %893 = vmatpush1.bf16.msra.mxu0 %v627
  %894 = vmatprep.subr.bf16.mxu0 %v630
  %895 = vmatpush1.bf16.msra.mxu0 %v629
  %896 = vmatprep.subr.bf16.mxu0 %v632
  %897 = vmatpush1.bf16.msra.mxu0 %v631
  %898 = vmatprep.subr.bf16.mxu0 %v634
  %899 = vmatpush1.bf16.msra.mxu0 %v633
  %900 = vmatprep.subr.bf16.mxu0 %v636
  %901 = vmatpush1.bf16.msra.mxu0 %v635
  %902 = vmatprep.subr.bf16.mxu0 %v638
  %903 = vmatpush1.bf16.msra.mxu0 %v637
  %904 = vmatprep.subr.bf16.mxu0 %v640
  %905 = vmatpush1.bf16.msra.mxu0 %v639
  %906 = vmatprep.subr.bf16.mxu0 %v642
  %907 = vmatpush1.bf16.msra.mxu0 %v641
  %908 = vmatprep.subr.bf16.mxu0 %v644
  %909 = vmatpush1.bf16.msra.mxu0 %v643
  %910 = vmatprep.subr.bf16.mxu0 %v646
  %911 = vmatpush1.bf16.msra.mxu0 %v645
  %912 = vmatprep.subr.bf16.mxu0 %v648
  %913 = vmatpush1.bf16.msra.mxu0 %v647
  %914 = vmatprep.mubr.bf16.mxu0 %v188
  %915 = vmatmul.mubr.bf16.gmra.mrb[0].mxu0 %v187
  %v916 = vpop.f32.mrb[0].mxu0
  %v917 = vadd.f32 %v876, %v916
  %v918 = vpop.f32.mrb[0].mxu0
  %v919 = vadd.f32 %v878, %v918
  %v920 = vpop.f32.mrb[0].mxu0
  %v921 = vpop.f32.mrb[0].mxu0
  %922 = vdwg.mxu0
  %923 = vmatprep.subr.bf16.mxu0 %v650
  %924 = vmatpush1.bf16.msra.mxu0 %v649
  %925 = vmatprep.subr.bf16.mxu0 %v652
  %926 = vmatpush1.bf16.msra.mxu0 %v651
  %927 = vmatprep.subr.bf16.mxu0 %v654
  %928 = vmatpush1.bf16.msra.mxu0 %v653
  %929 = vmatprep.subr.bf16.mxu0 %v656
  %930 = vmatpush1.bf16.msra.mxu0 %v655
  %931 = vmatprep.subr.bf16.mxu0 %v658
  %932 = vmatpush1.bf16.msra.mxu0 %v657
  %933 = vmatprep.subr.bf16.mxu0 %v660
  %934 = vmatpush1.bf16.msra.mxu0 %v659
  %935 = vmatprep.subr.bf16.mxu0 %v662
  %936 = vmatpush1.bf16.msra.mxu0 %v661
  %937 = vmatprep.subr.bf16.mxu0 %v664
  %938 = vmatpush1.bf16.msra.mxu0 %v663
  %939 = vmatprep.subr.bf16.mxu0 %v666
  %940 = vmatpush1.bf16.msra.mxu0 %v665
  %941 = vmatprep.subr.bf16.mxu0 %v668
  %942 = vmatpush1.bf16.msra.mxu0 %v667
  %943 = vmatprep.subr.bf16.mxu0 %v670
  %944 = vmatpush1.bf16.msra.mxu0 %v669
  %945 = vmatprep.subr.bf16.mxu0 %v672
  %946 = vmatpush1.bf16.msra.mxu0 %v671
  %947 = vmatprep.subr.bf16.mxu0 %v674
  %948 = vmatpush1.bf16.msra.mxu0 %v673
  %949 = vmatprep.subr.bf16.mxu0 %v676
  %950 = vmatpush1.bf16.msra.mxu0 %v675
  %951 = vmatprep.subr.bf16.mxu0 %v678
  %952 = vmatpush1.bf16.msra.mxu0 %v677
  %953 = vmatprep.subr.bf16.mxu0 %v680
  %954 = vmatpush1.bf16.msra.mxu0 %v679
  %955 = vmatprep.mubr.bf16.mxu0 %v190
  %956 = vmatmul.mubr.bf16.gmra.mrb[0].mxu0 %v189
  %v957 = vpop.f32.mrb[0].mxu0
  %v958 = vadd.f32 %v917, %v957
  %v959 = vpop.f32.mrb[0].mxu0
  %v960 = vadd.f32 %v919, %v959
  %v961 = vpop.f32.mrb[0].mxu0
  %v962 = vpop.f32.mrb[0].mxu0
  %963 = vdwg.mxu0
  %964 = vmatprep.subr.bf16.mxu0 %v682
  %965 = vmatpush1.bf16.msra.mxu0 %v681
  %966 = vmatprep.subr.bf16.mxu0 %v684
  %967 = vmatpush1.bf16.msra.mxu0 %v683
  %968 = vmatprep.subr.bf16.mxu0 %v686
  %969 = vmatpush1.bf16.msra.mxu0 %v685
  %970 = vmatprep.subr.bf16.mxu0 %v688
  %971 = vmatpush1.bf16.msra.mxu0 %v687
  %972 = vmatprep.subr.bf16.mxu0 %v690
  %973 = vmatpush1.bf16.msra.mxu0 %v689
  %974 = vmatprep.subr.bf16.mxu0 %v692
  %975 = vmatpush1.bf16.msra.mxu0 %v691
  %976 = vmatprep.subr.bf16.mxu0 %v694
  %977 = vmatpush1.bf16.msra.mxu0 %v693
  %978 = vmatprep.subr.bf16.mxu0 %v696
  %979 = vmatpush1.bf16.msra.mxu0 %v695
  %980 = vmatprep.subr.bf16.mxu0 %v698
  %981 = vmatpush1.bf16.msra.mxu0 %v697
  %982 = vmatprep.subr.bf16.mxu0 %v700
  %983 = vmatpush1.bf16.msra.mxu0 %v699
  %984 = vmatprep.subr.bf16.mxu0 %v702
  %985 = vmatpush1.bf16.msra.mxu0 %v701
  %986 = vmatprep.subr.bf16.mxu0 %v704
  %987 = vmatpush1.bf16.msra.mxu0 %v703
  %988 = vmatprep.subr.bf16.mxu0 %v706
  %989 = vmatpush1.bf16.msra.mxu0 %v705
  %990 = vmatprep.subr.bf16.mxu0 %v708
  %991 = vmatpush1.bf16.msra.mxu0 %v707
  %992 = vmatprep.subr.bf16.mxu0 %v710
  %993 = vmatpush1.bf16.msra.mxu0 %v709
  %994 = vmatprep.subr.bf16.mxu0 %v712
  %995 = vmatpush1.bf16.msra.mxu0 %v711
  %996 = vmatprep.mubr.bf16.mxu0 %v192
  %997 = vmatmul.mubr.bf16.gmra.mrb[0].mxu0 %v191
  %v998 = vpop.f32.mrb[0].mxu0
  %v999 = vadd.f32 %v958, %v998
  %v1000 = vpop.f32.mrb[0].mxu0
  %v1001 = vadd.f32 %v960, %v1000
  %v1002 = vpop.f32.mrb[0].mxu0
  %v1003 = vpop.f32.mrb[0].mxu0
  %1004 = vdwg.mxu0
  %v1005 = vmax.f32 %v999, 0.0
  %v1006 = vmax.f32 %v1001, 0.0
  %v1007 = vld [vmem:[%s3] sm:$0x7]
  %v1008 = vld [vmem:[%s4] sm:$0xf]
  %v1009 = vld [vmem:[%s4 + $0x4] sm:$0xf]
  %v1010 = vld [vmem:[%s4 + $0x8] sm:$0xf]
  %v1011 = vld [vmem:[%s4 + $0xc] sm:$0xf]
  %v1012 = vld [vmem:[%s4 + $0x10] sm:$0xf]
  %v1013 = vld [vmem:[%s4 + $0x14] sm:$0xf]
  %v1014 = vld [vmem:[%s4 + $0x18] sm:$0xf]
  %v1015 = vld [vmem:[%s4 + $0x1c] sm:$0xf]
  %v1016 = vld [vmem:[%s4 + $0x20] sm:$0xf]
  %v1017 = vld [vmem:[%s4 + $0x24] sm:$0xf]
  %v1018 = vld [vmem:[%s4 + $0x28] sm:$0xf]
  %v1019 = vld [vmem:[%s4 + $0x2c] sm:$0xf]
  %v1020 = vld [vmem:[%s4 + $0x30] sm:$0xf]
  %v1021 = vld [vmem:[%s4 + $0x34] sm:$0xf]
  %v1022 = vld [vmem:[%s4 + $0x38] sm:$0xf]
  %v1023 = vld [vmem:[%s4 + $0x3c] sm:$0xf]
  %v1024 = vld [vmem:[%s4 + $0x40] sm:$0xf]
  %v1025 = vld [vmem:[%s4 + $0x44] sm:$0xf]
  %v1026 = vld [vmem:[%s4 + $0x48] sm:$0xf]
  %v1027 = vld [vmem:[%s4 + $0x4c] sm:$0xf]
  %v1028 = vld [vmem:[%s4 + $0x50] sm:$0xf]
  %v1029 = vld [vmem:[%s4 + $0x54] sm:$0xf]
  %v1030 = vld [vmem:[%s4 + $0x58] sm:$0xf]
  %v1031 = vld [vmem:[%s4 + $0x5c] sm:$0xf]
  %v1032 = vld [vmem:[%s4 + $0x60] sm:$0xf]
  %v1033 = vld [vmem:[%s4 + $0x64] sm:$0xf]
  %v1034 = vld [vmem:[%s4 + $0x68] sm:$0xf]
  %v1035 = vld [vmem:[%s4 + $0x6c] sm:$0xf]
  %v1036 = vld [vmem:[%s4 + $0x70] sm:$0xf]
  %v1037 = vld [vmem:[%s4 + $0x74] sm:$0xf]
  %v1038 = vld [vmem:[%s4 + $0x78] sm:$0xf]
  %v1039 = vld [vmem:[%s4 + $0x7c] sm:$0xf]
  %v1040 = vld [vmem:[%s4 + $0x80] sm:$0xf]
  %v1041 = vld [vmem:[%s4 + $0x84] sm:$0xf]
  %v1042 = vld [vmem:[%s4 + $0x88] sm:$0xf]
  %v1043 = vld [vmem:[%s4 + $0x8c] sm:$0xf]
  %v1044 = vld [vmem:[%s4 + $0x90] sm:$0xf]
  %v1045 = vld [vmem:[%s4 + $0x94] sm:$0xf]
  %v1046 = vld [vmem:[%s4 + $0x98] sm:$0xf]
  %v1047 = vld [vmem:[%s4 + $0x9c] sm:$0xf]
  %v1048 = vld [vmem:[%s4 + $0xa0] sm:$0xf]
  %v1049 = vld [vmem:[%s4 + $0xa4] sm:$0xf]
  %v1050 = vld [vmem:[%s4 + $0xa8] sm:$0xf]
  %v1051 = vld [vmem:[%s4 + $0xac] sm:$0xf]
  %v1052 = vld [vmem:[%s4 + $0xb0] sm:$0xf]
  %v1053 = vld [vmem:[%s4 + $0xb4] sm:$0xf]
  %v1054 = vld [vmem:[%s4 + $0xb8] sm:$0xf]
  %v1055 = vld [vmem:[%s4 + $0xbc] sm:$0xf]
  %v1058 = vunpack.c.l.s4 1966171168
  %v1059 = vunpack.c.0.s8 %v1058
  %v1060 = vlaneseq
  %v1061 = vshrl.u32 %v1060, 7
  %v1062 = vsub.s32 %v1059, %v1061
  %v1063 = vrot.slane %v1007, %v1062
  %v1064 = vcombine.high %v1063, %v1063
  %v1066 = vunpack.c.l.s4 1966171168
  %v1067 = vunpack.c.0.s8 %v1066
  %v1068 = vlaneseq
  %v1069 = vshrl.u32 %v1068, 7
  %v1070 = vsub.s32 %v1067, %v1069
  %v1071 = vrot.slane %v1063, %v1070
  %v1073 = vunpack.c.l.s4 1966171168
  %v1074 = vunpack.c.0.s8 %v1073
  %v1075 = vlaneseq
  %v1076 = vshrl.u32 %v1075, 7
  %v1077 = vsub.s32 %v1074, %v1076
  %v1078 = vrot.slane %v1064, %v1077
  %v1079 = vcombine.high %v1071, %v1071
  %v1131 = vunpack.c.l.b16 %v1008
  %v1132 = vunpack.c.l.b16 %v1009
  %v1133 = vunpack.c.l.b16 %v1010
  %v1134 = vunpack.c.l.b16 %v1011
  %v1135 = vunpack.c.l.b16 %v1012
  %v1136 = vunpack.c.l.b16 %v1013
  %v1137 = vunpack.c.l.b16 %v1014
  %v1138 = vunpack.c.l.b16 %v1015
  %v1139 = vunpack.c.l.b16 %v1016
  %v1140 = vunpack.c.l.b16 %v1017
  %v1141 = vunpack.c.l.b16 %v1018
  %v1142 = vunpack.c.l.b16 %v1019
  %v1143 = vunpack.c.l.b16 %v1020
  %v1144 = vunpack.c.l.b16 %v1021
  %v1145 = vunpack.c.l.b16 %v1022
  %v1146 = vunpack.c.l.b16 %v1023
  %v1147 = vunpack.c.l.b16 %v1024
  %v1148 = vunpack.c.l.b16 %v1025
  %v1149 = vunpack.c.l.b16 %v1026
  %v1150 = vunpack.c.l.b16 %v1027
  %v1151 = vunpack.c.l.b16 %v1028
  %v1152 = vunpack.c.l.b16 %v1029
  %v1153 = vunpack.c.l.b16 %v1030
  %v1154 = vunpack.c.l.b16 %v1031
  %v1155 = vunpack.c.l.b16 %v1032
  %v1156 = vunpack.c.l.b16 %v1033
  %v1157 = vunpack.c.l.b16 %v1034
  %v1158 = vunpack.c.l.b16 %v1035
  %v1159 = vunpack.c.l.b16 %v1036
  %v1160 = vunpack.c.l.b16 %v1037
  %v1161 = vunpack.c.l.b16 %v1038
  %v1162 = vunpack.c.l.b16 %v1039
  %v1163 = vunpack.c.l.b16 %v1040
  %v1164 = vunpack.c.l.b16 %v1041
  %v1165 = vunpack.c.l.b16 %v1042
  %v1166 = vunpack.c.l.b16 %v1043
  %v1167 = vunpack.c.l.b16 %v1044
  %v1168 = vunpack.c.l.b16 %v1045
  %v1169 = vunpack.c.l.b16 %v1046
  %v1170 = vunpack.c.l.b16 %v1047
  %v1171 = vunpack.c.l.b16 %v1048
  %v1172 = vunpack.c.l.b16 %v1049
  %v1173 = vunpack.c.l.b16 %v1050
  %v1174 = vunpack.c.l.b16 %v1051
  %v1175 = vunpack.c.l.b16 %v1052
  %v1176 = vunpack.c.l.b16 %v1053
  %v1177 = vunpack.c.l.b16 %v1054
  %v1178 = vunpack.c.l.b16 %v1055
  %v1179 = vpack.c.b16 %v1132, %v1131
  %v1180 = vpack.c.b16 %v1134, %v1133
  %v1181 = vpack.c.b16 %v1136, %v1135
  %v1182 = vpack.c.b16 %v1138, %v1137
  %v1183 = vpack.c.b16 %v1140, %v1139
  %v1184 = vpack.c.b16 %v1142, %v1141
  %v1185 = vpack.c.b16 %v1144, %v1143
  %v1186 = vpack.c.b16 %v1146, %v1145
  %v1187 = vpack.c.b16 %v1148, %v1147
  %v1188 = vpack.c.b16 %v1150, %v1149
  %v1189 = vpack.c.b16 %v1152, %v1151
  %v1190 = vpack.c.b16 %v1154, %v1153
  %v1191 = vpack.c.b16 %v1156, %v1155
  %v1192 = vpack.c.b16 %v1158, %v1157
  %v1193 = vpack.c.b16 %v1160, %v1159
  %v1194 = vpack.c.b16 %v1162, %v1161
  %v1195 = vpack.c.b16 %v1164, %v1163
  %v1196 = vpack.c.b16 %v1166, %v1165
  %v1197 = vpack.c.b16 %v1168, %v1167
  %v1198 = vpack.c.b16 %v1170, %v1169
  %v1199 = vpack.c.b16 %v1172, %v1171
  %v1200 = vpack.c.b16 %v1174, %v1173
  %v1201 = vpack.c.b16 %v1176, %v1175
  %v1202 = vpack.c.b16 %v1178, %v1177
  %1227 = vmatprep.subr.bf16.mxu0 0
  %1228 = vmatpush1.bf16.msra.mxu0 %v1179
  %1229 = vmatprep.subr.bf16.mxu0 0
  %1230 = vmatpush1.bf16.msra.mxu0 %v1180
  %1231 = vmatprep.subr.bf16.mxu0 0
  %1232 = vmatpush1.bf16.msra.mxu0 %v1181
  %1233 = vmatprep.subr.bf16.mxu0 0
  %1234 = vmatpush1.bf16.msra.mxu0 %v1182
  %1235 = vmatprep.subr.bf16.mxu0 0
  %1236 = vmatpush1.bf16.msra.mxu0 %v1183
  %1237 = vmatprep.subr.bf16.mxu0 0
  %1238 = vmatpush1.bf16.msra.mxu0 %v1184
  %1239 = vmatprep.subr.bf16.mxu0 0
  %1240 = vmatpush1.bf16.msra.mxu0 %v1185
  %1241 = vmatprep.subr.bf16.mxu0 0
  %1242 = vmatpush1.bf16.msra.mxu0 %v1186
  %1243 = vmatprep.subr.bf16.mxu0 0
  %1244 = vmatpush1.bf16.msra.mxu0 %v1187
  %1245 = vmatprep.subr.bf16.mxu0 0
  %1246 = vmatpush1.bf16.msra.mxu0 %v1188
  %1247 = vmatprep.subr.bf16.mxu0 0
  %1248 = vmatpush1.bf16.msra.mxu0 %v1189
  %1249 = vmatprep.subr.bf16.mxu0 0
  %1250 = vmatpush1.bf16.msra.mxu0 %v1190
  %1251 = vmatprep.subr.bf16.mxu0 0
  %1252 = vmatpush1.bf16.msra.mxu0 %v1191
  %1253 = vmatprep.subr.bf16.mxu0 0
  %1254 = vmatpush1.bf16.msra.mxu0 %v1192
  %1255 = vmatprep.subr.bf16.mxu0 0
  %1256 = vmatpush1.bf16.msra.mxu0 %v1193
  %1257 = vmatprep.subr.bf16.mxu0 0
  %1258 = vmatpush1.bf16.msra.mxu0 %v1194
  %1259 = vmatprep.mubr.bf16.mxu0 %v1078
  %1260 = vmatmul.mubr.bf16.gmra.mrb[0].mxu0 %v1071
  %v1261 = vpop.f32.mrb[0].mxu0
  %v1262 = vadd.f32 0.0, %v1261
  %v1263 = vpop.f32.mrb[0].mxu0
  %v1264 = vpop.f32.mrb[0].mxu0
  %v1265 = vpop.f32.mrb[0].mxu0
  %1266 = vdwg.mxu0
  %1267 = vmatprep.subr.bf16.mxu0 0
  %1268 = vmatpush1.bf16.msra.mxu0 %v1195
  %1269 = vmatprep.subr.bf16.mxu0 0
  %1270 = vmatpush1.bf16.msra.mxu0 %v1196
  %1271 = vmatprep.subr.bf16.mxu0 0
  %1272 = vmatpush1.bf16.msra.mxu0 %v1197
  %1273 = vmatprep.subr.bf16.mxu0 0
  %1274 = vmatpush1.bf16.msra.mxu0 %v1198
  %1275 = vmatprep.subr.bf16.mxu0 0
  %1276 = vmatpush1.bf16.msra.mxu0 %v1199
  %1277 = vmatprep.subr.bf16.mxu0 0
  %1278 = vmatpush1.bf16.msra.mxu0 %v1200
  %1279 = vmatprep.subr.bf16.mxu0 0
  %1280 = vmatpush1.bf16.msra.mxu0 %v1201
  %1281 = vmatprep.subr.bf16.mxu0 0
  %1282 = vmatpush1.bf16.msra.mxu0 %v1202
  %1283 = vmatprep.subr.bf16.mxu0 0
  %1284 = vmatpush1.bf16.msra.mxu0 0
  %1285 = vmatprep.subr.bf16.mxu0 0
  %1286 = vmatpush1.bf16.msra.mxu0 0
  %1287 = vmatprep.subr.bf16.mxu0 0
  %1288 = vmatpush1.bf16.msra.mxu0 0
  %1289 = vmatprep.subr.bf16.mxu0 0
  %1290 = vmatpush1.bf16.msra.mxu0 0
  %1291 = vmatprep.subr.bf16.mxu0 0
  %1292 = vmatpush1.bf16.msra.mxu0 0
  %1293 = vmatprep.subr.bf16.mxu0 0
  %1294 = vmatpush1.bf16.msra.mxu0 0
  %1295 = vmatprep.subr.bf16.mxu0 0
  %1296 = vmatpush1.bf16.msra.mxu0 0
  %1297 = vmatprep.subr.bf16.mxu0 0
  %1298 = vmatpush1.bf16.msra.mxu0 0
  %1299 = vmatprep.mubr.bf16.mxu0 0
  %1300 = vmatmul.mubr.bf16.gmra.mrb[0].mxu0 %v1079
  %v1301 = vpop.f32.mrb[0].mxu0
  %v1302 = vadd.f32 %v1262, %v1301
  %v1303 = vpop.f32.mrb[0].mxu0
  %v1304 = vpop.f32.mrb[0].mxu0
  %v1305 = vpop.f32.mrb[0].mxu0
  %1306 = vdwg.mxu0
  %v1307 = vpack.c.bf16 %v1005, %v1005
  %v1308 = vpack.c.bf16 %v1006, %v1006
  %v1309 = vld [vmem:[%s5] sm:$0xf]
  %v1310 = vld [vmem:[%s5 + $0x4] sm:$0xf]
  %v1311 = vld [vmem:[%s5 + $0x8] sm:$0xf]
  %v1312 = vld [vmem:[%s5 + $0xc] sm:$0xf]
  %v1313 = vld [vmem:[%s5 + $0x10] sm:$0xf]
  %v1314 = vld [vmem:[%s5 + $0x14] sm:$0xf]
  %v1315 = vld [vmem:[%s5 + $0x18] sm:$0xf]
  %v1316 = vld [vmem:[%s5 + $0x1c] sm:$0xf]
  %v1317 = vld [vmem:[%s5 + $0x20] sm:$0xf]
  %v1318 = vld [vmem:[%s5 + $0x24] sm:$0xf]
  %v1319 = vld [vmem:[%s5 + $0x28] sm:$0xf]
  %v1320 = vld [vmem:[%s5 + $0x2c] sm:$0xf]
  %v1321 = vld [vmem:[%s5 + $0x30] sm:$0xf]
  %v1322 = vld [vmem:[%s5 + $0x34] sm:$0xf]
  %v1323 = vld [vmem:[%s5 + $0x38] sm:$0xf]
  %v1324 = vld [vmem:[%s5 + $0x3c] sm:$0xf]
  %v1325 = vld [vmem:[%s5 + $0x40] sm:$0xf]
  %v1326 = vld [vmem:[%s5 + $0x44] sm:$0xf]
  %v1327 = vld [vmem:[%s5 + $0x48] sm:$0xf]
  %v1328 = vld [vmem:[%s5 + $0x4c] sm:$0xf]
  %v1329 = vld [vmem:[%s5 + $0x50] sm:$0xf]
  %v1330 = vld [vmem:[%s5 + $0x54] sm:$0xf]
  %v1331 = vld [vmem:[%s5 + $0x58] sm:$0xf]
  %v1332 = vld [vmem:[%s5 + $0x5c] sm:$0xf]
  %v1333 = vld [vmem:[%s5 + $0x60] sm:$0xf]
  %v1334 = vld [vmem:[%s5 + $0x64] sm:$0xf]
  %v1335 = vld [vmem:[%s5 + $0x68] sm:$0xf]
  %v1336 = vld [vmem:[%s5 + $0x6c] sm:$0xf]
  %v1337 = vld [vmem:[%s5 + $0x70] sm:$0xf]
  %v1338 = vld [vmem:[%s5 + $0x74] sm:$0xf]
  %v1339 = vld [vmem:[%s5 + $0x78] sm:$0xf]
  %v1340 = vld [vmem:[%s5 + $0x7c] sm:$0xf]
  %v1341 = vlaneseq
  %v1342 = vshrl.u32 %v1341, 7
  %v1343 = vsub.s32 0, %v1342
  %v1344 = vrot.slane %v1302, %v1343
  %v1377 = vunpack.c.l.b16 %v1309
  %v1378 = vunpack.c.l.b16 %v1310
  %v1379 = vunpack.c.l.b16 %v1311
  %v1380 = vunpack.c.l.b16 %v1312
  %v1381 = vunpack.c.l.b16 %v1313
  %v1382 = vunpack.c.l.b16 %v1314
  %v1383 = vunpack.c.l.b16 %v1315
  %v1384 = vunpack.c.l.b16 %v1316
  %v1385 = vunpack.c.l.b16 %v1317
  %v1386 = vunpack.c.l.b16 %v1318
  %v1387 = vunpack.c.l.b16 %v1319
  %v1388 = vunpack.c.l.b16 %v1320
  %v1389 = vunpack.c.l.b16 %v1321
  %v1390 = vunpack.c.l.b16 %v1322
  %v1391 = vunpack.c.l.b16 %v1323
  %v1392 = vunpack.c.l.b16 %v1324
  %v1393 = vunpack.c.l.b16 %v1325
  %v1394 = vunpack.c.l.b16 %v1326
  %v1395 = vunpack.c.l.b16 %v1327
  %v1396 = vunpack.c.l.b16 %v1328
  %v1397 = vunpack.c.l.b16 %v1329
  %v1398 = vunpack.c.l.b16 %v1330
  %v1399 = vunpack.c.l.b16 %v1331
  %v1400 = vunpack.c.l.b16 %v1332
  %v1401 = vunpack.c.l.b16 %v1333
  %v1402 = vunpack.c.l.b16 %v1334
  %v1403 = vunpack.c.l.b16 %v1335
  %v1404 = vunpack.c.l.b16 %v1336
  %v1405 = vunpack.c.l.b16 %v1337
  %v1406 = vunpack.c.l.b16 %v1338
  %v1407 = vunpack.c.l.b16 %v1339
  %v1408 = vunpack.c.l.b16 %v1340
  %v1409 = vpack.c.b16 %v1378, %v1377
  %v1410 = vpack.c.b16 %v1380, %v1379
  %v1411 = vpack.c.b16 %v1382, %v1381
  %v1412 = vpack.c.b16 %v1384, %v1383
  %v1413 = vpack.c.b16 %v1386, %v1385
  %v1414 = vpack.c.b16 %v1388, %v1387
  %v1415 = vpack.c.b16 %v1390, %v1389
  %v1416 = vpack.c.b16 %v1392, %v1391
  %v1417 = vpack.c.b16 %v1394, %v1393
  %v1418 = vpack.c.b16 %v1396, %v1395
  %v1419 = vpack.c.b16 %v1398, %v1397
  %v1420 = vpack.c.b16 %v1400, %v1399
  %v1421 = vpack.c.b16 %v1402, %v1401
  %v1422 = vpack.c.b16 %v1404, %v1403
  %v1423 = vpack.c.b16 %v1406, %v1405
  %v1424 = vpack.c.b16 %v1408, %v1407
  %1441 = vmatprep.subr.bf16.mxu0 0
  %1442 = vmatpush1.bf16.msra.mxu0 %v1409
  %1443 = vmatprep.subr.bf16.mxu0 0
  %1444 = vmatpush1.bf16.msra.mxu0 %v1410
  %1445 = vmatprep.subr.bf16.mxu0 0
  %1446 = vmatpush1.bf16.msra.mxu0 %v1411
  %1447 = vmatprep.subr.bf16.mxu0 0
  %1448 = vmatpush1.bf16.msra.mxu0 %v1412
  %1449 = vmatprep.subr.bf16.mxu0 0
  %1450 = vmatpush1.bf16.msra.mxu0 %v1413
  %1451 = vmatprep.subr.bf16.mxu0 0
  %1452 = vmatpush1.bf16.msra.mxu0 %v1414
  %1453 = vmatprep.subr.bf16.mxu0 0
  %1454 = vmatpush1.bf16.msra.mxu0 %v1415
  %1455 = vmatprep.subr.bf16.mxu0 0
  %1456 = vmatpush1.bf16.msra.mxu0 %v1416
  %1457 = vmatprep.subr.bf16.mxu0 0
  %1458 = vmatpush1.bf16.msra.mxu0 %v1417
  %1459 = vmatprep.subr.bf16.mxu0 0
  %1460 = vmatpush1.bf16.msra.mxu0 %v1418
  %1461 = vmatprep.subr.bf16.mxu0 0
  %1462 = vmatpush1.bf16.msra.mxu0 %v1419
  %1463 = vmatprep.subr.bf16.mxu0 0
  %1464 = vmatpush1.bf16.msra.mxu0 %v1420
  %1465 = vmatprep.subr.bf16.mxu0 0
  %1466 = vmatpush1.bf16.msra.mxu0 %v1421
  %1467 = vmatprep.subr.bf16.mxu0 0
  %1468 = vmatpush1.bf16.msra.mxu0 %v1422
  %1469 = vmatprep.subr.bf16.mxu0 0
  %1470 = vmatpush1.bf16.msra.mxu0 %v1423
  %1471 = vmatprep.subr.bf16.mxu0 0
  %1472 = vmatpush1.bf16.msra.mxu0 %v1424
  %1473 = vmatprep.mubr.bf16.mxu0 %v1308
  %1474 = vmatmul.mubr.bf16.gmra.mrb[0].mxu0 %v1307
  %v1475 = vpop.f32.mrb[0].mxu0
  %v1476 = vadd.f32 %v1344, %v1475
  %v1477 = vpop.f32.mrb[0].mxu0
  %v1478 = vpop.f32.mrb[0].mxu0
  %v1479 = vpop.f32.mrb[0].mxu0
  %1480 = vdwg.mxu0
  %v1481 = vld [vmem:[%s6] sm:$0x1]
  %v1483 = vlaneseq
  %v1484 = vshrl.u32 %v1483, 7
  %v1485 = vsub.s32 0, %v1484
  %v1486 = vrot.slane %v1481, %v1485
  %v1488 = vadd.f32 %v1476, %v1486
  %1489 = vst [vmem:[%s7] sm:$0xff] %v1488
  %v1490 = vlaneseq
  %v1491 = vand.u32 %v1490, 127
  %vm1492 = vcmp.ge.s32.totalorder %v1491, 2
  %vm1493 = vcmp.lt.s32.totalorder %v1491, 7
  %vm1494 = vmand %vm1492, %vm1493
  %v1495 = vsel %vm1494, %v1488, -1e+30
  %1496 = vmax.xlane.f32.xlu0 %v1495
  %v1497 = vpop.xlane.xlu0 %1496
  %v1498 = vsub.f32 %v1495, %v1497
  %v1499 = vmul.f32 %v1498, 1.442695
  %v1500 = vpow.pop %v1499
  %v1501 = vsel %vm1494, %v1500, 0.0
  %1502 = vadd.xlane.f32.xlu0 %v1501
  %v1503 = vpop.xlane.xlu0 %1502
  %v1504 = vrcp.pop %v1503
  %v1505 = vmul.f32 %v1501, %v1504
  %1506 = vst [vmem:[%s8] sm:$0xff] %v1505
  // Predicated region
  $region30: #{faster_rcnn_meaa_forward.9} parent=0 // pred_check
    _
  $region31: #{faster_rcnn_meaa_forward.9} parent=0 // pred_check_branch
    %1508 = sbr.rel (0) target = $region33
  $region32: #{faster_rcnn_meaa_forward.9} parent=0 // pred_region
    _
  $region33: #{faster_rcnn_meaa_forward.9} parent=0 // pred_fallthru
    _
  // Predicated region
  $region34: #{faster_rcnn_meaa_forward.9} parent=0 // pred_check
    _
  $region35: #{faster_rcnn_meaa_forward.9} parent=0 // pred_check_branch
    %1510 = sbr.rel (0) target = $region37
  $region36: #{faster_rcnn_meaa_forward.9} parent=0 // pred_region
    _
  $region37: #{faster_rcnn_meaa_forward.9} parent=0 // pred_fallthru
    _
  // Predicated region
  $region38: #{faster_rcnn_meaa_forward.9} parent=0 // pred_check
    _
  $region39: #{faster_rcnn_meaa_forward.9} parent=0 // pred_check_branch
    %1512 = sbr.rel (0) target = $region41
  $region40: #{faster_rcnn_meaa_forward.9} parent=0 // pred_region
    _
  $region41: #{faster_rcnn_meaa_forward.9} parent=0 // pred_fallthru
    _
  // Predicated region
  $region42: #{faster_rcnn_meaa_forward.9} parent=0 // pred_check
    _
  $region43: #{faster_rcnn_meaa_forward.9} parent=0 // pred_check_branch
    %1514 = sbr.rel (0) target = $region45
  $region44: #{faster_rcnn_meaa_forward.9} parent=0 // pred_region
    _
  $region45: #{faster_rcnn_meaa_forward.9} parent=0 // pred_fallthru
    _

</llo_original>
